<compile_context>
chip_gen: v6e
topology: v6e:2x2x1
jax: 0.10.0
libtpu: 0.0.40
codegen_flags: <defaults>
</compile_context>

<pallas_src>
import functools
import math

import jax
import jax.numpy as jnp
from jax.experimental import pallas as pl
from jax.experimental.pallas import tpu as pltpu

LN_EPS = 1e-5          # torch.nn.LayerNorm default
MASK_BIAS = -1e30      # finite additive mask value (avoids inf - inf -> NaN)
HEAD_PAD = 128         # lane-dense padding of the 2-way head output


def _layernorm(x, g, b):
    mu = jnp.mean(x, axis=-1, keepdims=True)
    var = jnp.mean((x - mu) ** 2, axis=-1, keepdims=True)
    return (x - mu) * jax.lax.rsqrt(var + LN_EPS) * g + b


# ----------------------------------------------------------------------------
# Shared block body: one pre-LN encoder block for the current (TQ, C) query tile.
# x_ref holds the full (1, T, C) bf16 sequence of the current batch element;
# K/V for the whole sequence are computed once per batch element (qi == 0) into
# VMEM scratch and reused across query tiles.  All projections are packed (C, C)
# matmuls; only the score/value contractions are per head via static lane slices.
# ----------------------------------------------------------------------------
def _block_body(x_ref, bias_ref,
                ln1_g, ln1_b, wq, bq, wk, bk, wv, bv, wo, bo,
                ln2_g, ln2_b, w1, b1, w2, b2,
                k_cache, v_cache, *, head_count, q_tile):
    qi = pl.program_id(1)
    T, C = x_ref.shape[1], x_ref.shape[2]
    H = head_count
    hs = C // H
    TQ = q_tile
    scale = hs ** -0.5

    # --- K/V for the full sequence: compute once per batch element (qi == 0) ---
    @pl.when(qi == 0)
    def _():
        x_full = x_ref[0].astype(jnp.float32)                        # (T, C)
        xn = _layernorm(x_full, ln1_g, ln1_b).astype(jnp.bfloat16)
        k = jnp.dot(xn, wk, preferred_element_type=jnp.float32) + bk
        v = jnp.dot(xn, wv, preferred_element_type=jnp.float32) + bv
        k_cache[...] = k.astype(jnp.bfloat16)                        # (T, C) packed, lane-dense
        v_cache[...] = v.astype(jnp.bfloat16)

    # --- query tile, sliced from the resident full-sequence block ---
    q_start = pl.multiple_of(qi * TQ, TQ)
    x_q = x_ref[0, pl.ds(q_start, TQ), :].astype(jnp.float32)        # (TQ, C)
    xq_n = _layernorm(x_q, ln1_g, ln1_b).astype(jnp.bfloat16)
    q = jnp.dot(xq_n, wq, preferred_element_type=jnp.float32) + bq   # (TQ, C), full-width MXU
    q = (q * scale).astype(jnp.bfloat16)                             # fold 1/sqrt(hs) into q

    k_all = k_cache[...]                                             # (T, C) bf16
    v_all = v_cache[...]
    bias = bias_ref[0]                                               # (1, T) additive key mask

    head_outs = []
    for h in range(H):                                               # unrolled; H is small
        sl = slice(h * hs, (h + 1) * hs)
        s = jax.lax.dot_general(q[:, sl], k_all[:, sl],
                                (((1,), (1,)), ((), ())),
                                preferred_element_type=jnp.float32)  # (TQ, T)
        s = s + bias
        s = s - jnp.max(s, axis=-1, keepdims=True)
        p = jnp.exp(s)
        p = p * pl.reciprocal(jnp.sum(p, axis=-1, keepdims=True), approx=True)
        o_h = jnp.dot(p.astype(jnp.bfloat16), v_all[:, sl],
                      preferred_element_type=jnp.float32)            # (TQ, hs)
        head_outs.append(o_h.astype(jnp.bfloat16))
    o = jnp.concatenate(head_outs, axis=-1)                          # (TQ, C) == concat(heads)

    sa = jnp.dot(o, wo, preferred_element_type=jnp.float32) + bo     # packed out-proj
    x1 = x_q + sa

    # --- feed forward on ln2(x1) ---
    xn2 = _layernorm(x1, ln2_g, ln2_b).astype(jnp.bfloat16)
    h1 = jnp.maximum(
        jnp.dot(xn2, w1, preferred_element_type=jnp.float32) + b1, 0.0)
    ff = jnp.dot(h1.astype(jnp.bfloat16), w2, preferred_element_type=jnp.float32) + b2
    return x1 + ff


def encoder_block_kernel(x_ref, bias_ref,
                         ln1_g_ref, ln1_b_ref,
                         wq_ref, bq_ref, wk_ref, bk_ref, wv_ref, bv_ref,
                         wo_ref, bo_ref,
                         ln2_g_ref, ln2_b_ref,
                         w1_ref, b1_ref, w2_ref, b2_ref,
                         out_ref, k_cache, v_cache, *, head_count, q_tile):
    y = _block_body(x_ref, bias_ref,
                    ln1_g_ref[...], ln1_b_ref[...],
                    wq_ref[...], bq_ref[...], wk_ref[...], bk_ref[...],
                    wv_ref[...], bv_ref[...], wo_ref[...], bo_ref[...],
                    ln2_g_ref[...], ln2_b_ref[...],
                    w1_ref[...], b1_ref[...], w2_ref[...], b2_ref[...],
                    k_cache, v_cache, head_count=head_count, q_tile=q_tile)
    out_ref[0] = y.astype(out_ref.dtype)


def encoder_block_final_kernel(x_ref, bias_ref,
                               ln1_g_ref, ln1_b_ref,
                               wq_ref, bq_ref, wk_ref, bk_ref, wv_ref, bv_ref,
                               wo_ref, bo_ref,
                               ln2_g_ref, ln2_b_ref,
                               w1_ref, b1_ref, w2_ref, b2_ref,
                               lnf_g_ref, lnf_b_ref, whp_ref, bhp_ref,
                               logits_ref, k_cache, v_cache, *, head_count, q_tile):
    # Last layer: fuse ln_f + linear_head; only the lane-dense padded bf16 logits leave VMEM.
    y = _block_body(x_ref, bias_ref,
                    ln1_g_ref[...], ln1_b_ref[...],
                    wq_ref[...], bq_ref[...], wk_ref[...], bk_ref[...],
                    wv_ref[...], bv_ref[...], wo_ref[...], bo_ref[...],
                    ln2_g_ref[...], ln2_b_ref[...],
                    w1_ref[...], b1_ref[...], w2_ref[...], b2_ref[...],
                    k_cache, v_cache, head_count=head_count, q_tile=q_tile)
    yn = _layernorm(y, lnf_g_ref[...], lnf_b_ref[...]).astype(jnp.bfloat16)
    logits_ref[0] = (jnp.dot(yn, whp_ref[...], preferred_element_type=jnp.float32)
                     + bhp_ref[...]).astype(logits_ref.dtype)


# ----------------------------------------------------------------------------
# pallas_call wrappers: grid = (B, T // q_tile); batch axis parallel (megacore),
# query-tile axis arbitrary (sequential per core, required for the K/V scratch cache).
# ----------------------------------------------------------------------------
def _weight_spec(w):
    idx = lambda b, qi, _n=w.ndim: (0,) * _n
    try:
        # Grid-invariant operands -> a single VMEM buffer suffices.
        return pl.BlockSpec(w.shape, idx, pipeline_mode=pl.Buffered(1))
    except TypeError:                      # older jax without pipeline_mode
        return pl.BlockSpec(w.shape, idx)


def _pick_q_tile(T, q_tile):
    # Prefer qt = T (no K/V-cache refills, biggest tiles). If tiling, qt must
    # divide T and be sublane-aligned; multiples of 128/256 preferred on v6e/v7x.
    qt = q_tile if q_tile is not None else T
    if qt <= 0 or qt > T or T % qt != 0 or qt % 8 != 0:
        qt = T
    return qt


def _vmem_limit_bytes():
    # ~75% of the physical per-core VMEM: v5e/v6e (128 MiB) -> 96 MiB, v7x (64 MiB) -> 48 MiB.
    cap = None
    try:
        cap = int(pltpu.get_tpu_info().vmem_capacity_bytes)
    except Exception:
        cap = None
    if cap is None:
        try:
            kind = jax.devices()[0].device_kind.lower()
        except Exception:
            kind = ""
        cap = (64 if "v7" in kind else 128) * 1024 * 1024
    return int(cap * 3 // 4)


def _compiler_params():
    return pltpu.CompilerParams(
        dimension_semantics=("parallel", "arbitrary"),
        vmem_limit_bytes=_vmem_limit_bytes(),
    )


def _common_specs(B, T, C, qt, weights):
    grid = (B, T // qt)
    in_specs = ([pl.BlockSpec((1, T, C), lambda b, qi: (b, 0, 0)),   # full sequence (queries sliced in-kernel)
                 pl.BlockSpec((1, 1, T), lambda b, qi: (b, 0, 0))]   # additive key-mask bias
                + [_weight_spec(w) for w in weights])
    scratch = [pltpu.VMEM((T, C), jnp.bfloat16),                     # K cache (per batch element)
               pltpu.VMEM((T, C), jnp.bfloat16)]                     # V cache
    return grid, in_specs, scratch


def encoder_block(x, key_bias3, layer_params, head_count, q_tile=None):
    B, T, C = x.shape
    qt = _pick_q_tile(T, q_tile)
    grid, in_specs, scratch = _common_specs(B, T, C, qt, layer_params)
    return pl.pallas_call(
        functools.partial(encoder_block_kernel, head_count=head_count, q_tile=qt),
        out_shape=jax.ShapeDtypeStruct((B, T, C), jnp.bfloat16),
        grid=grid,
        in_specs=in_specs,
        out_specs=pl.BlockSpec((1, qt, C), lambda b, qi: (b, qi, 0)),
        scratch_shapes=scratch,
        compiler_params=_compiler_params(),
    )(x, key_bias3, *layer_params)


def encoder_block_final(x, key_bias3, layer_params, head_params, head_count,
                        q_tile=None):
    B, T, C = x.shape
    n_pad = head_params[2].shape[-1]                   # padded head width (128)
    weights = tuple(layer_params) + tuple(head_params)
    qt = _pick_q_tile(T, q_tile)
    grid, in_specs, scratch = _common_specs(B, T, C, qt, weights)
    return pl.pallas_call(
        functools.partial(encoder_block_final_kernel, head_count=head_count, q_tile=qt),
        out_shape=jax.ShapeDtypeStruct((B, T, n_pad), jnp.bfloat16),
        grid=grid,
        in_specs=in_specs,
        out_specs=pl.BlockSpec((1, qt, n_pad), lambda b, qi: (b, qi, 0)),
        scratch_shapes=scratch,
        compiler_params=_compiler_params(),
    )(x, key_bias3, *weights)


# ----------------------------------------------------------------------------
# Parameters mirroring EncoderPosEncWave._init_weights (Linear/Embedding weights
# ~ N(0, 0.02), biases 0, LayerNorm (1, 0)).  Matmul weights are stored packed
# (C, C) / (C, 4C) / (4C, C) in bf16; the 2-way head is zero-padded to 128 lanes.
# ----------------------------------------------------------------------------
def _sinusoid_pe(max_len, C):
    position = jnp.arange(max_len, dtype=jnp.float32)[:, None]
    div_term = jnp.exp(jnp.arange(0, C, 2, dtype=jnp.float32)
                       * (-math.log(10000.0) / C))
    ang = position * div_term
    pe = jnp.zeros((max_len, C), jnp.float32)
    pe = pe.at[:, 0::2].set(jnp.sin(ang))
    pe = pe.at[:, 1::2].set(jnp.cos(ang))
    return pe


def init_params(key, n_vocab, n_embed, block_size, head_count, n_layers,
                max_len=1000):
    del block_size, head_count  # kept for signature parity (packed weights don't need H)
    C = n_embed
    keys = iter(jax.random.split(key, 2 + 6 * n_layers))
    nrm = lambda k, shape: 0.02 * jax.random.normal(k, shape, dtype=jnp.float32)
    wgt = lambda k, shape: nrm(k, shape).astype(jnp.bfloat16)   # MXU operands
    zeros = lambda shape: jnp.zeros(shape, jnp.float32)
    ones = lambda shape: jnp.ones(shape, jnp.float32)

    tok_table = nrm(next(keys), (n_vocab, C))
    pe_table = _sinusoid_pe(max_len, C)

    layers = []
    for _ in range(n_layers):
        layers.append((
            ones((1, C)), zeros((1, C)),                        # ln1
            wgt(next(keys), (C, C)), zeros((1, C)),             # Wq (heads packed along cols), bq
            wgt(next(keys), (C, C)), zeros((1, C)),             # Wk, bk
            wgt(next(keys), (C, C)), zeros((1, C)),             # Wv, bv
            wgt(next(keys), (C, C)), zeros((1, C)),             # Wo (proj), bo
            ones((1, C)), zeros((1, C)),                        # ln2
            wgt(next(keys), (C, 4 * C)), zeros((1, 4 * C)),     # ffn in
            wgt(next(keys), (4 * C, C)), zeros((1, C)),         # ffn out
        ))

    lnf_g = ones((1, C))
    lnf_b = zeros((1, C))
    wh = nrm(next(keys), (C, 2))
    wh_pad = jnp.zeros((C, HEAD_PAD), jnp.float32).at[:, :2].set(wh).astype(jnp.bfloat16)
    bh_pad = zeros((1, HEAD_PAD))
    return tok_table, pe_table, layers, (lnf_g, lnf_b, wh_pad, bh_pad)


# ----------------------------------------------------------------------------
# Full forward matching EncoderPosEncWave.forward (eval mode, dropout identity).
# ----------------------------------------------------------------------------
def encoder_pos_enc_wave_forward(tokens, attention_mask, params, head_count,
                                 q_tile=None):
    tok_table, pe_table, layers, head_params = params
    B, T = tokens.shape
    C = tok_table.shape[-1]

    attention_mask = attention_mask.astype(jnp.float32)
    shifted = jnp.concatenate(
        [attention_mask[:, 1:], jnp.zeros((B, 1), jnp.float32)], axis=-1)     # (B, T)
    logits_mask = shifted[:, :, None] != attention_mask[:, :, None]           # (B, T, 1)

    tok_embed = jnp.take(tok_table, tokens, axis=0) * math.sqrt(C)            # (B, T, C)
    # PositionalEncodingWave quirk (faithful to the module): pe[:x.size(0)]
    # indexes the first B positions (batch index, not sequence position),
    # broadcasts over T, and is zeroed where the left-shifted mask is 0.
    pos = jnp.where(shifted[:, :, None] == 0.0, 0.0, pe_table[:B][:, None, :])
    h = (tok_embed + pos).astype(jnp.bfloat16)          # bf16 inter-layer activations

    # Additive key-mask bias, precomputed once: 0 where valid key, -1e30 where pad.
    key_bias3 = jnp.where(attention_mask > 0.0, 0.0, MASK_BIAS).reshape(B, 1, T)

    # TODO(synk): for deep stacks, fuse all layers in one pallas_call (layer grid
    # axis + scalar-prefetched weight indexing) to remove per-layer HBM round trips.
    for layer_params in layers[:-1]:
        h = encoder_block(h, key_bias3, layer_params, head_count, q_tile)
    logits_pad = encoder_block_final(h, key_bias3, layers[-1], head_params,
                                     head_count, q_tile)
    logits = logits_pad[:, :, :2].astype(jnp.float32)                         # (B, T, 2)

    # torch.masked_select equivalent: dynamic-shape boolean gather; must stay
    # eager (outside jit), as in the reference module's usage.
    full_mask = jnp.broadcast_to(logits_mask, logits.shape)
    return logits[full_mask].reshape(-1, 2)


if __name__ == "__main__":
    # Small, module-consistent, lane-friendly shapes (C multiple of 128; T multiple of q_tile).
    B, T = 2, 32
    n_vocab, n_embed, block_size = 50, 128, 32
    head_count, n_layers, dropout = 4, 2, 0.1   # dropout unused (eval mode)

    key = jax.random.PRNGKey(0)
    pkey, tkey = jax.random.split(key)
    params = init_params(pkey, n_vocab, n_embed, block_size, head_count, n_layers)

    tokens = jax.random.randint(tkey, (B, T), 0, n_vocab, dtype=jnp.int32)
    # attention_mask: 1s then 0s; each row has at least one valid token.
    attention_mask = jnp.array([[1.0] * 20 + [0.0] * 12,
                                [1.0] * 32], dtype=jnp.float32)

    # q_tile=16 -> grid (B, 2): exercises the K/V-cache path across query tiles.
    out = encoder_pos_enc_wave_forward(tokens, attention_mask, params,
                                       head_count, q_tile=16)
    jax.block_until_ready(out)
    assert out.shape == (B, 2), out.shape
    assert bool(jnp.all(jnp.isfinite(out)))
    print("KERNEL_OK")
</pallas_src>

<mosaic_0001>
module attributes {stable_mosaic.version = 11 : i64} {
  func.func @encoder_block_kernel(%arg0: i32, %arg1: i32, %arg2: memref<1x32x128xbf16, #tpu.memory_space<vmem>>, %arg3: memref<1x1x32xf32, #tpu.memory_space<vmem>>, %arg4: memref<1x128xf32, #tpu.memory_space<vmem>>, %arg5: memref<1x128xf32, #tpu.memory_space<vmem>>, %arg6: memref<128x128xbf16, #tpu.memory_space<vmem>>, %arg7: memref<1x128xf32, #tpu.memory_space<vmem>>, %arg8: memref<128x128xbf16, #tpu.memory_space<vmem>>, %arg9: memref<1x128xf32, #tpu.memory_space<vmem>>, %arg10: memref<128x128xbf16, #tpu.memory_space<vmem>>, %arg11: memref<1x128xf32, #tpu.memory_space<vmem>>, %arg12: memref<128x128xbf16, #tpu.memory_space<vmem>>, %arg13: memref<1x128xf32, #tpu.memory_space<vmem>>, %arg14: memref<1x128xf32, #tpu.memory_space<vmem>>, %arg15: memref<1x128xf32, #tpu.memory_space<vmem>>, %arg16: memref<128x512xbf16, #tpu.memory_space<vmem>>, %arg17: memref<1x512xf32, #tpu.memory_space<vmem>>, %arg18: memref<512x128xbf16, #tpu.memory_space<vmem>>, %arg19: memref<1x128xf32, #tpu.memory_space<vmem>>, %arg20: memref<1x16x128xbf16, #tpu.memory_space<vmem>>, %arg21: memref<32x128xbf16, #tpu.memory_space<vmem>>, %arg22: memref<32x128xbf16, #tpu.memory_space<vmem>>) attributes {dimension_semantics = [#tpu.dimension_semantics<parallel>, #tpu.dimension_semantics<arbitrary>], iteration_bounds = array<i64: 2, 2>, scalar_prefetch = 0 : i64, scratch_operands = 2 : i64, tpu.core_type = #tpu.core_type<tc>, window_params = [{transform_indices = @transform_0, window_bounds = array<i64: 1, 32, 128>}, {transform_indices = @transform_1, window_bounds = array<i64: 1, 1, 32>}, {pipeline_mode = #tpu.pipeline_mode<synchronous>, transform_indices = @transform_2, window_bounds = array<i64: 1, 128>}, {pipeline_mode = #tpu.pipeline_mode<synchronous>, transform_indices = @transform_3, window_bounds = array<i64: 1, 128>}, {pipeline_mode = #tpu.pipeline_mode<synchronous>, transform_indices = @transform_4, window_bounds = array<i64: 128, 128>}, {pipeline_mode = #tpu.pipeline_mode<synchronous>, transform_indices = @transform_5, window_bounds = array<i64: 1, 128>}, {pipeline_mode = #tpu.pipeline_mode<synchronous>, transform_indices = @transform_6, window_bounds = array<i64: 128, 128>}, {pipeline_mode = #tpu.pipeline_mode<synchronous>, transform_indices = @transform_7, window_bounds = array<i64: 1, 128>}, {pipeline_mode = #tpu.pipeline_mode<synchronous>, transform_indices = @transform_8, window_bounds = array<i64: 128, 128>}, {pipeline_mode = #tpu.pipeline_mode<synchronous>, transform_indices = @transform_9, window_bounds = array<i64: 1, 128>}, {pipeline_mode = #tpu.pipeline_mode<synchronous>, transform_indices = @transform_10, window_bounds = array<i64: 128, 128>}, {pipeline_mode = #tpu.pipeline_mode<synchronous>, transform_indices = @transform_11, window_bounds = array<i64: 1, 128>}, {pipeline_mode = #tpu.pipeline_mode<synchronous>, transform_indices = @transform_12, window_bounds = array<i64: 1, 128>}, {pipeline_mode = #tpu.pipeline_mode<synchronous>, transform_indices = @transform_13, window_bounds = array<i64: 1, 128>}, {pipeline_mode = #tpu.pipeline_mode<synchronous>, transform_indices = @transform_14, window_bounds = array<i64: 128, 512>}, {pipeline_mode = #tpu.pipeline_mode<synchronous>, transform_indices = @transform_15, window_bounds = array<i64: 1, 512>}, {pipeline_mode = #tpu.pipeline_mode<synchronous>, transform_indices = @transform_16, window_bounds = array<i64: 512, 128>}, {pipeline_mode = #tpu.pipeline_mode<synchronous>, transform_indices = @transform_17, window_bounds = array<i64: 1, 128>}, {transform_indices = @transform_18, window_bounds = array<i64: 1, 16, 128>}]} {
    %c0 = arith.constant 0 : index
    %c0_0 = arith.constant 0 : index
    %0 = vector.load %arg4[%c0, %c0_0] : memref<1x128xf32, #tpu.memory_space<vmem>>, vector<1x128xf32>
    %c0_1 = arith.constant 0 : index
    %c0_2 = arith.constant 0 : index
    %1 = vector.load %arg5[%c0_1, %c0_2] : memref<1x128xf32, #tpu.memory_space<vmem>>, vector<1x128xf32>
    %c0_3 = arith.constant 0 : index
    %c0_4 = arith.constant 0 : index
    %2 = vector.load %arg6[%c0_3, %c0_4] : memref<128x128xbf16, #tpu.memory_space<vmem>>, vector<128x128xbf16>
    %c0_5 = arith.constant 0 : index
    %c0_6 = arith.constant 0 : index
    %3 = vector.load %arg7[%c0_5, %c0_6] : memref<1x128xf32, #tpu.memory_space<vmem>>, vector<1x128xf32>
    %c0_7 = arith.constant 0 : index
    %c0_8 = arith.constant 0 : index
    %4 = vector.load %arg8[%c0_7, %c0_8] : memref<128x128xbf16, #tpu.memory_space<vmem>>, vector<128x128xbf16>
    %c0_9 = arith.constant 0 : index
    %c0_10 = arith.constant 0 : index
    %5 = vector.load %arg9[%c0_9, %c0_10] : memref<1x128xf32, #tpu.memory_space<vmem>>, vector<1x128xf32>
    %c0_11 = arith.constant 0 : index
    %c0_12 = arith.constant 0 : index
    %6 = vector.load %arg10[%c0_11, %c0_12] : memref<128x128xbf16, #tpu.memory_space<vmem>>, vector<128x128xbf16>
    %c0_13 = arith.constant 0 : index
    %c0_14 = arith.constant 0 : index
    %7 = vector.load %arg11[%c0_13, %c0_14] : memref<1x128xf32, #tpu.memory_space<vmem>>, vector<1x128xf32>
    %c0_15 = arith.constant 0 : index
    %c0_16 = arith.constant 0 : index
    %8 = vector.load %arg12[%c0_15, %c0_16] : memref<128x128xbf16, #tpu.memory_space<vmem>>, vector<128x128xbf16>
    %c0_17 = arith.constant 0 : index
    %c0_18 = arith.constant 0 : index
    %9 = vector.load %arg13[%c0_17, %c0_18] : memref<1x128xf32, #tpu.memory_space<vmem>>, vector<1x128xf32>
    %c0_19 = arith.constant 0 : index
    %c0_20 = arith.constant 0 : index
    %10 = vector.load %arg14[%c0_19, %c0_20] : memref<1x128xf32, #tpu.memory_space<vmem>>, vector<1x128xf32>
    %c0_21 = arith.constant 0 : index
    %c0_22 = arith.constant 0 : index
    %11 = vector.load %arg15[%c0_21, %c0_22] : memref<1x128xf32, #tpu.memory_space<vmem>>, vector<1x128xf32>
    %c0_23 = arith.constant 0 : index
    %c0_24 = arith.constant 0 : index
    %12 = vector.load %arg16[%c0_23, %c0_24] : memref<128x512xbf16, #tpu.memory_space<vmem>>, vector<128x512xbf16>
    %c0_25 = arith.constant 0 : index
    %c0_26 = arith.constant 0 : index
    %13 = vector.load %arg17[%c0_25, %c0_26] : memref<1x512xf32, #tpu.memory_space<vmem>>, vector<1x512xf32>
    %c0_27 = arith.constant 0 : index
    %c0_28 = arith.constant 0 : index
    %14 = vector.load %arg18[%c0_27, %c0_28] : memref<512x128xbf16, #tpu.memory_space<vmem>>, vector<512x128xbf16>
    %c0_29 = arith.constant 0 : index
    %c0_30 = arith.constant 0 : index
    %15 = vector.load %arg19[%c0_29, %c0_30] : memref<1x128xf32, #tpu.memory_space<vmem>>, vector<1x128xf32>
    %c0_i32 = arith.constant 0 : i32
    %16 = arith.cmpi eq, %arg1, %c0_i32 : i32
    %17 = arith.extui %16 : i1 to i32
    %c0_i32_31 = arith.constant 0 : i32
    %18 = arith.cmpi ne, %17, %c0_i32_31 : i32
    scf.if %18 {
      %c0_75 = arith.constant 0 : index
      %c0_76 = arith.constant 0 : index
      %c0_77 = arith.constant 0 : index
      %176 = vector.load %arg2[%c0_75, %c0_76, %c0_77] : memref<1x32x128xbf16, #tpu.memory_space<vmem>>, vector<1x32x128xbf16>
      %177 = vector.shape_cast %176 : vector<1x32x128xbf16> to vector<32x128xbf16>
      %178 = arith.extf %177 : vector<32x128xbf16> to vector<32x128xf32>
      %cst_78 = arith.constant dense<0.000000e+00> : vector<32xf32>
      %179 = vector.multi_reduction <add>, %178, %cst_78 [1] : vector<32x128xf32> to vector<32xf32>
      %180 = vector.shape_cast %179 : vector<32xf32> to vector<32x1xf32>
      %cst_79 = arith.constant 1.280000e+02 : f32
      %181 = vector.broadcast %cst_79 : f32 to vector<32x1xf32>
      %182 = arith.divf %180, %181 : vector<32x1xf32>
      %183 = vector.broadcast %182 : vector<32x1xf32> to vector<32x128xf32>
      %184 = arith.subf %178, %183 : vector<32x128xf32>
      %185 = arith.mulf %184, %184 : vector<32x128xf32>
      %cst_80 = arith.constant dense<0.000000e+00> : vector<32xf32>
      %186 = vector.multi_reduction <add>, %185, %cst_80 [1] : vector<32x128xf32> to vector<32xf32>
      %187 = vector.shape_cast %186 : vector<32xf32> to vector<32x1xf32>
      %cst_81 = arith.constant 1.280000e+02 : f32
      %188 = vector.broadcast %cst_81 : f32 to vector<32x1xf32>
      %189 = arith.divf %187, %188 : vector<32x1xf32>
      %190 = vector.broadcast %182 : vector<32x1xf32> to vector<32x128xf32>
      %191 = arith.subf %178, %190 : vector<32x128xf32>
      %cst_82 = arith.constant 9.99999974E-6 : f32
      %192 = vector.broadcast %cst_82 : f32 to vector<32x1xf32>
      %193 = arith.addf %189, %192 : vector<32x1xf32>
      %194 = math.rsqrt %193 : vector<32x1xf32>
      %195 = vector.broadcast %194 : vector<32x1xf32> to vector<32x128xf32>
      %196 = arith.mulf %191, %195 : vector<32x128xf32>
      %197 = vector.broadcast %0 : vector<1x128xf32> to vector<32x128xf32>
      %198 = arith.mulf %196, %197 : vector<32x128xf32>
      %199 = vector.broadcast %1 : vector<1x128xf32> to vector<32x128xf32>
      %200 = arith.addf %198, %199 : vector<32x128xf32>
      %201 = arith.truncf %200 : vector<32x128xf32> to vector<32x128xbf16>
      %cst_83 = arith.constant dense<0.000000e+00> : vector<32x128xf32>
      %202 = tpu.matmul %201, %4, %cst_83 {dimension_numbers = #tpu.dot_dimension_numbers<[1], [0], [0], [1], [0, 0, 1, 1], [], []>} : vector<32x128xbf16>, vector<128x128xbf16>, vector<32x128xf32> -> vector<32x128xf32>
      %203 = vector.broadcast %5 : vector<1x128xf32> to vector<32x128xf32>
      %204 = arith.addf %202, %203 : vector<32x128xf32>
      %cst_84 = arith.constant dense<0.000000e+00> : vector<32x128xf32>
      %205 = tpu.matmul %201, %6, %cst_84 {dimension_numbers = #tpu.dot_dimension_numbers<[1], [0], [0], [1], [0, 0, 1, 1], [], []>} : vector<32x128xbf16>, vector<128x128xbf16>, vector<32x128xf32> -> vector<32x128xf32>
      %206 = vector.broadcast %7 : vector<1x128xf32> to vector<32x128xf32>
      %207 = arith.addf %205, %206 : vector<32x128xf32>
      %208 = arith.truncf %204 : vector<32x128xf32> to vector<32x128xbf16>
      %c0_85 = arith.constant 0 : index
      %c0_86 = arith.constant 0 : index
      %209 = vector.load %arg21[%c0_85, %c0_86] : memref<32x128xbf16, #tpu.memory_space<vmem>>, vector<32x128xbf16>
      tpu.vector_store %arg21[%c0_85, %c0_86], %208 {strides = array<i32>} : memref<32x128xbf16, #tpu.memory_space<vmem>>, vector<32x128xbf16>,
      %210 = arith.truncf %207 : vector<32x128xf32> to vector<32x128xbf16>
      %c0_87 = arith.constant 0 : index
      %c0_88 = arith.constant 0 : index
      %211 = vector.load %arg22[%c0_87, %c0_88] : memref<32x128xbf16, #tpu.memory_space<vmem>>, vector<32x128xbf16>
      tpu.vector_store %arg22[%c0_87, %c0_88], %210 {strides = array<i32>} : memref<32x128xbf16, #tpu.memory_space<vmem>>, vector<32x128xbf16>,
    } else {
    }
    %c16_i32 = arith.constant 16 : i32
    %19 = arith.muli %arg1, %c16_i32 : i32
    %20 = tpu.assume_multiple %19, 16 : i32
    %c0_32 = arith.constant 0 : index
    %21 = arith.index_cast %20 : i32 to index
    %c0_33 = arith.constant 0 : index
    %22 = vector.load %arg2[%c0_32, %21, %c0_33] : memref<1x32x128xbf16, #tpu.memory_space<vmem>>, vector<1x16x128xbf16>
    %23 = vector.shape_cast %22 : vector<1x16x128xbf16> to vector<16x128xbf16>
    %24 = arith.extf %23 : vector<16x128xbf16> to vector<16x128xf32>
    %cst = arith.constant dense<0.000000e+00> : vector<16xf32>
    %25 = vector.multi_reduction <add>, %24, %cst [1] : vector<16x128xf32> to vector<16xf32>
    %26 = vector.shape_cast %25 : vector<16xf32> to vector<16x1xf32>
    %cst_34 = arith.constant 1.280000e+02 : f32
    %27 = vector.broadcast %cst_34 : f32 to vector<16x1xf32>
    %28 = arith.divf %26, %27 : vector<16x1xf32>
    %29 = vector.broadcast %28 : vector<16x1xf32> to vector<16x128xf32>
    %30 = arith.subf %24, %29 : vector<16x128xf32>
    %31 = arith.mulf %30, %30 : vector<16x128xf32>
    %cst_35 = arith.constant dense<0.000000e+00> : vector<16xf32>
    %32 = vector.multi_reduction <add>, %31, %cst_35 [1] : vector<16x128xf32> to vector<16xf32>
    %33 = vector.shape_cast %32 : vector<16xf32> to vector<16x1xf32>
    %cst_36 = arith.constant 1.280000e+02 : f32
    %34 = vector.broadcast %cst_36 : f32 to vector<16x1xf32>
    %35 = arith.divf %33, %34 : vector<16x1xf32>
    %36 = vector.broadcast %28 : vector<16x1xf32> to vector<16x128xf32>
    %37 = arith.subf %24, %36 : vector<16x128xf32>
    %cst_37 = arith.constant 9.99999974E-6 : f32
    %38 = vector.broadcast %cst_37 : f32 to vector<16x1xf32>
    %39 = arith.addf %35, %38 : vector<16x1xf32>
    %40 = math.rsqrt %39 : vector<16x1xf32>
    %41 = vector.broadcast %40 : vector<16x1xf32> to vector<16x128xf32>
    %42 = arith.mulf %37, %41 : vector<16x128xf32>
    %43 = vector.broadcast %0 : vector<1x128xf32> to vector<16x128xf32>
    %44 = arith.mulf %42, %43 : vector<16x128xf32>
    %45 = vector.broadcast %1 : vector<1x128xf32> to vector<16x128xf32>
    %46 = arith.addf %44, %45 : vector<16x128xf32>
    %47 = arith.truncf %46 : vector<16x128xf32> to vector<16x128xbf16>
    %cst_38 = arith.constant dense<0.000000e+00> : vector<16x128xf32>
    %48 = tpu.matmul %47, %2, %cst_38 {dimension_numbers = #tpu.dot_dimension_numbers<[1], [0], [0], [1], [0, 0, 1, 1], [], []>} : vector<16x128xbf16>, vector<128x128xbf16>, vector<16x128xf32> -> vector<16x128xf32>
    %49 = vector.broadcast %3 : vector<1x128xf32> to vector<16x128xf32>
    %50 = arith.addf %48, %49 : vector<16x128xf32>
    %cst_39 = arith.constant 0.176776692 : f32
    %51 = vector.broadcast %cst_39 : f32 to vector<16x128xf32>
    %52 = arith.mulf %50, %51 : vector<16x128xf32>
    %53 = arith.truncf %52 : vector<16x128xf32> to vector<16x128xbf16>
    %c0_40 = arith.constant 0 : index
    %c0_41 = arith.constant 0 : index
    %54 = vector.load %arg21[%c0_40, %c0_41] : memref<32x128xbf16, #tpu.memory_space<vmem>>, vector<32x128xbf16>
    %c0_42 = arith.constant 0 : index
    %c0_43 = arith.constant 0 : index
    %55 = vector.load %arg22[%c0_42, %c0_43] : memref<32x128xbf16, #tpu.memory_space<vmem>>, vector<32x128xbf16>
    %c0_44 = arith.constant 0 : index
    %c0_45 = arith.constant 0 : index
    %c0_46 = arith.constant 0 : index
    %56 = vector.load %arg3[%c0_44, %c0_45, %c0_46] : memref<1x1x32xf32, #tpu.memory_space<vmem>>, vector<1x1x32xf32>
    %57 = vector.shape_cast %56 : vector<1x1x32xf32> to vector<1x32xf32>
    %58 = vector.extract_strided_slice %53 {offsets = [0, 0], sizes = [16, 32], strides = [1, 1]} : vector<16x128xbf16> to vector<16x32xbf16>
    %59 = vector.extract_strided_slice %54 {offsets = [0, 0], sizes = [32, 32], strides = [1, 1]} : vector<32x128xbf16> to vector<32x32xbf16>
    %cst_47 = arith.constant dense<0.000000e+00> : vector<16x32xf32>
    %60 = tpu.matmul %58, %59, %cst_47 {dimension_numbers = #tpu.dot_dimension_numbers<[1], [1], [0], [0], [0, 0, 1, 0], [], []>} : vector<16x32xbf16>, vector<32x32xbf16>, vector<16x32xf32> -> vector<16x32xf32>
    %61 = vector.broadcast %57 : vector<1x32xf32> to vector<16x32xf32>
    %62 = arith.addf %60, %61 : vector<16x32xf32>
    %cst_48 = arith.constant dense<0xFF800000> : vector<16xf32>
    %63 = vector.multi_reduction <maximumf>, %62, %cst_48 [1] : vector<16x32xf32> to vector<16xf32>
    %64 = vector.shape_cast %63 : vector<16xf32> to vector<16x1xf32>
    %65 = vector.broadcast %64 : vector<16x1xf32> to vector<16x32xf32>
    %66 = arith.subf %62, %65 : vector<16x32xf32>
    %67 = math.exp %66 : vector<16x32xf32>
    %cst_49 = arith.constant dense<0.000000e+00> : vector<16xf32>
    %68 = vector.multi_reduction <add>, %67, %cst_49 [1] : vector<16x32xf32> to vector<16xf32>
    %69 = vector.shape_cast %68 : vector<16xf32> to vector<16x1xf32>
    %70 = tpu.reciprocal %69 {approx = true} : vector<16x1xf32> -> vector<16x1xf32>
    %71 = vector.broadcast %70 : vector<16x1xf32> to vector<16x32xf32>
    %72 = arith.mulf %67, %71 : vector<16x32xf32>
    %73 = arith.truncf %72 : vector<16x32xf32> to vector<16x32xbf16>
    %74 = vector.extract_strided_slice %55 {offsets = [0, 0], sizes = [32, 32], strides = [1, 1]} : vector<32x128xbf16> to vector<32x32xbf16>
    %cst_50 = arith.constant dense<0.000000e+00> : vector<16x32xf32>
    %75 = tpu.matmul %73, %74, %cst_50 {dimension_numbers = #tpu.dot_dimension_numbers<[1], [0], [0], [1], [0, 0, 1, 1], [], []>} : vector<16x32xbf16>, vector<32x32xbf16>, vector<16x32xf32> -> vector<16x32xf32>
    %76 = arith.truncf %75 : vector<16x32xf32> to vector<16x32xbf16>
    %77 = vector.extract_strided_slice %53 {offsets = [0, 32], sizes = [16, 32], strides = [1, 1]} : vector<16x128xbf16> to vector<16x32xbf16>
    %78 = vector.extract_strided_slice %54 {offsets = [0, 32], sizes = [32, 32], strides = [1, 1]} : vector<32x128xbf16> to vector<32x32xbf16>
    %cst_51 = arith.constant dense<0.000000e+00> : vector<16x32xf32>
    %79 = tpu.matmul %77, %78, %cst_51 {dimension_numbers = #tpu.dot_dimension_numbers<[1], [1], [0], [0], [0, 0, 1, 0], [], []>} : vector<16x32xbf16>, vector<32x32xbf16>, vector<16x32xf32> -> vector<16x32xf32>
    %80 = vector.broadcast %57 : vector<1x32xf32> to vector<16x32xf32>
    %81 = arith.addf %79, %80 : vector<16x32xf32>
    %cst_52 = arith.constant dense<0xFF800000> : vector<16xf32>
    %82 = vector.multi_reduction <maximumf>, %81, %cst_52 [1] : vector<16x32xf32> to vector<16xf32>
    %83 = vector.shape_cast %82 : vector<16xf32> to vector<16x1xf32>
    %84 = vector.broadcast %83 : vector<16x1xf32> to vector<16x32xf32>
    %85 = arith.subf %81, %84 : vector<16x32xf32>
    %86 = math.exp %85 : vector<16x32xf32>
    %cst_53 = arith.constant dense<0.000000e+00> : vector<16xf32>
    %87 = vector.multi_reduction <add>, %86, %cst_53 [1] : vector<16x32xf32> to vector<16xf32>
    %88 = vector.shape_cast %87 : vector<16xf32> to vector<16x1xf32>
    %89 = tpu.reciprocal %88 {approx = true} : vector<16x1xf32> -> vector<16x1xf32>
    %90 = vector.broadcast %89 : vector<16x1xf32> to vector<16x32xf32>
    %91 = arith.mulf %86, %90 : vector<16x32xf32>
    %92 = arith.truncf %91 : vector<16x32xf32> to vector<16x32xbf16>
    %93 = vector.extract_strided_slice %55 {offsets = [0, 32], sizes = [32, 32], strides = [1, 1]} : vector<32x128xbf16> to vector<32x32xbf16>
    %cst_54 = arith.constant dense<0.000000e+00> : vector<16x32xf32>
    %94 = tpu.matmul %92, %93, %cst_54 {dimension_numbers = #tpu.dot_dimension_numbers<[1], [0], [0], [1], [0, 0, 1, 1], [], []>} : vector<16x32xbf16>, vector<32x32xbf16>, vector<16x32xf32> -> vector<16x32xf32>
    %95 = arith.truncf %94 : vector<16x32xf32> to vector<16x32xbf16>
    %96 = vector.extract_strided_slice %53 {offsets = [0, 64], sizes = [16, 32], strides = [1, 1]} : vector<16x128xbf16> to vector<16x32xbf16>
    %97 = vector.extract_strided_slice %54 {offsets = [0, 64], sizes = [32, 32], strides = [1, 1]} : vector<32x128xbf16> to vector<32x32xbf16>
    %cst_55 = arith.constant dense<0.000000e+00> : vector<16x32xf32>
    %98 = tpu.matmul %96, %97, %cst_55 {dimension_numbers = #tpu.dot_dimension_numbers<[1], [1], [0], [0], [0, 0, 1, 0], [], []>} : vector<16x32xbf16>, vector<32x32xbf16>, vector<16x32xf32> -> vector<16x32xf32>
    %99 = vector.broadcast %57 : vector<1x32xf32> to vector<16x32xf32>
    %100 = arith.addf %98, %99 : vector<16x32xf32>
    %cst_56 = arith.constant dense<0xFF800000> : vector<16xf32>
    %101 = vector.multi_reduction <maximumf>, %100, %cst_56 [1] : vector<16x32xf32> to vector<16xf32>
    %102 = vector.shape_cast %101 : vector<16xf32> to vector<16x1xf32>
    %103 = vector.broadcast %102 : vector<16x1xf32> to vector<16x32xf32>
    %104 = arith.subf %100, %103 : vector<16x32xf32>
    %105 = math.exp %104 : vector<16x32xf32>
    %cst_57 = arith.constant dense<0.000000e+00> : vector<16xf32>
    %106 = vector.multi_reduction <add>, %105, %cst_57 [1] : vector<16x32xf32> to vector<16xf32>
    %107 = vector.shape_cast %106 : vector<16xf32> to vector<16x1xf32>
    %108 = tpu.reciprocal %107 {approx = true} : vector<16x1xf32> -> vector<16x1xf32>
    %109 = vector.broadcast %108 : vector<16x1xf32> to vector<16x32xf32>
    %110 = arith.mulf %105, %109 : vector<16x32xf32>
    %111 = arith.truncf %110 : vector<16x32xf32> to vector<16x32xbf16>
    %112 = vector.extract_strided_slice %55 {offsets = [0, 64], sizes = [32, 32], strides = [1, 1]} : vector<32x128xbf16> to vector<32x32xbf16>
    %cst_58 = arith.constant dense<0.000000e+00> : vector<16x32xf32>
    %113 = tpu.matmul %111, %112, %cst_58 {dimension_numbers = #tpu.dot_dimension_numbers<[1], [0], [0], [1], [0, 0, 1, 1], [], []>} : vector<16x32xbf16>, vector<32x32xbf16>, vector<16x32xf32> -> vector<16x32xf32>
    %114 = arith.truncf %113 : vector<16x32xf32> to vector<16x32xbf16>
    %115 = vector.extract_strided_slice %53 {offsets = [0, 96], sizes = [16, 32], strides = [1, 1]} : vector<16x128xbf16> to vector<16x32xbf16>
    %116 = vector.extract_strided_slice %54 {offsets = [0, 96], sizes = [32, 32], strides = [1, 1]} : vector<32x128xbf16> to vector<32x32xbf16>
    %cst_59 = arith.constant dense<0.000000e+00> : vector<16x32xf32>
    %117 = tpu.matmul %115, %116, %cst_59 {dimension_numbers = #tpu.dot_dimension_numbers<[1], [1], [0], [0], [0, 0, 1, 0], [], []>} : vector<16x32xbf16>, vector<32x32xbf16>, vector<16x32xf32> -> vector<16x32xf32>
    %118 = vector.broadcast %57 : vector<1x32xf32> to vector<16x32xf32>
    %119 = arith.addf %117, %118 : vector<16x32xf32>
    %cst_60 = arith.constant dense<0xFF800000> : vector<16xf32>
    %120 = vector.multi_reduction <maximumf>, %119, %cst_60 [1] : vector<16x32xf32> to vector<16xf32>
    %121 = vector.shape_cast %120 : vector<16xf32> to vector<16x1xf32>
    %122 = vector.broadcast %121 : vector<16x1xf32> to vector<16x32xf32>
    %123 = arith.subf %119, %122 : vector<16x32xf32>
    %124 = math.exp %123 : vector<16x32xf32>
    %cst_61 = arith.constant dense<0.000000e+00> : vector<16xf32>
    %125 = vector.multi_reduction <add>, %124, %cst_61 [1] : vector<16x32xf32> to vector<16xf32>
    %126 = vector.shape_cast %125 : vector<16xf32> to vector<16x1xf32>
    %127 = tpu.reciprocal %126 {approx = true} : vector<16x1xf32> -> vector<16x1xf32>
    %128 = vector.broadcast %127 : vector<16x1xf32> to vector<16x32xf32>
    %129 = arith.mulf %124, %128 : vector<16x32xf32>
    %130 = arith.truncf %129 : vector<16x32xf32> to vector<16x32xbf16>
    %131 = vector.extract_strided_slice %55 {offsets = [0, 96], sizes = [32, 32], strides = [1, 1]} : vector<32x128xbf16> to vector<32x32xbf16>
    %cst_62 = arith.constant dense<0.000000e+00> : vector<16x32xf32>
    %132 = tpu.matmul %130, %131, %cst_62 {dimension_numbers = #tpu.dot_dimension_numbers<[1], [0], [0], [1], [0, 0, 1, 1], [], []>} : vector<16x32xbf16>, vector<32x32xbf16>, vector<16x32xf32> -> vector<16x32xf32>
    %133 = arith.truncf %132 : vector<16x32xf32> to vector<16x32xbf16>
    %134 = tpu.concatenate %76, %95, %114, %133 in 1 : vector<16x32xbf16>, vector<16x32xbf16>, vector<16x32xbf16>, vector<16x32xbf16> -> vector<16x128xbf16>
    %cst_63 = arith.constant dense<0.000000e+00> : vector<16x128xf32>
    %135 = tpu.matmul %134, %8, %cst_63 {dimension_numbers = #tpu.dot_dimension_numbers<[1], [0], [0], [1], [0, 0, 1, 1], [], []>} : vector<16x128xbf16>, vector<128x128xbf16>, vector<16x128xf32> -> vector<16x128xf32>
    %136 = vector.broadcast %9 : vector<1x128xf32> to vector<16x128xf32>
    %137 = arith.addf %135, %136 : vector<16x128xf32>
    %138 = arith.addf %24, %137 : vector<16x128xf32>
    %cst_64 = arith.constant dense<0.000000e+00> : vector<16xf32>
    %139 = vector.multi_reduction <add>, %138, %cst_64 [1] : vector<16x128xf32> to vector<16xf32>
    %140 = vector.shape_cast %139 : vector<16xf32> to vector<16x1xf32>
    %cst_65 = arith.constant 1.280000e+02 : f32
    %141 = vector.broadcast %cst_65 : f32 to vector<16x1xf32>
    %142 = arith.divf %140, %141 : vector<16x1xf32>
    %143 = vector.broadcast %142 : vector<16x1xf32> to vector<16x128xf32>
    %144 = arith.subf %138, %143 : vector<16x128xf32>
    %145 = arith.mulf %144, %144 : vector<16x128xf32>
    %cst_66 = arith.constant dense<0.000000e+00> : vector<16xf32>
    %146 = vector.multi_reduction <add>, %145, %cst_66 [1] : vector<16x128xf32> to vector<16xf32>
    %147 = vector.shape_cast %146 : vector<16xf32> to vector<16x1xf32>
    %cst_67 = arith.constant 1.280000e+02 : f32
    %148 = vector.broadcast %cst_67 : f32 to vector<16x1xf32>
    %149 = arith.divf %147, %148 : vector<16x1xf32>
    %150 = vector.broadcast %142 : vector<16x1xf32> to vector<16x128xf32>
    %151 = arith.subf %138, %150 : vector<16x128xf32>
    %cst_68 = arith.constant 9.99999974E-6 : f32
    %152 = vector.broadcast %cst_68 : f32 to vector<16x1xf32>
    %153 = arith.addf %149, %152 : vector<16x1xf32>
    %154 = math.rsqrt %153 : vector<16x1xf32>
    %155 = vector.broadcast %154 : vector<16x1xf32> to vector<16x128xf32>
    %156 = arith.mulf %151, %155 : vector<16x128xf32>
    %157 = vector.broadcast %10 : vector<1x128xf32> to vector<16x128xf32>
    %158 = arith.mulf %156, %157 : vector<16x128xf32>
    %159 = vector.broadcast %11 : vector<1x128xf32> to vector<16x128xf32>
    %160 = arith.addf %158, %159 : vector<16x128xf32>
    %161 = arith.truncf %160 : vector<16x128xf32> to vector<16x128xbf16>
    %cst_69 = arith.constant dense<0.000000e+00> : vector<16x512xf32>
    %162 = tpu.matmul %161, %12, %cst_69 {dimension_numbers = #tpu.dot_dimension_numbers<[1], [0], [0], [1], [0, 0, 1, 1], [], []>} : vector<16x128xbf16>, vector<128x512xbf16>, vector<16x512xf32> -> vector<16x512xf32>
    %163 = vector.broadcast %13 : vector<1x512xf32> to vector<16x512xf32>
    %164 = arith.addf %162, %163 : vector<16x512xf32>
    %cst_70 = arith.constant 0.000000e+00 : f32
    %165 = vector.broadcast %cst_70 : f32 to vector<16x512xf32>
    %166 = arith.maximumf %164, %165 : vector<16x512xf32>
    %167 = arith.truncf %166 : vector<16x512xf32> to vector<16x512xbf16>
    %cst_71 = arith.constant dense<0.000000e+00> : vector<16x128xf32>
    %168 = tpu.matmul %167, %14, %cst_71 {dimension_numbers = #tpu.dot_dimension_numbers<[1], [0], [0], [1], [0, 0, 1, 1], [], []>} : vector<16x512xbf16>, vector<512x128xbf16>, vector<16x128xf32> -> vector<16x128xf32>
    %169 = vector.broadcast %15 : vector<1x128xf32> to vector<16x128xf32>
    %170 = arith.addf %168, %169 : vector<16x128xf32>
    %171 = arith.addf %138, %170 : vector<16x128xf32>
    %172 = arith.truncf %171 : vector<16x128xf32> to vector<16x128xbf16>
    %c0_72 = arith.constant 0 : index
    %c0_73 = arith.constant 0 : index
    %c0_74 = arith.constant 0 : index
    %173 = vector.load %arg20[%c0_72, %c0_73, %c0_74] : memref<1x16x128xbf16, #tpu.memory_space<vmem>>, vector<1x16x128xbf16>
    %174 = vector.shape_cast %173 : vector<1x16x128xbf16> to vector<16x128xbf16>
    %175 = vector.shape_cast %172 : vector<16x128xbf16> to vector<1x16x128xbf16>
    tpu.vector_store %arg20[%c0_72, %c0_73, %c0_74], %175 {strides = array<i32>} : memref<1x16x128xbf16, #tpu.memory_space<vmem>>, vector<1x16x128xbf16>,
    return
  }
  func.func @transform_0(%arg0: i32, %arg1: i32) -> (i32, i32, i32) {
    %c0_i32 = arith.constant 0 : i32
    %c0_i32_0 = arith.constant 0 : i32
    %c0_i32_1 = arith.constant 0 : i32
    return %arg0, %c0_i32, %c0_i32_0 : i32, i32, i32
  }
  func.func @transform_1(%arg0: i32, %arg1: i32) -> (i32, i32, i32) {
    %c0_i32 = arith.constant 0 : i32
    %c0_i32_0 = arith.constant 0 : i32
    %c0_i32_1 = arith.constant 0 : i32
    return %arg0, %c0_i32, %c0_i32_0 : i32, i32, i32
  }
  func.func @transform_2(%arg0: i32, %arg1: i32) -> (i32, i32) {
    %c0_i32 = arith.constant 0 : i32
    %c0_i32_0 = arith.constant 0 : i32
    %c0_i32_1 = arith.constant 0 : i32
    return %c0_i32, %c0_i32_0 : i32, i32
  }
  func.func @transform_3(%arg0: i32, %arg1: i32) -> (i32, i32) {
    %c0_i32 = arith.constant 0 : i32
    %c0_i32_0 = arith.constant 0 : i32
    %c0_i32_1 = arith.constant 0 : i32
    return %c0_i32, %c0_i32_0 : i32, i32
  }
  func.func @transform_4(%arg0: i32, %arg1: i32) -> (i32, i32) {
    %c0_i32 = arith.constant 0 : i32
    %c0_i32_0 = arith.constant 0 : i32
    %c0_i32_1 = arith.constant 0 : i32
    return %c0_i32, %c0_i32_0 : i32, i32
  }
  func.func @transform_5(%arg0: i32, %arg1: i32) -> (i32, i32) {
    %c0_i32 = arith.constant 0 : i32
    %c0_i32_0 = arith.constant 0 : i32
    %c0_i32_1 = arith.constant 0 : i32
    return %c0_i32, %c0_i32_0 : i32, i32
  }
  func.func @transform_6(%arg0: i32, %arg1: i32) -> (i32, i32) {
    %c0_i32 = arith.constant 0 : i32
    %c0_i32_0 = arith.constant 0 : i32
    %c0_i32_1 = arith.constant 0 : i32
    return %c0_i32, %c0_i32_0 : i32, i32
  }
  func.func @transform_7(%arg0: i32, %arg1: i32) -> (i32, i32) {
    %c0_i32 = arith.constant 0 : i32
    %c0_i32_0 = arith.constant 0 : i32
    %c0_i32_1 = arith.constant 0 : i32
    return %c0_i32, %c0_i32_0 : i32, i32
  }
  func.func @transform_8(%arg0: i32, %arg1: i32) -> (i32, i32) {
    %c0_i32 = arith.constant 0 : i32
    %c0_i32_0 = arith.constant 0 : i32
    %c0_i32_1 = arith.constant 0 : i32
    return %c0_i32, %c0_i32_0 : i32, i32
  }
  func.func @transform_9(%arg0: i32, %arg1: i32) -> (i32, i32) {
    %c0_i32 = arith.constant 0 : i32
    %c0_i32_0 = arith.constant 0 : i32
    %c0_i32_1 = arith.constant 0 : i32
    return %c0_i32, %c0_i32_0 : i32, i32
  }
  func.func @transform_10(%arg0: i32, %arg1: i32) -> (i32, i32) {
    %c0_i32 = arith.constant 0 : i32
    %c0_i32_0 = arith.constant 0 : i32
    %c0_i32_1 = arith.constant 0 : i32
    return %c0_i32, %c0_i32_0 : i32, i32
  }
  func.func @transform_11(%arg0: i32, %arg1: i32) -> (i32, i32) {
    %c0_i32 = arith.constant 0 : i32
    %c0_i32_0 = arith.constant 0 : i32
    %c0_i32_1 = arith.constant 0 : i32
    return %c0_i32, %c0_i32_0 : i32, i32
  }
  func.func @transform_12(%arg0: i32, %arg1: i32) -> (i32, i32) {
    %c0_i32 = arith.constant 0 : i32
    %c0_i32_0 = arith.constant 0 : i32
    %c0_i32_1 = arith.constant 0 : i32
    return %c0_i32, %c0_i32_0 : i32, i32
  }
  func.func @transform_13(%arg0: i32, %arg1: i32) -> (i32, i32) {
    %c0_i32 = arith.constant 0 : i32
    %c0_i32_0 = arith.constant 0 : i32
    %c0_i32_1 = arith.constant 0 : i32
    return %c0_i32, %c0_i32_0 : i32, i32
  }
  func.func @transform_14(%arg0: i32, %arg1: i32) -> (i32, i32) {
    %c0_i32 = arith.constant 0 : i32
    %c0_i32_0 = arith.constant 0 : i32
    %c0_i32_1 = arith.constant 0 : i32
    return %c0_i32, %c0_i32_0 : i32, i32
  }
  func.func @transform_15(%arg0: i32, %arg1: i32) -> (i32, i32) {
    %c0_i32 = arith.constant 0 : i32
    %c0_i32_0 = arith.constant 0 : i32
    %c0_i32_1 = arith.constant 0 : i32
    return %c0_i32, %c0_i32_0 : i32, i32
  }
  func.func @transform_16(%arg0: i32, %arg1: i32) -> (i32, i32) {
    %c0_i32 = arith.constant 0 : i32
    %c0_i32_0 = arith.constant 0 : i32
    %c0_i32_1 = arith.constant 0 : i32
    return %c0_i32, %c0_i32_0 : i32, i32
  }
  func.func @transform_17(%arg0: i32, %arg1: i32) -> (i32, i32) {
    %c0_i32 = arith.constant 0 : i32
    %c0_i32_0 = arith.constant 0 : i32
    %c0_i32_1 = arith.constant 0 : i32
    return %c0_i32, %c0_i32_0 : i32, i32
  }
  func.func @transform_18(%arg0: i32, %arg1: i32) -> (i32, i32, i32) {
    %c0_i32 = arith.constant 0 : i32
    %c0_i32_0 = arith.constant 0 : i32
    return %arg0, %arg1, %c0_i32 : i32, i32, i32
  }
}

</mosaic_0001>

<llo_original>
// kernel: tpu_custom_call.1
$region0: #{tpu_custom_call.1}
  #allocation0 [shape = 'u32[]', space=smem, size = 0x4, offset = 0x4, fixed_abs, tag = 'smem constant byte address 0x4 - core index']
  #allocation1 [shape = 'u32[144,128]{1,0:T(1,128)}', space=vmem, size = 0x12000, scoped, tag = 'internal scratch']
  #allocation2 [shape = 'bf16[32,128]{1,0:T(8,128)(2,1)}', space=vmem, size = 0x2000, scoped, tag = 'scratch operand']
  #allocation3 [shape = 'bf16[32,128]{1,0:T(8,128)(2,1)}', space=vmem, size = 0x2000, scoped, tag = 'scratch operand']
  %s0 = inlined_call_operand.hbm [shape: bf16[2,32,128], index: 0, kind: input, shape index: {}]
  %s1 = inlined_call_operand.hbm [shape: f32[2,1,32], index: 1, kind: input, shape index: {}]
  %s2 = inlined_call_operand.vmem [shape: f32[1,128], index: 2, kind: input, shape index: {}]
  %s3 = inlined_call_operand.vmem [shape: f32[1,128], index: 3, kind: input, shape index: {}]
  %s4 = inlined_call_operand.hbm [shape: bf16[128,128], index: 4, kind: input, shape index: {}]
  %s5 = inlined_call_operand.vmem [shape: f32[1,128], index: 5, kind: input, shape index: {}]
  %s6 = inlined_call_operand.hbm [shape: bf16[128,128], index: 6, kind: input, shape index: {}]
  %s7 = inlined_call_operand.vmem [shape: f32[1,128], index: 7, kind: input, shape index: {}]
  %s8 = inlined_call_operand.hbm [shape: bf16[128,128], index: 8, kind: input, shape index: {}]
  %s9 = inlined_call_operand.vmem [shape: f32[1,128], index: 9, kind: input, shape index: {}]
  %s10 = inlined_call_operand.hbm [shape: bf16[128,128], index: 10, kind: input, shape index: {}]
  %s11 = inlined_call_operand.vmem [shape: f32[1,128], index: 11, kind: input, shape index: {}]
  %s12 = inlined_call_operand.vmem [shape: f32[1,128], index: 12, kind: input, shape index: {}]
  %s13 = inlined_call_operand.vmem [shape: f32[1,128], index: 13, kind: input, shape index: {}]
  %s14 = inlined_call_operand.hbm [shape: bf16[128,512], index: 14, kind: input, shape index: {}]
  %s15 = inlined_call_operand.vmem [shape: f32[1,512], index: 15, kind: input, shape index: {}]
  %s16 = inlined_call_operand.hbm [shape: bf16[512,128], index: 16, kind: input, shape index: {}]
  %s17 = inlined_call_operand.vmem [shape: f32[1,128], index: 17, kind: input, shape index: {}]
  %s18 = inlined_call_operand.hbm [shape: bf16[2,32,128], index: 18, kind: output, shape index: {}]
  %s19 = sld [smem:[#allocation0]]
  $region141: #{tpu_custom_call.1} parent=0
    _
  %s21 = ssub.s32 1, %s19
  %s22 = scalar_select 0, %s21, %s19
  $region1: #{tpu_custom_call.1} parent=0
    #allocation4 [shape = 'u8[16384]{0}', space=vmem, size = 0x4000, scoped, tag = 'input window, operand 0']
    #allocation5 [shape = 's32[2]{0}', space=sflag, size = 0x8, scoped, tag = 'scoped memory for tpu_custom_call.1']
    #allocation6 [shape = 's32[2]{0}', space=sflag, size = 0x8, scoped, tag = 'scoped memory for tpu_custom_call.1']
    #allocation7 [shape = 'u8[1024]{0}', space=vmem, size = 0x400, scoped, tag = 'input window, operand 1']
    #allocation8 [shape = 's32[2]{0}', space=sflag, size = 0x8, scoped, tag = 'scoped memory for tpu_custom_call.1']
    #allocation9 [shape = 'u8[32768]{0}', space=vmem, size = 0x8000, scoped, tag = 'input window, operand 4, single buffered']
    #allocation10 [shape = 'u8[32768]{0}', space=vmem, size = 0x8000, scoped, tag = 'input window, operand 6, single buffered']
    #allocation11 [shape = 's32[1]{0}', space=sflag, size = 0x4, scoped, tag = 'scoped memory for tpu_custom_call.1']
    #allocation12 [shape = 'u8[32768]{0}', space=vmem, size = 0x8000, scoped, tag = 'input window, operand 8, single buffered']
    #allocation13 [shape = 'u8[32768]{0}', space=vmem, size = 0x8000, scoped, tag = 'input window, operand 10, single buffered']
    #allocation14 [shape = 's32[1]{0}', space=sflag, size = 0x4, scoped, tag = 'scoped memory for tpu_custom_call.1']
    #allocation15 [shape = 'u8[131072]{0}', space=vmem, size = 0x20000, scoped, tag = 'input window, operand 14, single buffered']
    #allocation16 [shape = 'u8[131072]{0}', space=vmem, size = 0x20000, scoped, tag = 'input window, operand 16, single buffered']
    #allocation17 [shape = 's32[1]{0}', space=sflag, size = 0x4, scoped, tag = 'scoped memory for tpu_custom_call.1']
    #allocation18 [shape = 'u8[8192]{0}', space=vmem, size = 0x2000, scoped, tag = 'output window, operand 0']
    %23 = vsyncpa [#allocation5], 0
    %s24 = scalar_lea.sflag [#allocation5], 1
    %25 = vsyncpa %s24, 0
    %26 = vsyncpa [#allocation8], 0
    %s27 = scalar_lea.sflag [#allocation8], 1
    %28 = vsyncpa %s27, 0
    %29 = vsyncpa [#allocation11], 0
    %30 = vsyncpa [#allocation14], 0
    %31 = vsyncpa [#allocation17], 0
    %32 = vsyncpa [#allocation6], 0
    %s33 = scalar_lea.sflag [#allocation6], 1
    %34 = vsyncpa %s33, 0
    loop: start=0, step=1, limit=6
    $region2: #{tpu_custom_call.1} parent=1 // loop_pre_header
      _
    $region3: #{tpu_custom_call.1} parent=1 // loop_header
      %s36 = sphi 0, %s40
      %p37 = scmp.ge.s32.totalorder %s36, 6
      %s43 = sphi 0, %s55
      %s44 = sphi 0, %s51
      %s45 = sphi 0, %s43
      %s46 = sphi 0, %s44
      %s47 = sphi 0, %s45
      %s48 = sphi 0, %s46
      %s58 = sphi 0, %s60
      %s61 = sphi 0, %s58
      %s62 = sphi 0, %s61
      %s78 = sphi 0, %s62
      %s84 = sphi 0, %s86
      %s87 = sphi 0, %s84
      %s88 = sphi 0, %s87
      %s104 = sphi 0, %s88
      %s108 = sphi 0, %s108
      %s110 = sphi 0, %s108
      %s111 = sphi 0, %s110
      %s125 = sphi 0, %s111
      %s129 = sphi 0, %s129
      %s131 = sphi 0, %s129
      %s132 = sphi 0, %s131
      %s146 = sphi 0, %s132
      %s150 = sphi 0, %s150
      %s152 = sphi 0, %s150
      %s153 = sphi 0, %s152
      %s167 = sphi 0, %s153
      %s171 = sphi 0, %s171
      %s173 = sphi 0, %s171
      %s174 = sphi 0, %s173
      %s188 = sphi 0, %s174
      %s192 = sphi 0, %s192
      %s194 = sphi 0, %s192
      %s195 = sphi 0, %s194
      %s209 = sphi 0, %s195
      %s213 = sphi 0, %s213
      %s215 = sphi 0, %s213
      %s216 = sphi 0, %s215
      %s230 = sphi 0, %s216
      %s234 = sphi 0, %s234
      %s236 = sphi 0, %s234
      %s237 = sphi 0, %s236
      %s251 = sphi 0, %s237
      %s255 = sphi 0, %s255
      %s257 = sphi 0, %s255
      %s258 = sphi 0, %s257
      %s272 = sphi 0, %s258
      %s276 = sphi 0, %s276
      %s278 = sphi 0, %s276
      %s279 = sphi 0, %s278
      %s293 = sphi 0, %s279
      %s297 = sphi 0, %s297
      %s299 = sphi 0, %s297
      %s300 = sphi 0, %s299
      %s314 = sphi 0, %s300
      %s318 = sphi 0, %s318
      %s320 = sphi 0, %s318
      %s321 = sphi 0, %s320
      %s335 = sphi 0, %s321
      %s339 = sphi 0, %s339
      %s341 = sphi 0, %s339
      %s342 = sphi 0, %s341
      %s356 = sphi 0, %s342
      %s360 = sphi 0, %s360
      %s362 = sphi 0, %s360
      %s363 = sphi 0, %s362
      %s377 = sphi 0, %s363
      %s381 = sphi 0, %s381
      %s383 = sphi 0, %s381
      %s384 = sphi 0, %s383
      %s398 = sphi 0, %s384
      %s402 = sphi 0, %s402
      %s404 = sphi 0, %s402
      %s405 = sphi 0, %s404
      %s419 = sphi 0, %s405
      %s423 = sphi 0, %s423
      %s425 = sphi 0, %s423
      %s426 = sphi 0, %s425
      %s440 = sphi 0, %s426
      %s448 = sphi 0, %s450
      %s451 = sphi 0, %s448
      %s452 = sphi 0, %s451
      %s468 = sphi 0, %s452
    $region4: #{tpu_custom_call.1} parent=1 // loop_header_branch
      %39 = sbr.rel (%p37) target = $region8
    $region5: #{tpu_custom_call.1} parent=1 // loop_body
      %s41 = ssub.s32 %s36, 1
      %s42 = ssub.s32 %s36, 2
      %s49 = sadd.s32 1, %s44
      %p50 = scmp.ge.s32.totalorder %s49, 2
      %s51 = scalar_select %p50, 0, %s49
      %s52 = sadd.s32 1, %s43
      %s53 = scalar_select %p50, %s52, %s43
      %p54 = scmp.ge.s32.totalorder %s53, 2
      %s55 = scalar_select %p54, 0, %s53
      %s56 = ssub.s32 %s43, %s55
      %p57 = scmp.eq.s32.totalorder %s56, 0
      %s59 = sadd.s32 %s58, 1
      %s60 = scalar_select %p57, %s58, %s59
      %p63 = pneg %p57
      %p64 = scmp.eq.s32.totalorder %s36, 3
      %p65 = por %p63, %p64
      %p66 = scmp.ne.s32.totalorder %s58, %s61
      %p67 = scmp.eq.s32.totalorder %s36, 0
      %p68 = por %p66, %p67
      %p69 = scmp.ne.s32.totalorder %s58, %s61
      %p70 = scmp.eq.s32.totalorder %s41, 3
      %p71 = por %p69, %p70
      %p72 = scmp.ne.s32.totalorder %s61, %s62
      %p73 = scmp.eq.s32.totalorder %s41, 0
      %p74 = por %p72, %p73
      %p75 = scmp.ne.s32.totalorder %s61, %s62
      %p76 = scmp.eq.s32.totalorder %s42, 3
      %p77 = por %p75, %p76
      %p79 = scmp.ne.s32.totalorder %s62, %s78
      %p80 = scmp.eq.s32.totalorder %s42, 0
      %p81 = por %p79, %p80
      %s82 = ssub.s32 %s43, %s55
      %p83 = scmp.eq.s32.totalorder %s82, 0
      %s85 = sadd.s32 %s84, 1
      %s86 = scalar_select %p83, %s84, %s85
      %p89 = pneg %p83
      %p90 = scmp.eq.s32.totalorder %s36, 3
      %p91 = por %p89, %p90
      %p92 = scmp.ne.s32.totalorder %s84, %s87
      %p93 = scmp.eq.s32.totalorder %s36, 0
      %p94 = por %p92, %p93
      %p95 = scmp.ne.s32.totalorder %s84, %s87
      %p96 = scmp.eq.s32.totalorder %s41, 3
      %p97 = por %p95, %p96
      %p98 = scmp.ne.s32.totalorder %s87, %s88
      %p99 = scmp.eq.s32.totalorder %s41, 0
      %p100 = por %p98, %p99
      %p101 = scmp.ne.s32.totalorder %s87, %s88
      %p102 = scmp.eq.s32.totalorder %s42, 3
      %p103 = por %p101, %p102
      %p105 = scmp.ne.s32.totalorder %s88, %s104
      %p106 = scmp.eq.s32.totalorder %s42, 0
      %p107 = por %p105, %p106
      %s109 = sadd.s32 %s108, 1
      %p112 = scmp.eq.s32.totalorder %s36, 3
      %p113 = scmp.ne.s32.totalorder %s108, %s110
      %p114 = scmp.eq.s32.totalorder %s36, 0
      %p115 = por %p113, %p114
      %p116 = scmp.ne.s32.totalorder %s108, %s110
      %p117 = scmp.eq.s32.totalorder %s41, 3
      %p118 = por %p116, %p117
      %p119 = scmp.ne.s32.totalorder %s110, %s111
      %p120 = scmp.eq.s32.totalorder %s41, 0
      %p121 = por %p119, %p120
      %p122 = scmp.ne.s32.totalorder %s110, %s111
      %p123 = scmp.eq.s32.totalorder %s42, 3
      %p124 = por %p122, %p123
      %p126 = scmp.ne.s32.totalorder %s111, %s125
      %p127 = scmp.eq.s32.totalorder %s42, 0
      %p128 = por %p126, %p127
      %s130 = sadd.s32 %s129, 1
      %p133 = scmp.eq.s32.totalorder %s36, 3
      %p134 = scmp.ne.s32.totalorder %s129, %s131
      %p135 = scmp.eq.s32.totalorder %s36, 0
      %p136 = por %p134, %p135
      %p137 = scmp.ne.s32.totalorder %s129, %s131
      %p138 = scmp.eq.s32.totalorder %s41, 3
      %p139 = por %p137, %p138
      %p140 = scmp.ne.s32.totalorder %s131, %s132
      %p141 = scmp.eq.s32.totalorder %s41, 0
      %p142 = por %p140, %p141
      %p143 = scmp.ne.s32.totalorder %s131, %s132
      %p144 = scmp.eq.s32.totalorder %s42, 3
      %p145 = por %p143, %p144
      %p147 = scmp.ne.s32.totalorder %s132, %s146
      %p148 = scmp.eq.s32.totalorder %s42, 0
      %p149 = por %p147, %p148
      %s151 = sadd.s32 %s150, 1
      %p154 = scmp.eq.s32.totalorder %s36, 3
      %p155 = scmp.ne.s32.totalorder %s150, %s152
      %p156 = scmp.eq.s32.totalorder %s36, 0
      %p157 = por %p155, %p156
      %p158 = scmp.ne.s32.totalorder %s150, %s152
      %p159 = scmp.eq.s32.totalorder %s41, 3
      %p160 = por %p158, %p159
      %p161 = scmp.ne.s32.totalorder %s152, %s153
      %p162 = scmp.eq.s32.totalorder %s41, 0
      %p163 = por %p161, %p162
      %p164 = scmp.ne.s32.totalorder %s152, %s153
      %p165 = scmp.eq.s32.totalorder %s42, 3
      %p166 = por %p164, %p165
      %p168 = scmp.ne.s32.totalorder %s153, %s167
      %p169 = scmp.eq.s32.totalorder %s42, 0
      %p170 = por %p168, %p169
      %s172 = sadd.s32 %s171, 1
      %p175 = scmp.eq.s32.totalorder %s36, 3
      %p176 = scmp.ne.s32.totalorder %s171, %s173
      %p177 = scmp.eq.s32.totalorder %s36, 0
      %p178 = por %p176, %p177
      %p179 = scmp.ne.s32.totalorder %s171, %s173
      %p180 = scmp.eq.s32.totalorder %s41, 3
      %p181 = por %p179, %p180
      %p182 = scmp.ne.s32.totalorder %s173, %s174
      %p183 = scmp.eq.s32.totalorder %s41, 0
      %p184 = por %p182, %p183
      %p185 = scmp.ne.s32.totalorder %s173, %s174
      %p186 = scmp.eq.s32.totalorder %s42, 3
      %p187 = por %p185, %p186
      %p189 = scmp.ne.s32.totalorder %s174, %s188
      %p190 = scmp.eq.s32.totalorder %s42, 0
      %p191 = por %p189, %p190
      %s193 = sadd.s32 %s192, 1
      %p196 = scmp.eq.s32.totalorder %s36, 3
      %p197 = scmp.ne.s32.totalorder %s192, %s194
      %p198 = scmp.eq.s32.totalorder %s36, 0
      %p199 = por %p197, %p198
      %p200 = scmp.ne.s32.totalorder %s192, %s194
      %p201 = scmp.eq.s32.totalorder %s41, 3
      %p202 = por %p200, %p201
      %p203 = scmp.ne.s32.totalorder %s194, %s195
      %p204 = scmp.eq.s32.totalorder %s41, 0
      %p205 = por %p203, %p204
      %p206 = scmp.ne.s32.totalorder %s194, %s195
      %p207 = scmp.eq.s32.totalorder %s42, 3
      %p208 = por %p206, %p207
      %p210 = scmp.ne.s32.totalorder %s195, %s209
      %p211 = scmp.eq.s32.totalorder %s42, 0
      %p212 = por %p210, %p211
      %s214 = sadd.s32 %s213, 1
      %p217 = scmp.eq.s32.totalorder %s36, 3
      %p218 = scmp.ne.s32.totalorder %s213, %s215
      %p219 = scmp.eq.s32.totalorder %s36, 0
      %p220 = por %p218, %p219
      %p221 = scmp.ne.s32.totalorder %s213, %s215
      %p222 = scmp.eq.s32.totalorder %s41, 3
      %p223 = por %p221, %p222
      %p224 = scmp.ne.s32.totalorder %s215, %s216
      %p225 = scmp.eq.s32.totalorder %s41, 0
      %p226 = por %p224, %p225
      %p227 = scmp.ne.s32.totalorder %s215, %s216
      %p228 = scmp.eq.s32.totalorder %s42, 3
      %p229 = por %p227, %p228
      %p231 = scmp.ne.s32.totalorder %s216, %s230
      %p232 = scmp.eq.s32.totalorder %s42, 0
      %p233 = por %p231, %p232
      %s235 = sadd.s32 %s234, 1
      %p238 = scmp.eq.s32.totalorder %s36, 3
      %p239 = scmp.ne.s32.totalorder %s234, %s236
      %p240 = scmp.eq.s32.totalorder %s36, 0
      %p241 = por %p239, %p240
      %p242 = scmp.ne.s32.totalorder %s234, %s236
      %p243 = scmp.eq.s32.totalorder %s41, 3
      %p244 = por %p242, %p243
      %p245 = scmp.ne.s32.totalorder %s236, %s237
      %p246 = scmp.eq.s32.totalorder %s41, 0
      %p247 = por %p245, %p246
      %p248 = scmp.ne.s32.totalorder %s236, %s237
      %p249 = scmp.eq.s32.totalorder %s42, 3
      %p250 = por %p248, %p249
      %p252 = scmp.ne.s32.totalorder %s237, %s251
      %p253 = scmp.eq.s32.totalorder %s42, 0
      %p254 = por %p252, %p253
      %s256 = sadd.s32 %s255, 1
      %p259 = scmp.eq.s32.totalorder %s36, 3
      %p260 = scmp.ne.s32.totalorder %s255, %s257
      %p261 = scmp.eq.s32.totalorder %s36, 0
      %p262 = por %p260, %p261
      %p263 = scmp.ne.s32.totalorder %s255, %s257
      %p264 = scmp.eq.s32.totalorder %s41, 3
      %p265 = por %p263, %p264
      %p266 = scmp.ne.s32.totalorder %s257, %s258
      %p267 = scmp.eq.s32.totalorder %s41, 0
      %p268 = por %p266, %p267
      %p269 = scmp.ne.s32.totalorder %s257, %s258
      %p270 = scmp.eq.s32.totalorder %s42, 3
      %p271 = por %p269, %p270
      %p273 = scmp.ne.s32.totalorder %s258, %s272
      %p274 = scmp.eq.s32.totalorder %s42, 0
      %p275 = por %p273, %p274
      %s277 = sadd.s32 %s276, 1
      %p280 = scmp.eq.s32.totalorder %s36, 3
      %p281 = scmp.ne.s32.totalorder %s276, %s278
      %p282 = scmp.eq.s32.totalorder %s36, 0
      %p283 = por %p281, %p282
      %p284 = scmp.ne.s32.totalorder %s276, %s278
      %p285 = scmp.eq.s32.totalorder %s41, 3
      %p286 = por %p284, %p285
      %p287 = scmp.ne.s32.totalorder %s278, %s279
      %p288 = scmp.eq.s32.totalorder %s41, 0
      %p289 = por %p287, %p288
      %p290 = scmp.ne.s32.totalorder %s278, %s279
      %p291 = scmp.eq.s32.totalorder %s42, 3
      %p292 = por %p290, %p291
      %p294 = scmp.ne.s32.totalorder %s279, %s293
      %p295 = scmp.eq.s32.totalorder %s42, 0
      %p296 = por %p294, %p295
      %s298 = sadd.s32 %s297, 1
      %p301 = scmp.eq.s32.totalorder %s36, 3
      %p302 = scmp.ne.s32.totalorder %s297, %s299
      %p303 = scmp.eq.s32.totalorder %s36, 0
      %p304 = por %p302, %p303
      %p305 = scmp.ne.s32.totalorder %s297, %s299
      %p306 = scmp.eq.s32.totalorder %s41, 3
      %p307 = por %p305, %p306
      %p308 = scmp.ne.s32.totalorder %s299, %s300
      %p309 = scmp.eq.s32.totalorder %s41, 0
      %p310 = por %p308, %p309
      %p311 = scmp.ne.s32.totalorder %s299, %s300
      %p312 = scmp.eq.s32.totalorder %s42, 3
      %p313 = por %p311, %p312
      %p315 = scmp.ne.s32.totalorder %s300, %s314
      %p316 = scmp.eq.s32.totalorder %s42, 0
      %p317 = por %p315, %p316
      %s319 = sadd.s32 %s318, 1
      %p322 = scmp.eq.s32.totalorder %s36, 3
      %p323 = scmp.ne.s32.totalorder %s318, %s320
      %p324 = scmp.eq.s32.totalorder %s36, 0
      %p325 = por %p323, %p324
      %p326 = scmp.ne.s32.totalorder %s318, %s320
      %p327 = scmp.eq.s32.totalorder %s41, 3
      %p328 = por %p326, %p327
      %p329 = scmp.ne.s32.totalorder %s320, %s321
      %p330 = scmp.eq.s32.totalorder %s41, 0
      %p331 = por %p329, %p330
      %p332 = scmp.ne.s32.totalorder %s320, %s321
      %p333 = scmp.eq.s32.totalorder %s42, 3
      %p334 = por %p332, %p333
      %p336 = scmp.ne.s32.totalorder %s321, %s335
      %p337 = scmp.eq.s32.totalorder %s42, 0
      %p338 = por %p336, %p337
      %s340 = sadd.s32 %s339, 1
      %p343 = scmp.eq.s32.totalorder %s36, 3
      %p344 = scmp.ne.s32.totalorder %s339, %s341
      %p345 = scmp.eq.s32.totalorder %s36, 0
      %p346 = por %p344, %p345
      %p347 = scmp.ne.s32.totalorder %s339, %s341
      %p348 = scmp.eq.s32.totalorder %s41, 3
      %p349 = por %p347, %p348
      %p350 = scmp.ne.s32.totalorder %s341, %s342
      %p351 = scmp.eq.s32.totalorder %s41, 0
      %p352 = por %p350, %p351
      %p353 = scmp.ne.s32.totalorder %s341, %s342
      %p354 = scmp.eq.s32.totalorder %s42, 3
      %p355 = por %p353, %p354
      %p357 = scmp.ne.s32.totalorder %s342, %s356
      %p358 = scmp.eq.s32.totalorder %s42, 0
      %p359 = por %p357, %p358
      %s361 = sadd.s32 %s360, 1
      %p364 = scmp.eq.s32.totalorder %s36, 3
      %p365 = scmp.ne.s32.totalorder %s360, %s362
      %p366 = scmp.eq.s32.totalorder %s36, 0
      %p367 = por %p365, %p366
      %p368 = scmp.ne.s32.totalorder %s360, %s362
      %p369 = scmp.eq.s32.totalorder %s41, 3
      %p370 = por %p368, %p369
      %p371 = scmp.ne.s32.totalorder %s362, %s363
      %p372 = scmp.eq.s32.totalorder %s41, 0
      %p373 = por %p371, %p372
      %p374 = scmp.ne.s32.totalorder %s362, %s363
      %p375 = scmp.eq.s32.totalorder %s42, 3
      %p376 = por %p374, %p375
      %p378 = scmp.ne.s32.totalorder %s363, %s377
      %p379 = scmp.eq.s32.totalorder %s42, 0
      %p380 = por %p378, %p379
      %s382 = sadd.s32 %s381, 1
      %p385 = scmp.eq.s32.totalorder %s36, 3
      %p386 = scmp.ne.s32.totalorder %s381, %s383
      %p387 = scmp.eq.s32.totalorder %s36, 0
      %p388 = por %p386, %p387
      %p389 = scmp.ne.s32.totalorder %s381, %s383
      %p390 = scmp.eq.s32.totalorder %s41, 3
      %p391 = por %p389, %p390
      %p392 = scmp.ne.s32.totalorder %s383, %s384
      %p393 = scmp.eq.s32.totalorder %s41, 0
      %p394 = por %p392, %p393
      %p395 = scmp.ne.s32.totalorder %s383, %s384
      %p396 = scmp.eq.s32.totalorder %s42, 3
      %p397 = por %p395, %p396
      %p399 = scmp.ne.s32.totalorder %s384, %s398
      %p400 = scmp.eq.s32.totalorder %s42, 0
      %p401 = por %p399, %p400
      %s403 = sadd.s32 %s402, 1
      %p406 = scmp.eq.s32.totalorder %s36, 3
      %p407 = scmp.ne.s32.totalorder %s402, %s404
      %p408 = scmp.eq.s32.totalorder %s36, 0
      %p409 = por %p407, %p408
      %p410 = scmp.ne.s32.totalorder %s402, %s404
      %p411 = scmp.eq.s32.totalorder %s41, 3
      %p412 = por %p410, %p411
      %p413 = scmp.ne.s32.totalorder %s404, %s405
      %p414 = scmp.eq.s32.totalorder %s41, 0
      %p415 = por %p413, %p414
      %p416 = scmp.ne.s32.totalorder %s404, %s405
      %p417 = scmp.eq.s32.totalorder %s42, 3
      %p418 = por %p416, %p417
      %p420 = scmp.ne.s32.totalorder %s405, %s419
      %p421 = scmp.eq.s32.totalorder %s42, 0
      %p422 = por %p420, %p421
      %s424 = sadd.s32 %s423, 1
      %p427 = scmp.eq.s32.totalorder %s36, 3
      %p428 = scmp.ne.s32.totalorder %s423, %s425
      %p429 = scmp.eq.s32.totalorder %s36, 0
      %p430 = por %p428, %p429
      %p431 = scmp.ne.s32.totalorder %s423, %s425
      %p432 = scmp.eq.s32.totalorder %s41, 3
      %p433 = por %p431, %p432
      %p434 = scmp.ne.s32.totalorder %s425, %s426
      %p435 = scmp.eq.s32.totalorder %s41, 0
      %p436 = por %p434, %p435
      %p437 = scmp.ne.s32.totalorder %s425, %s426
      %p438 = scmp.eq.s32.totalorder %s42, 3
      %p439 = por %p437, %p438
      %p441 = scmp.ne.s32.totalorder %s426, %s440
      %p442 = scmp.eq.s32.totalorder %s42, 0
      %p443 = por %p441, %p442
      %s444 = ssub.s32 %s43, %s55
      %s445 = ssub.s32 %s44, %s51
      %s446 = sor.u32 %s444, %s445
      %p447 = scmp.eq.s32.totalorder %s446, 0
      %s449 = sadd.s32 %s448, 1
      %s450 = scalar_select %p447, %s448, %s449
      %p453 = pneg %p447
      %p454 = scmp.eq.s32.totalorder %s36, 3
      %p455 = por %p453, %p454
      %p456 = scmp.ne.s32.totalorder %s448, %s451
      %p457 = scmp.eq.s32.totalorder %s36, 0
      %p458 = por %p456, %p457
      %p459 = scmp.ne.s32.totalorder %s448, %s451
      %p460 = scmp.eq.s32.totalorder %s41, 3
      %p461 = por %p459, %p460
      %p462 = scmp.ne.s32.totalorder %s451, %s452
      %p463 = scmp.eq.s32.totalorder %s41, 0
      %p464 = por %p462, %p463
      %p465 = scmp.ne.s32.totalorder %s451, %s452
      %p466 = scmp.eq.s32.totalorder %s42, 3
      %p467 = por %p465, %p466
      %p469 = scmp.ne.s32.totalorder %s452, %s468
      %p470 = scmp.eq.s32.totalorder %s42, 0
      %p471 = por %p469, %p470
      %p472 = scmp.le.s32.totalorder 1, %s36
      %p473 = scmp.lt.s32.totalorder %s36, 5
      %p474 = pnand %p472, %p473
      %p475 = pneg %p474
      // Predicated region
      $region9: #{tpu_custom_call.1} parent=5 // pred_check
        _
      $region10: #{tpu_custom_call.1} parent=5 // pred_check_branch
        %477 = sbr.rel (%p474) target = $region12
      $region11: #{tpu_custom_call.1} parent=5 // pred_region
        %s478 = ssub.s32 %s36, 1
        // Predicated region
        $region13: #{tpu_custom_call.1} parent=11 // pred_check
          %p479 = pneg %p121
        $region14: #{tpu_custom_call.1} parent=11 // pred_check_branch
          %481 = sbr.rel (%p479) target = $region16
        $region15: #{tpu_custom_call.1} parent=11 // pred_region
          _
        $region16: #{tpu_custom_call.1} parent=11 // pred_fallthru
          _
        // Predicated region
        $region17: #{tpu_custom_call.1} parent=11 // pred_check
          %p482 = pneg %p142
        $region18: #{tpu_custom_call.1} parent=11 // pred_check_branch
          %484 = sbr.rel (%p482) target = $region20
        $region19: #{tpu_custom_call.1} parent=11 // pred_region
          _
        $region20: #{tpu_custom_call.1} parent=11 // pred_fallthru
          _
        // Predicated region
        $region21: #{tpu_custom_call.1} parent=11 // pred_check
          %p485 = pneg %p163
        $region22: #{tpu_custom_call.1} parent=11 // pred_check_branch
          %487 = sbr.rel (%p485) target = $region24
        $region23: #{tpu_custom_call.1} parent=11 // pred_region
          %s489 = ssub.s32 1024, 1024
          %490 = vsyncadd [#allocation8], %s489
          %s491 = sshll.u32 [#allocation9], 4
          %s492 = int_to_ptr.vmem [resolvable:$true] %s491
          %497 = dma.hbm_to_vmem [thread:$0]  %s4, 1024, %s492, [#allocation8], 64, 64, 4
        $region24: #{tpu_custom_call.1} parent=11 // pred_fallthru
          _
        // Predicated region
        $region25: #{tpu_custom_call.1} parent=11 // pred_check
          %p498 = pneg %p184
        $region26: #{tpu_custom_call.1} parent=11 // pred_check_branch
          %500 = sbr.rel (%p498) target = $region28
        $region27: #{tpu_custom_call.1} parent=11 // pred_region
          _
        $region28: #{tpu_custom_call.1} parent=11 // pred_fallthru
          _
        // Predicated region
        $region29: #{tpu_custom_call.1} parent=11 // pred_check
          %p501 = pneg %p205
        $region30: #{tpu_custom_call.1} parent=11 // pred_check_branch
          %503 = sbr.rel (%p501) target = $region32
        $region31: #{tpu_custom_call.1} parent=11 // pred_region
          %s505 = ssub.s32 1024, 1024
          %506 = vsyncadd [#allocation11], %s505
          %s507 = sshll.u32 [#allocation10], 4
          %s508 = int_to_ptr.vmem [resolvable:$true] %s507
          %513 = dma.hbm_to_vmem [thread:$0]  %s6, 1024, %s508, [#allocation11], 64, 64, 4
        $region32: #{tpu_custom_call.1} parent=11 // pred_fallthru
          _
        // Predicated region
        $region33: #{tpu_custom_call.1} parent=11 // pred_check
          %p514 = pneg %p226
        $region34: #{tpu_custom_call.1} parent=11 // pred_check_branch
          %516 = sbr.rel (%p514) target = $region36
        $region35: #{tpu_custom_call.1} parent=11 // pred_region
          _
        $region36: #{tpu_custom_call.1} parent=11 // pred_fallthru
          _
        // Predicated region
        $region37: #{tpu_custom_call.1} parent=11 // pred_check
          %p517 = pneg %p247
        $region38: #{tpu_custom_call.1} parent=11 // pred_check_branch
          %519 = sbr.rel (%p517) target = $region40
        $region39: #{tpu_custom_call.1} parent=11 // pred_region
          %s521 = ssub.s32 1024, 1024
          %522 = vsyncadd [#allocation11], %s521
          %s523 = sshll.u32 [#allocation12], 4
          %s524 = int_to_ptr.vmem [resolvable:$true] %s523
          %529 = dma.hbm_to_vmem [thread:$0]  %s8, 1024, %s524, [#allocation11], 64, 64, 4
        $region40: #{tpu_custom_call.1} parent=11 // pred_fallthru
          _
        // Predicated region
        $region41: #{tpu_custom_call.1} parent=11 // pred_check
          %p530 = pneg %p268
        $region42: #{tpu_custom_call.1} parent=11 // pred_check_branch
          %532 = sbr.rel (%p530) target = $region44
        $region43: #{tpu_custom_call.1} parent=11 // pred_region
          _
        $region44: #{tpu_custom_call.1} parent=11 // pred_fallthru
          _
        // Predicated region
        $region45: #{tpu_custom_call.1} parent=11 // pred_check
          %p533 = pneg %p289
        $region46: #{tpu_custom_call.1} parent=11 // pred_check_branch
          %535 = sbr.rel (%p533) target = $region48
        $region47: #{tpu_custom_call.1} parent=11 // pred_region
          %s537 = ssub.s32 1024, 1024
          %538 = vsyncadd [#allocation14], %s537
          %s539 = sshll.u32 [#allocation13], 4
          %s540 = int_to_ptr.vmem [resolvable:$true] %s539
          %545 = dma.hbm_to_vmem [thread:$0]  %s10, 1024, %s540, [#allocation14], 64, 64, 4
        $region48: #{tpu_custom_call.1} parent=11 // pred_fallthru
          _
        // Predicated region
        $region49: #{tpu_custom_call.1} parent=11 // pred_check
          %p546 = pneg %p310
        $region50: #{tpu_custom_call.1} parent=11 // pred_check_branch
          %548 = sbr.rel (%p546) target = $region52
        $region51: #{tpu_custom_call.1} parent=11 // pred_region
          _
        $region52: #{tpu_custom_call.1} parent=11 // pred_fallthru
          _
        // Predicated region
        $region53: #{tpu_custom_call.1} parent=11 // pred_check
          %p549 = pneg %p331
        $region54: #{tpu_custom_call.1} parent=11 // pred_check_branch
          %551 = sbr.rel (%p549) target = $region56
        $region55: #{tpu_custom_call.1} parent=11 // pred_region
          _
        $region56: #{tpu_custom_call.1} parent=11 // pred_fallthru
          _
        // Predicated region
        $region57: #{tpu_custom_call.1} parent=11 // pred_check
          %p552 = pneg %p352
        $region58: #{tpu_custom_call.1} parent=11 // pred_check_branch
          %554 = sbr.rel (%p552) target = $region60
        $region59: #{tpu_custom_call.1} parent=11 // pred_region
          _
        $region60: #{tpu_custom_call.1} parent=11 // pred_fallthru
          _
        // Predicated region
        $region61: #{tpu_custom_call.1} parent=11 // pred_check
          %p555 = pneg %p373
        $region62: #{tpu_custom_call.1} parent=11 // pred_check_branch
          %557 = sbr.rel (%p555) target = $region64
        $region63: #{tpu_custom_call.1} parent=11 // pred_region
          %s559 = ssub.s32 4096, 4096
          %560 = vsyncadd [#allocation14], %s559
          %s561 = sshll.u32 [#allocation15], 4
          %s562 = int_to_ptr.vmem [resolvable:$true] %s561
          %567 = dma.hbm_to_vmem [thread:$0]  %s14, 4096, %s562, [#allocation14], 256, 256, 16
        $region64: #{tpu_custom_call.1} parent=11 // pred_fallthru
          _
        // Predicated region
        $region65: #{tpu_custom_call.1} parent=11 // pred_check
          %p568 = pneg %p394
        $region66: #{tpu_custom_call.1} parent=11 // pred_check_branch
          %570 = sbr.rel (%p568) target = $region68
        $region67: #{tpu_custom_call.1} parent=11 // pred_region
          _
        $region68: #{tpu_custom_call.1} parent=11 // pred_fallthru
          _
        // Predicated region
        $region69: #{tpu_custom_call.1} parent=11 // pred_check
          %p571 = pneg %p415
        $region70: #{tpu_custom_call.1} parent=11 // pred_check_branch
          %573 = sbr.rel (%p571) target = $region72
        $region71: #{tpu_custom_call.1} parent=11 // pred_region
          %s575 = ssub.s32 4096, 4096
          %576 = vsyncadd [#allocation17], %s575
          %s577 = sshll.u32 [#allocation16], 4
          %s578 = int_to_ptr.vmem [resolvable:$true] %s577
          %583 = dma.hbm_to_vmem [thread:$0]  %s16, 4096, %s578, [#allocation17], 64, 64, 4
        $region72: #{tpu_custom_call.1} parent=11 // pred_fallthru
          _
        // Predicated region
        $region73: #{tpu_custom_call.1} parent=11 // pred_check
          %p584 = pneg %p436
        $region74: #{tpu_custom_call.1} parent=11 // pred_check_branch
          %586 = sbr.rel (%p584) target = $region76
        $region75: #{tpu_custom_call.1} parent=11 // pred_region
          _
        $region76: #{tpu_custom_call.1} parent=11 // pred_fallthru
          _
      $region12: #{tpu_custom_call.1} parent=5 // pred_fallthru
        _
      %p587 = scmp.lt.s32.totalorder %s36, 4
      // Predicated region
      $region77: #{tpu_custom_call.1} parent=5 // pred_check
        %p588 = pneg %p587
      $region78: #{tpu_custom_call.1} parent=5 // pred_check_branch
        %590 = sbr.rel (%p588) target = $region80
      $region79: #{tpu_custom_call.1} parent=5 // pred_region
        // Predicated region
        $region81: #{tpu_custom_call.1} parent=79 // pred_check
          %p591 = pneg %p68
        $region82: #{tpu_custom_call.1} parent=79 // pred_check_branch
          %593 = sbr.rel (%p591) target = $region84
        $region83: #{tpu_custom_call.1} parent=79 // pred_region
          %s594 = sand.u32 %s58, 1
          %s595 = scalar_lea.sflag [#allocation5], %s594
          %s596 = sand.u32 %s58, 1
          %s597 = smul.addr %s596, 16
          %s598 = scalar_lea.vmem [#allocation4], %s597
          %s600 = ssub.s32 256, 256
          %601 = vsyncadd %s595, %s600
          %s602 = smul.addr %s43, 4
          %s603 = smul.addr %s602, 64
          %s604 = scalar_lea.hbm %s0, %s603
          %s605 = sshll.u32 %s598, 4
          %s606 = int_to_ptr.vmem [resolvable:$true] %s605
          %611 = dma.hbm_to_vmem [thread:$0]  %s604, 256, %s606, %s595, 64, 64, 4
        $region84: #{tpu_custom_call.1} parent=79 // pred_fallthru
          _
        // Predicated region
        $region85: #{tpu_custom_call.1} parent=79 // pred_check
          %p612 = pneg %p94
        $region86: #{tpu_custom_call.1} parent=79 // pred_check_branch
          %614 = sbr.rel (%p612) target = $region88
        $region87: #{tpu_custom_call.1} parent=79 // pred_region
          %s615 = sand.u32 %s36, 1
          %s616 = scalar_lea.sflag [#allocation8], %s615
          %s617 = sand.u32 %s84, 1
          %s618 = scalar_lea.vmem [#allocation7], %s617
          %s620 = ssub.s32 16, 16
          %621 = vsyncadd %s616, %s620
          %s622 = smul.addr %s43, 16
          %s623 = scalar_lea.hbm %s1, %s622
          %s625 = sshll.u32 %s618, 4
          %s626 = int_to_ptr.vmem [resolvable:$true] %s625
          %628 = dma.hbm_to_vmem [thread:$0]  %s623, 16, %s626, %s616
        $region88: #{tpu_custom_call.1} parent=79 // pred_fallthru
          _
      $region80: #{tpu_custom_call.1} parent=5 // pred_fallthru
        _
      %p629 = scmp.le.s32.totalorder 1, %s36
      %p630 = scmp.lt.s32.totalorder %s36, 5
      %p631 = pnand %p629, %p630
      %p632 = pneg %p631
      // Predicated region
      $region89: #{tpu_custom_call.1} parent=5 // pred_check
        _
      $region90: #{tpu_custom_call.1} parent=5 // pred_check_branch
        %634 = sbr.rel (%p631) target = $region92
      $region91: #{tpu_custom_call.1} parent=5 // pred_region
        %s635 = ssub.s32 %s36, 1
        %s636 = sand.u32 %s61, 1
        %s637 = scalar_lea.sflag [#allocation5], %s636
        %s638 = sand.u32 %s61, 1
        %s639 = smul.addr %s638, 16
        %s640 = scalar_lea.vmem [#allocation4], %s639
        // Predicated region
        $region93: #{tpu_custom_call.1} parent=91 // pred_check
          %p641 = pneg %p74
        $region94: #{tpu_custom_call.1} parent=91 // pred_check_branch
          %643 = sbr.rel (%p641) target = $region96
        $region95: #{tpu_custom_call.1} parent=91 // pred_region
          %644 = dma.done %s637, 256
        $region96: #{tpu_custom_call.1} parent=91 // pred_fallthru
          _
        %s645 = sand.u32 %s41, 1
        %s646 = scalar_lea.sflag [#allocation8], %s645
        %s647 = sand.u32 %s87, 1
        %s648 = scalar_lea.vmem [#allocation7], %s647
        // Predicated region
        $region97: #{tpu_custom_call.1} parent=91 // pred_check
          %p649 = pneg %p100
        $region98: #{tpu_custom_call.1} parent=91 // pred_check_branch
          %651 = sbr.rel (%p649) target = $region100
        $region99: #{tpu_custom_call.1} parent=91 // pred_region
          %652 = dma.done %s646, 16
        $region100: #{tpu_custom_call.1} parent=91 // pred_fallthru
          _
        // Predicated region
        $region101: #{tpu_custom_call.1} parent=91 // pred_check
          %p653 = pneg %p163
        $region102: #{tpu_custom_call.1} parent=91 // pred_check_branch
          %655 = sbr.rel (%p653) target = $region104
        $region103: #{tpu_custom_call.1} parent=91 // pred_region
          %656 = dma.done [#allocation8], 1024
        $region104: #{tpu_custom_call.1} parent=91 // pred_fallthru
          _
        // Predicated region
        $region105: #{tpu_custom_call.1} parent=91 // pred_check
          %p657 = pneg %p205
        $region106: #{tpu_custom_call.1} parent=91 // pred_check_branch
          %659 = sbr.rel (%p657) target = $region108
        $region107: #{tpu_custom_call.1} parent=91 // pred_region
          %660 = dma.done [#allocation11], 1024
        $region108: #{tpu_custom_call.1} parent=91 // pred_fallthru
          _
        // Predicated region
        $region109: #{tpu_custom_call.1} parent=91 // pred_check
          %p661 = pneg %p247
        $region110: #{tpu_custom_call.1} parent=91 // pred_check_branch
          %663 = sbr.rel (%p661) target = $region112
        $region111: #{tpu_custom_call.1} parent=91 // pred_region
          %664 = dma.done [#allocation11], 1024
        $region112: #{tpu_custom_call.1} parent=91 // pred_fallthru
          _
        // Predicated region
        $region113: #{tpu_custom_call.1} parent=91 // pred_check
          %p665 = pneg %p289
        $region114: #{tpu_custom_call.1} parent=91 // pred_check_branch
          %667 = sbr.rel (%p665) target = $region116
        $region115: #{tpu_custom_call.1} parent=91 // pred_region
          %668 = dma.done [#allocation14], 1024
        $region116: #{tpu_custom_call.1} parent=91 // pred_fallthru
          _
        // Predicated region
        $region117: #{tpu_custom_call.1} parent=91 // pred_check
          %p669 = pneg %p373
        $region118: #{tpu_custom_call.1} parent=91 // pred_check_branch
          %671 = sbr.rel (%p669) target = $region120
        $region119: #{tpu_custom_call.1} parent=91 // pred_region
          %672 = dma.done [#allocation14], 4096
        $region120: #{tpu_custom_call.1} parent=91 // pred_fallthru
          _
        // Predicated region
        $region121: #{tpu_custom_call.1} parent=91 // pred_check
          %p673 = pneg %p415
        $region122: #{tpu_custom_call.1} parent=91 // pred_check_branch
          %675 = sbr.rel (%p673) target = $region124
        $region123: #{tpu_custom_call.1} parent=91 // pred_region
          %676 = dma.done [#allocation17], 4096
        $region124: #{tpu_custom_call.1} parent=91 // pred_fallthru
          _
        %s677 = sand.u32 %s61, 1
        %s678 = scalar_lea.sflag [#allocation5], %s677
        %s679 = sand.u32 %s61, 1
        %s680 = smul.addr %s679, 16
        %s681 = scalar_lea.vmem [#allocation4], %s680
        %p682 = pneg %p74
        %p683 = pneg %p71
        %s684 = sand.u32 %s41, 1
        %s685 = scalar_lea.sflag [#allocation8], %s684
        %s686 = sand.u32 %s87, 1
        %s687 = scalar_lea.vmem [#allocation7], %s686
        %p688 = pneg %p100
        %p689 = pneg %p97
        %p690 = pneg %p121
        %p691 = pneg %p118
        %p692 = pneg %p142
        %p693 = pneg %p139
        %p694 = pneg %p163
        %p695 = pneg %p160
        %p696 = pneg %p184
        %p697 = pneg %p181
        %p698 = pneg %p205
        %p699 = pneg %p202
        %p700 = pneg %p226
        %p701 = pneg %p223
        %p702 = pneg %p247
        %p703 = pneg %p244
        %p704 = pneg %p268
        %p705 = pneg %p265
        %p706 = pneg %p289
        %p707 = pneg %p286
        %p708 = pneg %p310
        %p709 = pneg %p307
        %p710 = pneg %p331
        %p711 = pneg %p328
        %p712 = pneg %p352
        %p713 = pneg %p349
        %p714 = pneg %p373
        %p715 = pneg %p370
        %p716 = pneg %p394
        %p717 = pneg %p391
        %p718 = pneg %p415
        %p719 = pneg %p412
        %p720 = pneg %p436
        %p721 = pneg %p433
        %p722 = pneg %p464
        %p723 = pneg %p461
        %s724 = sand.u32 %s451, 1
        %s725 = scalar_lea.sflag [#allocation6], %s724
        %s726 = sand.u32 %s451, 1
        %s727 = smul.addr %s726, 8
        %s728 = scalar_lea.vmem [#allocation18], %s727
        %s729 = smul.u32 2, %s46
        %v731 = vld [vmem:[%s2] sm:$0x1]
        %v732 = vld [vmem:[%s3] sm:$0x1]
        %v733 = vld [vmem:[#allocation9] sm:$0xf]
        %v734 = vld [vmem:[#allocation9 + $0x4] sm:$0xf]
        %v735 = vld [vmem:[#allocation9 + $0x8] sm:$0xf]
        %v736 = vld [vmem:[#allocation9 + $0xc] sm:$0xf]
        %v737 = vld [vmem:[#allocation9 + $0x10] sm:$0xf]
        %v738 = vld [vmem:[#allocation9 + $0x14] sm:$0xf]
        %v739 = vld [vmem:[#allocation9 + $0x18] sm:$0xf]
        %v740 = vld [vmem:[#allocation9 + $0x1c] sm:$0xf]
        %v741 = vld [vmem:[#allocation9 + $0x20] sm:$0xf]
        %v742 = vld [vmem:[#allocation9 + $0x24] sm:$0xf]
        %v743 = vld [vmem:[#allocation9 + $0x28] sm:$0xf]
        %v744 = vld [vmem:[#allocation9 + $0x2c] sm:$0xf]
        %v745 = vld [vmem:[#allocation9 + $0x30] sm:$0xf]
        %v746 = vld [vmem:[#allocation9 + $0x34] sm:$0xf]
        %v747 = vld [vmem:[#allocation9 + $0x38] sm:$0xf]
        %v748 = vld [vmem:[#allocation9 + $0x3c] sm:$0xf]
        %v749 = vld [vmem:[%s5] sm:$0x1]
        %v750 = vld [vmem:[#allocation10] sm:$0xf]
        %v751 = vld [vmem:[#allocation10 + $0x4] sm:$0xf]
        %v752 = vld [vmem:[#allocation10 + $0x8] sm:$0xf]
        %v753 = vld [vmem:[#allocation10 + $0xc] sm:$0xf]
        %v754 = vld [vmem:[#allocation10 + $0x10] sm:$0xf]
        %v755 = vld [vmem:[#allocation10 + $0x14] sm:$0xf]
        %v756 = vld [vmem:[#allocation10 + $0x18] sm:$0xf]
        %v757 = vld [vmem:[#allocation10 + $0x1c] sm:$0xf]
        %v758 = vld [vmem:[#allocation10 + $0x20] sm:$0xf]
        %v759 = vld [vmem:[#allocation10 + $0x24] sm:$0xf]
        %v760 = vld [vmem:[#allocation10 + $0x28] sm:$0xf]
        %v761 = vld [vmem:[#allocation10 + $0x2c] sm:$0xf]
        %v762 = vld [vmem:[#allocation10 + $0x30] sm:$0xf]
        %v763 = vld [vmem:[#allocation10 + $0x34] sm:$0xf]
        %v764 = vld [vmem:[#allocation10 + $0x38] sm:$0xf]
        %v765 = vld [vmem:[#allocation10 + $0x3c] sm:$0xf]
        %v766 = vld [vmem:[%s7] sm:$0x1]
        %v767 = vld [vmem:[#allocation12] sm:$0xf]
        %v768 = vld [vmem:[#allocation12 + $0x4] sm:$0xf]
        %v769 = vld [vmem:[#allocation12 + $0x8] sm:$0xf]
        %v770 = vld [vmem:[#allocation12 + $0xc] sm:$0xf]
        %v771 = vld [vmem:[#allocation12 + $0x10] sm:$0xf]
        %v772 = vld [vmem:[#allocation12 + $0x14] sm:$0xf]
        %v773 = vld [vmem:[#allocation12 + $0x18] sm:$0xf]
        %v774 = vld [vmem:[#allocation12 + $0x1c] sm:$0xf]
        %v775 = vld [vmem:[#allocation12 + $0x20] sm:$0xf]
        %v776 = vld [vmem:[#allocation12 + $0x24] sm:$0xf]
        %v777 = vld [vmem:[#allocation12 + $0x28] sm:$0xf]
        %v778 = vld [vmem:[#allocation12 + $0x2c] sm:$0xf]
        %v779 = vld [vmem:[#allocation12 + $0x30] sm:$0xf]
        %v780 = vld [vmem:[#allocation12 + $0x34] sm:$0xf]
        %v781 = vld [vmem:[#allocation12 + $0x38] sm:$0xf]
        %v782 = vld [vmem:[#allocation12 + $0x3c] sm:$0xf]
        %v783 = vld [vmem:[%s9] sm:$0x1]
        %v784 = vld [vmem:[#allocation13] sm:$0xf]
        %v785 = vld [vmem:[#allocation13 + $0x4] sm:$0xf]
        %v786 = vld [vmem:[#allocation13 + $0x8] sm:$0xf]
        %v787 = vld [vmem:[#allocation13 + $0xc] sm:$0xf]
        %v788 = vld [vmem:[#allocation13 + $0x10] sm:$0xf]
        %v789 = vld [vmem:[#allocation13 + $0x14] sm:$0xf]
        %v790 = vld [vmem:[#allocation13 + $0x18] sm:$0xf]
        %v791 = vld [vmem:[#allocation13 + $0x1c] sm:$0xf]
        %v792 = vld [vmem:[#allocation13 + $0x20] sm:$0xf]
        %v793 = vld [vmem:[#allocation13 + $0x24] sm:$0xf]
        %v794 = vld [vmem:[#allocation13 + $0x28] sm:$0xf]
        %v795 = vld [vmem:[#allocation13 + $0x2c] sm:$0xf]
        %v796 = vld [vmem:[#allocation13 + $0x30] sm:$0xf]
        %v797 = vld [vmem:[#allocation13 + $0x34] sm:$0xf]
        %v798 = vld [vmem:[#allocation13 + $0x38] sm:$0xf]
        %v799 = vld [vmem:[#allocation13 + $0x3c] sm:$0xf]
        %v800 = vld [vmem:[%s11] sm:$0x1]
        %v801 = vld [vmem:[%s12] sm:$0x1]
        %v802 = vld [vmem:[%s13] sm:$0x1]
        %v803 = vld [vmem:[#allocation15] sm:$0xff]
        %v804 = vld [vmem:[#allocation15 + $0x8] sm:$0xff]
        %v805 = vld [vmem:[#allocation15 + $0x10] sm:$0xff]
        %v806 = vld [vmem:[#allocation15 + $0x18] sm:$0xff]
        %v807 = vld [vmem:[#allocation15 + $0x20] sm:$0xff]
        %v808 = vld [vmem:[#allocation15 + $0x28] sm:$0xff]
        %v809 = vld [vmem:[#allocation15 + $0x30] sm:$0xff]
        %v810 = vld [vmem:[#allocation15 + $0x38] sm:$0xff]
        %v811 = vld [vmem:[#allocation15 + $0x40] sm:$0xff]
        %v812 = vld [vmem:[#allocation15 + $0x48] sm:$0xff]
        %v813 = vld [vmem:[#allocation15 + $0x50] sm:$0xff]
        %v814 = vld [vmem:[#allocation15 + $0x58] sm:$0xff]
        %v815 = vld [vmem:[#allocation15 + $0x60] sm:$0xff]
        %v816 = vld [vmem:[#allocation15 + $0x68] sm:$0xff]
        %v817 = vld [vmem:[#allocation15 + $0x70] sm:$0xff]
        %v818 = vld [vmem:[#allocation15 + $0x78] sm:$0xff]
        %v819 = vld [vmem:[#allocation15 + $0x80] sm:$0xff]
        %v820 = vld [vmem:[#allocation15 + $0x88] sm:$0xff]
        %v821 = vld [vmem:[#allocation15 + $0x90] sm:$0xff]
        %v822 = vld [vmem:[#allocation15 + $0x98] sm:$0xff]
        %v823 = vld [vmem:[#allocation15 + $0xa0] sm:$0xff]
        %v824 = vld [vmem:[#allocation15 + $0xa8] sm:$0xff]
        %v825 = vld [vmem:[#allocation15 + $0xb0] sm:$0xff]
        %v826 = vld [vmem:[#allocation15 + $0xb8] sm:$0xff]
        %v827 = vld [vmem:[#allocation15 + $0xc0] sm:$0xff]
        %v828 = vld [vmem:[#allocation15 + $0xc8] sm:$0xff]
        %v829 = vld [vmem:[#allocation15 + $0xd0] sm:$0xff]
        %v830 = vld [vmem:[#allocation15 + $0xd8] sm:$0xff]
        %v831 = vld [vmem:[#allocation15 + $0xe0] sm:$0xff]
        %v832 = vld [vmem:[#allocation15 + $0xe8] sm:$0xff]
        %v833 = vld [vmem:[#allocation15 + $0xf0] sm:$0xff]
        %v834 = vld [vmem:[#allocation15 + $0xf8] sm:$0xff]
        %v835 = vld [vmem:[%s15] sm:$0xf]
        %v836 = vld [vmem:[#allocation16] sm:$0xf]
        %v837 = vld [vmem:[#allocation16 + $0x4] sm:$0xf]
        %v838 = vld [vmem:[#allocation16 + $0x8] sm:$0xf]
        %v839 = vld [vmem:[#allocation16 + $0xc] sm:$0xf]
        %v840 = vld [vmem:[#allocation16 + $0x10] sm:$0xf]
        %v841 = vld [vmem:[#allocation16 + $0x14] sm:$0xf]
        %v842 = vld [vmem:[#allocation16 + $0x18] sm:$0xf]
        %v843 = vld [vmem:[#allocation16 + $0x1c] sm:$0xf]
        %v844 = vld [vmem:[#allocation16 + $0x20] sm:$0xf]
        %v845 = vld [vmem:[#allocation16 + $0x24] sm:$0xf]
        %v846 = vld [vmem:[#allocation16 + $0x28] sm:$0xf]
        %v847 = vld [vmem:[#allocation16 + $0x2c] sm:$0xf]
        %v848 = vld [vmem:[#allocation16 + $0x30] sm:$0xf]
        %v849 = vld [vmem:[#allocation16 + $0x34] sm:$0xf]
        %v850 = vld [vmem:[#allocation16 + $0x38] sm:$0xf]
        %v851 = vld [vmem:[#allocation16 + $0x3c] sm:$0xf]
        %v852 = vld [vmem:[#allocation16 + $0x40] sm:$0xf]
        %v853 = vld [vmem:[#allocation16 + $0x44] sm:$0xf]
        %v854 = vld [vmem:[#allocation16 + $0x48] sm:$0xf]
        %v855 = vld [vmem:[#allocation16 + $0x4c] sm:$0xf]
        %v856 = vld [vmem:[#allocation16 + $0x50] sm:$0xf]
        %v857 = vld [vmem:[#allocation16 + $0x54] sm:$0xf]
        %v858 = vld [vmem:[#allocation16 + $0x58] sm:$0xf]
        %v859 = vld [vmem:[#allocation16 + $0x5c] sm:$0xf]
        %v860 = vld [vmem:[#allocation16 + $0x60] sm:$0xf]
        %v861 = vld [vmem:[#allocation16 + $0x64] sm:$0xf]
        %v862 = vld [vmem:[#allocation16 + $0x68] sm:$0xf]
        %v863 = vld [vmem:[#allocation16 + $0x6c] sm:$0xf]
        %v864 = vld [vmem:[#allocation16 + $0x70] sm:$0xf]
        %v865 = vld [vmem:[#allocation16 + $0x74] sm:$0xf]
        %v866 = vld [vmem:[#allocation16 + $0x78] sm:$0xf]
        %v867 = vld [vmem:[#allocation16 + $0x7c] sm:$0xf]
        %v868 = vld [vmem:[#allocation16 + $0x80] sm:$0xf]
        %v869 = vld [vmem:[#allocation16 + $0x84] sm:$0xf]
        %v870 = vld [vmem:[#allocation16 + $0x88] sm:$0xf]
        %v871 = vld [vmem:[#allocation16 + $0x8c] sm:$0xf]
        %v872 = vld [vmem:[#allocation16 + $0x90] sm:$0xf]
        %v873 = vld [vmem:[#allocation16 + $0x94] sm:$0xf]
        %v874 = vld [vmem:[#allocation16 + $0x98] sm:$0xf]
        %v875 = vld [vmem:[#allocation16 + $0x9c] sm:$0xf]
        %v876 = vld [vmem:[#allocation16 + $0xa0] sm:$0xf]
        %v877 = vld [vmem:[#allocation16 + $0xa4] sm:$0xf]
        %v878 = vld [vmem:[#allocation16 + $0xa8] sm:$0xf]
        %v879 = vld [vmem:[#allocation16 + $0xac] sm:$0xf]
        %v880 = vld [vmem:[#allocation16 + $0xb0] sm:$0xf]
        %v881 = vld [vmem:[#allocation16 + $0xb4] sm:$0xf]
        %v882 = vld [vmem:[#allocation16 + $0xb8] sm:$0xf]
        %v883 = vld [vmem:[#allocation16 + $0xbc] sm:$0xf]
        %v884 = vld [vmem:[#allocation16 + $0xc0] sm:$0xf]
        %v885 = vld [vmem:[#allocation16 + $0xc4] sm:$0xf]
        %v886 = vld [vmem:[#allocation16 + $0xc8] sm:$0xf]
        %v887 = vld [vmem:[#allocation16 + $0xcc] sm:$0xf]
        %v888 = vld [vmem:[#allocation16 + $0xd0] sm:$0xf]
        %v889 = vld [vmem:[#allocation16 + $0xd4] sm:$0xf]
        %v890 = vld [vmem:[#allocation16 + $0xd8] sm:$0xf]
        %v891 = vld [vmem:[#allocation16 + $0xdc] sm:$0xf]
        %v892 = vld [vmem:[#allocation16 + $0xe0] sm:$0xf]
        %v893 = vld [vmem:[#allocation16 + $0xe4] sm:$0xf]
        %v894 = vld [vmem:[#allocation16 + $0xe8] sm:$0xf]
        %v895 = vld [vmem:[#allocation16 + $0xec] sm:$0xf]
        %v896 = vld [vmem:[#allocation16 + $0xf0] sm:$0xf]
        %v897 = vld [vmem:[#allocation16 + $0xf4] sm:$0xf]
        %v898 = vld [vmem:[#allocation16 + $0xf8] sm:$0xf]
        %v899 = vld [vmem:[#allocation16 + $0xfc] sm:$0xf]
        %v900 = vld [vmem:[%s17] sm:$0x1]
        %p901 = scmp.eq.s32.totalorder %s46, 0
        // Predicated region
        $region125: #{tpu_custom_call.1} parent=91 // pred_check
          %p902 = pneg %p901
        $region126: #{tpu_custom_call.1} parent=91 // pred_check_branch
          %904 = sbr.rel (%p902) target = $region128
        $region127: #{tpu_custom_call.1} parent=91 // pred_region
          %v905 = vld [vmem:[%s640] sm:$0xf]
          %v906 = vld [vmem:[%s640 + $0x4] sm:$0xf]
          %v907 = vld [vmem:[%s640 + $0x8] sm:$0xf]
          %v908 = vld [vmem:[%s640 + $0xc] sm:$0xf]
          %v909 = vunpack.c.l.bf16 %v905
          %v910 = vunpack.c.l.bf16 %v906
          %v911 = vunpack.c.l.bf16 %v907
          %v912 = vunpack.c.l.bf16 %v908
          %913 = vadd.xlane.f32.xlu0 %v909
          %v914 = vpop.xlane.xlu0 %913
          %915 = vadd.xlane.f32.xlu0 %v910
          %v916 = vpop.xlane.xlu0 %915
          %917 = vadd.xlane.f32.xlu0 %v911
          %v918 = vpop.xlane.xlu0 %917
          %919 = vadd.xlane.f32.xlu0 %v912
          %v920 = vpop.xlane.xlu0 %919
          %v921 = vrcp.pop 128.0
          %v922 = vmul.f32 %v914, %v921
          %v923 = vmul.f32 %v916, %v921
          %v924 = vmul.f32 %v918, %v921
          %v925 = vmul.f32 %v920, %v921
          %v926 = vsub.f32 %v909, %v922
          %v927 = vsub.f32 %v910, %v923
          %v928 = vsub.f32 %v911, %v924
          %v929 = vsub.f32 %v912, %v925
          %v930 = vmul.f32 %v926, %v926
          %v931 = vmul.f32 %v927, %v927
          %v932 = vmul.f32 %v928, %v928
          %v933 = vmul.f32 %v929, %v929
          %934 = vadd.xlane.f32.xlu0 %v930
          %v935 = vpop.xlane.xlu0 %934
          %936 = vadd.xlane.f32.xlu0 %v931
          %v937 = vpop.xlane.xlu0 %936
          %938 = vadd.xlane.f32.xlu0 %v932
          %v939 = vpop.xlane.xlu0 %938
          %940 = vadd.xlane.f32.xlu0 %v933
          %v941 = vpop.xlane.xlu0 %940
          %v942 = vmul.f32 %v935, %v921
          %v943 = vmul.f32 %v937, %v921
          %v944 = vmul.f32 %v939, %v921
          %v945 = vmul.f32 %v941, %v921
          %v946 = vadd.f32 %v942, 1e-05
          %v947 = vadd.f32 %v943, 1e-05
          %v948 = vadd.f32 %v944, 1e-05
          %v949 = vadd.f32 %v945, 1e-05
          %v950 = vrsqrt.pop %v946
          %v951 = vrsqrt.pop %v947
          %v952 = vrsqrt.pop %v948
          %v953 = vrsqrt.pop %v949
          %v954 = vmul.f32 %v926, %v950
          %v955 = vmul.f32 %v927, %v951
          %v956 = vmul.f32 %v928, %v952
          %v957 = vmul.f32 %v929, %v953
          %v959 = vlaneseq
          %v960 = vshrl.u32 %v959, 7
          %v961 = vsub.s32 0, %v960
          %v962 = vrot.slane %v731, %v961
          %v964 = vmul.f32 %v954, %v962
          %v965 = vmul.f32 %v955, %v962
          %v966 = vmul.f32 %v956, %v962
          %v967 = vmul.f32 %v957, %v962
          %v969 = vlaneseq
          %v970 = vshrl.u32 %v969, 7
          %v971 = vsub.s32 0, %v970
          %v972 = vrot.slane %v732, %v971
          %v974 = vadd.f32 %v964, %v972
          %v975 = vadd.f32 %v965, %v972
          %v976 = vadd.f32 %v966, %v972
          %v977 = vadd.f32 %v967, %v972
          %v978 = vpack.c.bf16 %v975, %v974
          %v979 = vpack.c.bf16 %v977, %v976
          %v981 = vlaneseq
          %v982 = vshrl.u32 %v981, 7
          %v983 = vsub.s32 0, %v982
          %v984 = vrot.slane %v766, %v983
          %v1002 = vunpack.c.l.b16 %v750
          %v1003 = vunpack.c.l.b16 %v751
          %v1004 = vunpack.c.l.b16 %v752
          %v1005 = vunpack.c.l.b16 %v753
          %v1006 = vunpack.c.l.b16 %v754
          %v1007 = vunpack.c.l.b16 %v755
          %v1008 = vunpack.c.l.b16 %v756
          %v1009 = vunpack.c.l.b16 %v757
          %v1010 = vunpack.c.l.b16 %v758
          %v1011 = vunpack.c.l.b16 %v759
          %v1012 = vunpack.c.l.b16 %v760
          %v1013 = vunpack.c.l.b16 %v761
          %v1014 = vunpack.c.l.b16 %v762
          %v1015 = vunpack.c.l.b16 %v763
          %v1016 = vunpack.c.l.b16 %v764
          %v1017 = vunpack.c.l.b16 %v765
          %v1018 = vpack.c.b16 %v1003, %v1002
          %v1019 = vpack.c.b16 %v1005, %v1004
          %v1020 = vpack.c.b16 %v1007, %v1006
          %v1021 = vpack.c.b16 %v1009, %v1008
          %v1022 = vpack.c.b16 %v1011, %v1010
          %v1023 = vpack.c.b16 %v1013, %v1012
          %v1024 = vpack.c.b16 %v1015, %v1014
          %v1025 = vpack.c.b16 %v1017, %v1016
          %1034 = vmatprep.subr.bf16.mxu0 0
          %1035 = vmatpush1.bf16.msra.mxu0 %v1025
          %1036 = vmatprep.subr.bf16.mxu0 0
          %1037 = vmatpush1.bf16.msra.mxu0 %v1024
          %1038 = vmatprep.subr.bf16.mxu0 0
          %1039 = vmatpush1.bf16.msra.mxu0 %v1023
          %1040 = vmatprep.subr.bf16.mxu0 0
          %1041 = vmatpush1.bf16.msra.mxu0 %v1022
          %1042 = vmatprep.subr.bf16.mxu0 0
          %1043 = vmatpush1.bf16.msra.mxu0 %v1021
          %1044 = vmatprep.subr.bf16.mxu0 0
          %1045 = vmatpush1.bf16.msra.mxu0 %v1020
          %1046 = vmatprep.subr.bf16.mxu0 0
          %1047 = vmatpush1.bf16.msra.mxu0 %v1019
          %1048 = vmatprep.subr.bf16.mxu0 0
          %1049 = vmatpush1.bf16.msra.mxu0 %v1018
          %1050 = vmatprep.subr.bf16.mxu0 0
          %1051 = vmatpush2.bf16.msra.mxu0 0
          %1052 = vmatprep.subr.bf16.mxu0 0
          %1053 = vmatpush2.bf16.msra.mxu0 0
          %1054 = vmatprep.subr.bf16.mxu0 0
          %1055 = vmatpush2.bf16.msra.mxu0 0
          %1056 = vmatprep.subr.bf16.mxu0 0
          %1057 = vmatpush2.bf16.msra.mxu0 0
          %1058 = vmatprep.subr.bf16.mxu0 0
          %1059 = vmatpush2.bf16.msra.mxu0 0
          %1060 = vmatprep.subr.bf16.mxu0 0
          %1061 = vmatpush2.bf16.msra.mxu0 0
          %1062 = vmatprep.subr.bf16.mxu0 0
          %1063 = vmatpush2.bf16.msra.mxu0 0
          %1064 = vmatprep.subr.bf16.mxu0 0
          %1065 = vmatpush2.bf16.msra.mxu0 0
          %1066 = vmatprep.mubr.bf16.mxu0 0
          %1067 = vmatmul.mubr.bf16.gmra.mxu0 %v978
          %v1068 = vpop.f32.mrf.mxu0
          %v1069 = vadd.f32 %v984, %v1068
          %v1070 = vpop.f32.mrf.mxu0
          %v1071 = vpop.f32.mrf.mxu0
          %v1072 = vadd.f32 %v984, %v1071
          %v1073 = vpop.f32.mrf.mxu0
          %1074 = vmatprep.mubr.bf16.mxu0 0
          %1075 = vmatmul.mubr.bf16.gmra.mxu0 %v979
          %v1076 = vpop.f32.mrf.mxu0
          %v1077 = vadd.f32 %v984, %v1076
          %v1078 = vpop.f32.mrf.mxu0
          %v1079 = vpop.f32.mrf.mxu0
          %v1080 = vadd.f32 %v984, %v1079
          %v1081 = vpop.f32.mrf.mxu0
          %1082 = vdwg.mxu0
          %v1084 = vlaneseq
          %v1085 = vshrl.u32 %v1084, 7
          %v1086 = vsub.s32 0, %v1085
          %v1087 = vrot.slane %v783, %v1086
          %v1105 = vunpack.c.l.b16 %v767
          %v1106 = vunpack.c.l.b16 %v768
          %v1107 = vunpack.c.l.b16 %v769
          %v1108 = vunpack.c.l.b16 %v770
          %v1109 = vunpack.c.l.b16 %v771
          %v1110 = vunpack.c.l.b16 %v772
          %v1111 = vunpack.c.l.b16 %v773
          %v1112 = vunpack.c.l.b16 %v774
          %v1113 = vunpack.c.l.b16 %v775
          %v1114 = vunpack.c.l.b16 %v776
          %v1115 = vunpack.c.l.b16 %v777
          %v1116 = vunpack.c.l.b16 %v778
          %v1117 = vunpack.c.l.b16 %v779
          %v1118 = vunpack.c.l.b16 %v780
          %v1119 = vunpack.c.l.b16 %v781
          %v1120 = vunpack.c.l.b16 %v782
          %v1121 = vpack.c.b16 %v1106, %v1105
          %v1122 = vpack.c.b16 %v1108, %v1107
          %v1123 = vpack.c.b16 %v1110, %v1109
          %v1124 = vpack.c.b16 %v1112, %v1111
          %v1125 = vpack.c.b16 %v1114, %v1113
          %v1126 = vpack.c.b16 %v1116, %v1115
          %v1127 = vpack.c.b16 %v1118, %v1117
          %v1128 = vpack.c.b16 %v1120, %v1119
          %1137 = vmatprep.subr.bf16.mxu0 0
          %1138 = vmatpush1.bf16.msra.mxu0 %v1128
          %1139 = vmatprep.subr.bf16.mxu0 0
          %1140 = vmatpush1.bf16.msra.mxu0 %v1127
          %1141 = vmatprep.subr.bf16.mxu0 0
          %1142 = vmatpush1.bf16.msra.mxu0 %v1126
          %1143 = vmatprep.subr.bf16.mxu0 0
          %1144 = vmatpush1.bf16.msra.mxu0 %v1125
          %1145 = vmatprep.subr.bf16.mxu0 0
          %1146 = vmatpush1.bf16.msra.mxu0 %v1124
          %1147 = vmatprep.subr.bf16.mxu0 0
          %1148 = vmatpush1.bf16.msra.mxu0 %v1123
          %1149 = vmatprep.subr.bf16.mxu0 0
          %1150 = vmatpush1.bf16.msra.mxu0 %v1122
          %1151 = vmatprep.subr.bf16.mxu0 0
          %1152 = vmatpush1.bf16.msra.mxu0 %v1121
          %1153 = vmatprep.subr.bf16.mxu0 0
          %1154 = vmatpush2.bf16.msra.mxu0 0
          %1155 = vmatprep.subr.bf16.mxu0 0
          %1156 = vmatpush2.bf16.msra.mxu0 0
          %1157 = vmatprep.subr.bf16.mxu0 0
          %1158 = vmatpush2.bf16.msra.mxu0 0
          %1159 = vmatprep.subr.bf16.mxu0 0
          %1160 = vmatpush2.bf16.msra.mxu0 0
          %1161 = vmatprep.subr.bf16.mxu0 0
          %1162 = vmatpush2.bf16.msra.mxu0 0
          %1163 = vmatprep.subr.bf16.mxu0 0
          %1164 = vmatpush2.bf16.msra.mxu0 0
          %1165 = vmatprep.subr.bf16.mxu0 0
          %1166 = vmatpush2.bf16.msra.mxu0 0
          %1167 = vmatprep.subr.bf16.mxu0 0
          %1168 = vmatpush2.bf16.msra.mxu0 0
          %1169 = vmatprep.mubr.bf16.mxu0 0
          %1170 = vmatmul.mubr.bf16.gmra.mxu0 %v978
          %v1171 = vpop.f32.mrf.mxu0
          %v1172 = vadd.f32 %v1087, %v1171
          %v1173 = vpop.f32.mrf.mxu0
          %v1174 = vpop.f32.mrf.mxu0
          %v1175 = vadd.f32 %v1087, %v1174
          %v1176 = vpop.f32.mrf.mxu0
          %1177 = vmatprep.mubr.bf16.mxu0 0
          %1178 = vmatmul.mubr.bf16.gmra.mxu0 %v979
          %v1179 = vpop.f32.mrf.mxu0
          %v1180 = vadd.f32 %v1087, %v1179
          %v1181 = vpop.f32.mrf.mxu0
          %v1182 = vpop.f32.mrf.mxu0
          %v1183 = vadd.f32 %v1087, %v1182
          %v1184 = vpop.f32.mrf.mxu0
          %1185 = vdwg.mxu0
          %v1186 = vpack.c.bf16 %v1072, %v1069
          %v1187 = vpack.c.bf16 %v1080, %v1077
          %v1190 = vunpack.c.l.b16 %v1186
          %v1191 = vunpack.c.h.b16 %v1186
          %v1192 = vunpack.c.l.b16 %v1187
          %v1193 = vunpack.c.h.b16 %v1187
          %v1194 = vpack.c.b16 %v1190, %v1190
          %v1195 = vpack.c.b16 %v1191, %v1191
          %v1196 = vpack.c.b16 %v1192, %v1192
          %v1197 = vpack.c.b16 %v1193, %v1193
          %1202 = vst [vmem:[#allocation2] sm:$0xf] %v1194
          %1203 = vst [vmem:[#allocation2 + $0x4] sm:$0xf] %v1195
          %1204 = vst [vmem:[#allocation2 + $0x8] sm:$0xf] %v1196
          %1205 = vst [vmem:[#allocation2 + $0xc] sm:$0xf] %v1197
          %v1206 = vpack.c.bf16 %v1175, %v1172
          %v1207 = vpack.c.bf16 %v1183, %v1180
          %v1210 = vunpack.c.l.b16 %v1206
          %v1211 = vunpack.c.h.b16 %v1206
          %v1212 = vunpack.c.l.b16 %v1207
          %v1213 = vunpack.c.h.b16 %v1207
          %v1214 = vpack.c.b16 %v1210, %v1210
          %v1215 = vpack.c.b16 %v1211, %v1211
          %v1216 = vpack.c.b16 %v1212, %v1212
          %v1217 = vpack.c.b16 %v1213, %v1213
          %1222 = vst [vmem:[#allocation3] sm:$0xf] %v1214
          %1223 = vst [vmem:[#allocation3 + $0x4] sm:$0xf] %v1215
          %1224 = vst [vmem:[#allocation3 + $0x8] sm:$0xf] %v1216
          %1225 = vst [vmem:[#allocation3 + $0xc] sm:$0xf] %v1217
        $region128: #{tpu_custom_call.1} parent=91 // pred_fallthru
          _
        %s1226 = smul.u32 %s46, 16
        %s1227 = sshra.s32 %s1226, 3
        %s1228 = sand.u32 %s1226, 7
        %s1229 = smul.addr %s1227, 4
        %s1230 = scalar_lea.vmem %s640, %s1229 [#allocation4]
        %v1231 = vld [vmem:[%s1230] sm:$0xf]
        %v1232 = vld [vmem:[%s1230 + $0x4] sm:$0xf]
        %v1233 = vunpack.c.l.bf16 %v1231
        %v1234 = vunpack.c.l.bf16 %v1232
        %1235 = vadd.xlane.f32.xlu0 %v1233
        %v1236 = vpop.xlane.xlu0 %1235
        %1237 = vadd.xlane.f32.xlu0 %v1234
        %v1238 = vpop.xlane.xlu0 %1237
        %v1239 = vrcp.pop 128.0
        %v1240 = vmul.f32 %v1236, %v1239
        %v1241 = vmul.f32 %v1238, %v1239
        %v1242 = vsub.f32 %v1233, %v1240
        %v1243 = vsub.f32 %v1234, %v1241
        %v1244 = vmul.f32 %v1242, %v1242
        %v1245 = vmul.f32 %v1243, %v1243
        %1246 = vadd.xlane.f32.xlu0 %v1244
        %v1247 = vpop.xlane.xlu0 %1246
        %1248 = vadd.xlane.f32.xlu0 %v1245
        %v1249 = vpop.xlane.xlu0 %1248
        %v1250 = vmul.f32 %v1247, %v1239
        %v1251 = vmul.f32 %v1249, %v1239
        %v1252 = vadd.f32 %v1250, 1e-05
        %v1253 = vadd.f32 %v1251, 1e-05
        %v1254 = vrsqrt.pop %v1252
        %v1255 = vrsqrt.pop %v1253
        %v1256 = vmul.f32 %v1242, %v1254
        %v1257 = vmul.f32 %v1243, %v1255
        %v1259 = vlaneseq
        %v1260 = vshrl.u32 %v1259, 7
        %v1261 = vsub.s32 0, %v1260
        %v1262 = vrot.slane %v731, %v1261
        %v1264 = vmul.f32 %v1256, %v1262
        %v1265 = vmul.f32 %v1257, %v1262
        %v1267 = vlaneseq
        %v1268 = vshrl.u32 %v1267, 7
        %v1269 = vsub.s32 0, %v1268
        %v1270 = vrot.slane %v732, %v1269
        %v1272 = vadd.f32 %v1264, %v1270
        %v1273 = vadd.f32 %v1265, %v1270
        %v1274 = vpack.c.bf16 %v1273, %v1272
        %v1276 = vlaneseq
        %v1277 = vshrl.u32 %v1276, 7
        %v1278 = vsub.s32 0, %v1277
        %v1279 = vrot.slane %v749, %v1278
        %v1297 = vunpack.c.l.b16 %v733
        %v1298 = vunpack.c.l.b16 %v734
        %v1299 = vunpack.c.l.b16 %v735
        %v1300 = vunpack.c.l.b16 %v736
        %v1301 = vunpack.c.l.b16 %v737
        %v1302 = vunpack.c.l.b16 %v738
        %v1303 = vunpack.c.l.b16 %v739
        %v1304 = vunpack.c.l.b16 %v740
        %v1305 = vunpack.c.l.b16 %v741
        %v1306 = vunpack.c.l.b16 %v742
        %v1307 = vunpack.c.l.b16 %v743
        %v1308 = vunpack.c.l.b16 %v744
        %v1309 = vunpack.c.l.b16 %v745
        %v1310 = vunpack.c.l.b16 %v746
        %v1311 = vunpack.c.l.b16 %v747
        %v1312 = vunpack.c.l.b16 %v748
        %v1313 = vpack.c.b16 %v1298, %v1297
        %v1314 = vpack.c.b16 %v1300, %v1299
        %v1315 = vpack.c.b16 %v1302, %v1301
        %v1316 = vpack.c.b16 %v1304, %v1303
        %v1317 = vpack.c.b16 %v1306, %v1305
        %v1318 = vpack.c.b16 %v1308, %v1307
        %v1319 = vpack.c.b16 %v1310, %v1309
        %v1320 = vpack.c.b16 %v1312, %v1311
        %1329 = vmatprep.subr.bf16.mxu0 0
        %1330 = vmatpush1.bf16.msra.mxu0 %v1320
        %1331 = vmatprep.subr.bf16.mxu0 0
        %1332 = vmatpush1.bf16.msra.mxu0 %v1319
        %1333 = vmatprep.subr.bf16.mxu0 0
        %1334 = vmatpush1.bf16.msra.mxu0 %v1318
        %1335 = vmatprep.subr.bf16.mxu0 0
        %1336 = vmatpush1.bf16.msra.mxu0 %v1317
        %1337 = vmatprep.subr.bf16.mxu0 0
        %1338 = vmatpush1.bf16.msra.mxu0 %v1316
        %1339 = vmatprep.subr.bf16.mxu0 0
        %1340 = vmatpush1.bf16.msra.mxu0 %v1315
        %1341 = vmatprep.subr.bf16.mxu0 0
        %1342 = vmatpush1.bf16.msra.mxu0 %v1314
        %1343 = vmatprep.subr.bf16.mxu0 0
        %1344 = vmatpush1.bf16.msra.mxu0 %v1313
        %1345 = vmatprep.subr.bf16.mxu0 0
        %1346 = vmatpush2.bf16.msra.mxu0 0
        %1347 = vmatprep.subr.bf16.mxu0 0
        %1348 = vmatpush2.bf16.msra.mxu0 0
        %1349 = vmatprep.subr.bf16.mxu0 0
        %1350 = vmatpush2.bf16.msra.mxu0 0
        %1351 = vmatprep.subr.bf16.mxu0 0
        %1352 = vmatpush2.bf16.msra.mxu0 0
        %1353 = vmatprep.subr.bf16.mxu0 0
        %1354 = vmatpush2.bf16.msra.mxu0 0
        %1355 = vmatprep.subr.bf16.mxu0 0
        %1356 = vmatpush2.bf16.msra.mxu0 0
        %1357 = vmatprep.subr.bf16.mxu0 0
        %1358 = vmatpush2.bf16.msra.mxu0 0
        %1359 = vmatprep.subr.bf16.mxu0 0
        %1360 = vmatpush2.bf16.msra.mxu0 0
        %1361 = vmatprep.mubr.bf16.mxu0 0
        %1362 = vmatmul.mubr.bf16.gmra.mxu0 %v1274
        %v1363 = vpop.f32.mrf.mxu0
        %v1364 = vadd.f32 %v1279, %v1363
        %v1365 = vpop.f32.mrf.mxu0
        %v1366 = vpop.f32.mrf.mxu0
        %v1367 = vadd.f32 %v1279, %v1366
        %v1368 = vpop.f32.mrf.mxu0
        %1369 = vdwg.mxu0
        %v1370 = vmul.f32 %v1364, 0.17677669
        %v1371 = vmul.f32 %v1367, 0.17677669
        %v1372 = vpack.c.bf16 %v1371, %v1370
        %v1373 = vld [vmem:[#allocation2] sm:$0xf]
        %v1374 = vld [vmem:[#allocation2 + $0x4] sm:$0xf]
        %v1375 = vld [vmem:[#allocation2 + $0x8] sm:$0xf]
        %v1376 = vld [vmem:[#allocation2 + $0xc] sm:$0xf]
        %v1377 = vld [vmem:[#allocation3] sm:$0xf]
        %v1378 = vld [vmem:[#allocation3 + $0x4] sm:$0xf]
        %v1379 = vld [vmem:[#allocation3 + $0x8] sm:$0xf]
        %v1380 = vld [vmem:[#allocation3 + $0xc] sm:$0xf]
        %v1381 = vld [vmem:[%s648] sm:$0x1]
        %v1383 = vlaneseq
        %v1384 = vshrl.u32 %v1383, 7
        %v1385 = vsub.s32 0, %v1384
        %v1386 = vrot.slane %v1381, %v1385
        %v1392 = vunpack.c.l.b16 %v1373
        %v1393 = vunpack.c.l.b16 %v1374
        %v1394 = vunpack.c.l.b16 %v1375
        %v1395 = vunpack.c.l.b16 %v1376
        %v1396 = vpack.c.b16 %v1393, %v1392
        %v1397 = vpack.c.b16 %v1395, %v1394
        %vm1398 = vcmask 261120
        %v1400 = vsel %vm1398, %v1372, 0
        %v1403 = vsel %vm1398, %v1396, 0
        %v1406 = vsel %vm1398, %v1397, 0
        %1408 = vmatprep.subr.bf16.mxu0 0
        %1409 = vmatpush1.bf16.xpose.msra.mxu0 0
        %1410 = vmatprep.subr.bf16.mxu0 0
        %1411 = vmatpush1.bf16.xpose.msra.mxu0 0
        %1412 = vmatprep.subr.bf16.mxu0 0
        %1413 = vmatpush1.bf16.xpose.msra.mxu0 0
        %1414 = vmatprep.subr.bf16.mxu0 0
        %1415 = vmatpush1.bf16.xpose.msra.mxu0 0
        %1416 = vmatprep.subr.bf16.mxu0 0
        %1417 = vmatpush1.bf16.xpose.msra.mxu0 0
        %1418 = vmatprep.subr.bf16.mxu0 0
        %1419 = vmatpush1.bf16.xpose.msra.mxu0 0
        %1420 = vmatprep.subr.bf16.mxu0 0
        %1421 = vmatpush1.bf16.xpose.msra.mxu0 %v1406
        %1422 = vmatprep.subr.bf16.mxu0 0
        %1423 = vmatpush1.bf16.xpose.msra.mxu0 %v1403
        %1424 = vmatprep.subr.bf16.mxu0 0
        %1425 = vmatpush2.bf16.xpose.msra.mxu0 0
        %1426 = vmatprep.subr.bf16.mxu0 0
        %1427 = vmatpush2.bf16.xpose.msra.mxu0 0
        %1428 = vmatprep.subr.bf16.mxu0 0
        %1429 = vmatpush2.bf16.xpose.msra.mxu0 0
        %1430 = vmatprep.subr.bf16.mxu0 0
        %1431 = vmatpush2.bf16.xpose.msra.mxu0 0
        %1432 = vmatprep.subr.bf16.mxu0 0
        %1433 = vmatpush2.bf16.xpose.msra.mxu0 0
        %1434 = vmatprep.subr.bf16.mxu0 0
        %1435 = vmatpush2.bf16.xpose.msra.mxu0 0
        %1436 = vmatprep.subr.bf16.mxu0 0
        %1437 = vmatpush2.bf16.xpose.msra.mxu0 0
        %1438 = vmatprep.subr.bf16.mxu0 0
        %1439 = vmatpush2.bf16.xpose.msra.mxu0 0
        %1440 = vmatprep.mubr.bf16.mxu0 0
        %1441 = vmatmul.mubr.bf16.gmra.mxu0 %v1400
        %v1442 = vpop.f32.mrf.mxu0
        %v1443 = vadd.f32 %v1386, %v1442
        %v1444 = vpop.f32.mrf.mxu0
        %v1445 = vpop.f32.mrf.mxu0
        %v1446 = vadd.f32 %v1386, %v1445
        %v1447 = vpop.f32.mrf.mxu0
        %1448 = vdwg.mxu0
        %v1449 = vsel %vm1398, %v1443, -inf
        %1450 = vmax.xlane.f32.xlu0 %v1449
        %v1451 = vpop.xlane.xlu0 %1450
        %v1452 = vsel %vm1398, %v1446, -inf
        %1453 = vmax.xlane.f32.xlu0 %v1452
        %v1454 = vpop.xlane.xlu0 %1453
        %v1455 = vsub.f32 %v1443, %v1451
        %v1456 = vsub.f32 %v1446, %v1454
        %v1457 = vmul.f32 %v1455, 1.442695
        %v1458 = vpow.pop %v1457
        %v1459 = vmul.f32 %v1456, 1.442695
        %v1460 = vpow.pop %v1459
        %v1461 = vsel %vm1398, %v1458, 0.0
        %1462 = vadd.xlane.f32.xlu0 %v1461
        %v1463 = vpop.xlane.xlu0 %1462
        %v1464 = vsel %vm1398, %v1460, 0.0
        %1465 = vadd.xlane.f32.xlu0 %v1464
        %v1466 = vpop.xlane.xlu0 %1465
        %v1467 = vrcp.pop %v1463
        %v1468 = vrcp.pop %v1466
        %v1469 = vmul.f32 %v1458, %v1467
        %v1470 = vmul.f32 %v1460, %v1468
        %v1471 = vpack.c.bf16 %v1470, %v1469
        %v1476 = vunpack.c.l.b16 %v1377
        %v1477 = vunpack.c.l.b16 %v1378
        %v1478 = vunpack.c.l.b16 %v1379
        %v1479 = vunpack.c.l.b16 %v1380
        %v1480 = vpack.c.b16 %v1477, %v1476
        %v1481 = vpack.c.b16 %v1479, %v1478
        %v1485 = vsel %vm1398, %v1471, 0
        %1487 = vmatprep.subr.bf16.mxu0 0
        %1488 = vmatpush1.bf16.msra.mxu0 0
        %1489 = vmatprep.subr.bf16.mxu0 0
        %1490 = vmatpush1.bf16.msra.mxu0 0
        %1491 = vmatprep.subr.bf16.mxu0 0
        %1492 = vmatpush1.bf16.msra.mxu0 0
        %1493 = vmatprep.subr.bf16.mxu0 0
        %1494 = vmatpush1.bf16.msra.mxu0 0
        %1495 = vmatprep.subr.bf16.mxu0 0
        %1496 = vmatpush1.bf16.msra.mxu0 0
        %1497 = vmatprep.subr.bf16.mxu0 0
        %1498 = vmatpush1.bf16.msra.mxu0 0
        %1499 = vmatprep.subr.bf16.mxu0 0
        %1500 = vmatpush1.bf16.msra.mxu0 %v1481
        %1501 = vmatprep.subr.bf16.mxu0 0
        %1502 = vmatpush1.bf16.msra.mxu0 %v1480
        %1503 = vmatprep.subr.bf16.mxu0 0
        %1504 = vmatpush2.bf16.msra.mxu0 0
        %1505 = vmatprep.subr.bf16.mxu0 0
        %1506 = vmatpush2.bf16.msra.mxu0 0
        %1507 = vmatprep.subr.bf16.mxu0 0
        %1508 = vmatpush2.bf16.msra.mxu0 0
        %1509 = vmatprep.subr.bf16.mxu0 0
        %1510 = vmatpush2.bf16.msra.mxu0 0
        %1511 = vmatprep.subr.bf16.mxu0 0
        %1512 = vmatpush2.bf16.msra.mxu0 0
        %1513 = vmatprep.subr.bf16.mxu0 0
        %1514 = vmatpush2.bf16.msra.mxu0 0
        %1515 = vmatprep.subr.bf16.mxu0 0
        %1516 = vmatpush2.bf16.msra.mxu0 0
        %1517 = vmatprep.subr.bf16.mxu0 0
        %1518 = vmatpush2.bf16.msra.mxu0 0
        %1519 = vmatprep.mubr.bf16.mxu0 0
        %1520 = vmatmul.mubr.bf16.gmra.mxu0 %v1485
        %v1521 = vpop.f32.mrf.mxu0
        %v1522 = vadd.f32 0.0, %v1521
        %v1523 = vpop.f32.mrf.mxu0
        %v1524 = vpop.f32.mrf.mxu0
        %v1525 = vadd.f32 0.0, %v1524
        %v1526 = vpop.f32.mrf.mxu0
        %1527 = vdwg.mxu0
        %v1528 = vpack.c.bf16 %v1525, %v1522
        %1530 = vrot.lane.b32.xlu0 %v1372, 96
        %v1531 = vpop.permute.xlu0 %1530
        %1532 = vrot.lane.b32.xlu0 %v1396, 96
        %v1533 = vpop.permute.xlu0 %1532
        %1534 = vrot.lane.b32.xlu0 %v1397, 96
        %v1535 = vpop.permute.xlu0 %1534
        %v1537 = vsel %vm1398, %v1531, 0
        %v1540 = vsel %vm1398, %v1533, 0
        %v1543 = vsel %vm1398, %v1535, 0
        %1545 = vmatprep.subr.bf16.mxu0 0
        %1546 = vmatpush1.bf16.xpose.msra.mxu0 0
        %1547 = vmatprep.subr.bf16.mxu0 0
        %1548 = vmatpush1.bf16.xpose.msra.mxu0 0
        %1549 = vmatprep.subr.bf16.mxu0 0
        %1550 = vmatpush1.bf16.xpose.msra.mxu0 0
        %1551 = vmatprep.subr.bf16.mxu0 0
        %1552 = vmatpush1.bf16.xpose.msra.mxu0 0
        %1553 = vmatprep.subr.bf16.mxu0 0
        %1554 = vmatpush1.bf16.xpose.msra.mxu0 0
        %1555 = vmatprep.subr.bf16.mxu0 0
        %1556 = vmatpush1.bf16.xpose.msra.mxu0 0
        %1557 = vmatprep.subr.bf16.mxu0 0
        %1558 = vmatpush1.bf16.xpose.msra.mxu0 %v1543
        %1559 = vmatprep.subr.bf16.mxu0 0
        %1560 = vmatpush1.bf16.xpose.msra.mxu0 %v1540
        %1561 = vmatprep.subr.bf16.mxu0 0
        %1562 = vmatpush2.bf16.xpose.msra.mxu0 0
        %1563 = vmatprep.subr.bf16.mxu0 0
        %1564 = vmatpush2.bf16.xpose.msra.mxu0 0
        %1565 = vmatprep.subr.bf16.mxu0 0
        %1566 = vmatpush2.bf16.xpose.msra.mxu0 0
        %1567 = vmatprep.subr.bf16.mxu0 0
        %1568 = vmatpush2.bf16.xpose.msra.mxu0 0
        %1569 = vmatprep.subr.bf16.mxu0 0
        %1570 = vmatpush2.bf16.xpose.msra.mxu0 0
        %1571 = vmatprep.subr.bf16.mxu0 0
        %1572 = vmatpush2.bf16.xpose.msra.mxu0 0
        %1573 = vmatprep.subr.bf16.mxu0 0
        %1574 = vmatpush2.bf16.xpose.msra.mxu0 0
        %1575 = vmatprep.subr.bf16.mxu0 0
        %1576 = vmatpush2.bf16.xpose.msra.mxu0 0
        %1577 = vmatprep.mubr.bf16.mxu0 0
        %1578 = vmatmul.mubr.bf16.gmra.mxu0 %v1537
        %v1579 = vpop.f32.mrf.mxu0
        %v1580 = vadd.f32 %v1386, %v1579
        %v1581 = vpop.f32.mrf.mxu0
        %v1582 = vpop.f32.mrf.mxu0
        %v1583 = vadd.f32 %v1386, %v1582
        %v1584 = vpop.f32.mrf.mxu0
        %1585 = vdwg.mxu0
        %v1586 = vsel %vm1398, %v1580, -inf
        %1587 = vmax.xlane.f32.xlu0 %v1586
        %v1588 = vpop.xlane.xlu0 %1587
        %v1589 = vsel %vm1398, %v1583, -inf
        %1590 = vmax.xlane.f32.xlu0 %v1589
        %v1591 = vpop.xlane.xlu0 %1590
        %v1592 = vsub.f32 %v1580, %v1588
        %v1593 = vsub.f32 %v1583, %v1591
        %v1594 = vmul.f32 %v1592, 1.442695
        %v1595 = vpow.pop %v1594
        %v1596 = vmul.f32 %v1593, 1.442695
        %v1597 = vpow.pop %v1596
        %v1598 = vsel %vm1398, %v1595, 0.0
        %1599 = vadd.xlane.f32.xlu0 %v1598
        %v1600 = vpop.xlane.xlu0 %1599
        %v1601 = vsel %vm1398, %v1597, 0.0
        %1602 = vadd.xlane.f32.xlu0 %v1601
        %v1603 = vpop.xlane.xlu0 %1602
        %v1604 = vrcp.pop %v1600
        %v1605 = vrcp.pop %v1603
        %v1606 = vmul.f32 %v1595, %v1604
        %v1607 = vmul.f32 %v1597, %v1605
        %v1608 = vpack.c.bf16 %v1607, %v1606
        %1609 = vrot.lane.b32.xlu0 %v1480, 96
        %v1610 = vpop.permute.xlu0 %1609
        %1611 = vrot.lane.b32.xlu0 %v1481, 96
        %v1612 = vpop.permute.xlu0 %1611
        %v1616 = vsel %vm1398, %v1608, 0
        %1618 = vmatprep.subr.bf16.mxu0 0
        %1619 = vmatpush1.bf16.msra.mxu0 0
        %1620 = vmatprep.subr.bf16.mxu0 0
        %1621 = vmatpush1.bf16.msra.mxu0 0
        %1622 = vmatprep.subr.bf16.mxu0 0
        %1623 = vmatpush1.bf16.msra.mxu0 0
        %1624 = vmatprep.subr.bf16.mxu0 0
        %1625 = vmatpush1.bf16.msra.mxu0 0
        %1626 = vmatprep.subr.bf16.mxu0 0
        %1627 = vmatpush1.bf16.msra.mxu0 0
        %1628 = vmatprep.subr.bf16.mxu0 0
        %1629 = vmatpush1.bf16.msra.mxu0 0
        %1630 = vmatprep.subr.bf16.mxu0 0
        %1631 = vmatpush1.bf16.msra.mxu0 %v1612
        %1632 = vmatprep.subr.bf16.mxu0 0
        %1633 = vmatpush1.bf16.msra.mxu0 %v1610
        %1634 = vmatprep.subr.bf16.mxu0 0
        %1635 = vmatpush2.bf16.msra.mxu0 0
        %1636 = vmatprep.subr.bf16.mxu0 0
        %1637 = vmatpush2.bf16.msra.mxu0 0
        %1638 = vmatprep.subr.bf16.mxu0 0
        %1639 = vmatpush2.bf16.msra.mxu0 0
        %1640 = vmatprep.subr.bf16.mxu0 0
        %1641 = vmatpush2.bf16.msra.mxu0 0
        %1642 = vmatprep.subr.bf16.mxu0 0
        %1643 = vmatpush2.bf16.msra.mxu0 0
        %1644 = vmatprep.subr.bf16.mxu0 0
        %1645 = vmatpush2.bf16.msra.mxu0 0
        %1646 = vmatprep.subr.bf16.mxu0 0
        %1647 = vmatpush2.bf16.msra.mxu0 0
        %1648 = vmatprep.subr.bf16.mxu0 0
        %1649 = vmatpush2.bf16.msra.mxu0 0
        %1650 = vmatprep.mubr.bf16.mxu0 0
        %1651 = vmatmul.mubr.bf16.gmra.mxu0 %v1616
        %v1652 = vpop.f32.mrf.mxu0
        %v1653 = vadd.f32 0.0, %v1652
        %v1654 = vpop.f32.mrf.mxu0
        %v1655 = vpop.f32.mrf.mxu0
        %v1656 = vadd.f32 0.0, %v1655
        %v1657 = vpop.f32.mrf.mxu0
        %1658 = vdwg.mxu0
        %v1659 = vpack.c.bf16 %v1656, %v1653
        %1660 = vrot.lane.b32.xlu0 %v1372, 64
        %v1661 = vpop.permute.xlu0 %1660
        %1662 = vrot.lane.b32.xlu0 %v1396, 64
        %v1663 = vpop.permute.xlu0 %1662
        %1664 = vrot.lane.b32.xlu0 %v1397, 64
        %v1665 = vpop.permute.xlu0 %1664
        %v1667 = vsel %vm1398, %v1661, 0
        %v1670 = vsel %vm1398, %v1663, 0
        %v1673 = vsel %vm1398, %v1665, 0
        %1675 = vmatprep.subr.bf16.mxu0 0
        %1676 = vmatpush1.bf16.xpose.msra.mxu0 0
        %1677 = vmatprep.subr.bf16.mxu0 0
        %1678 = vmatpush1.bf16.xpose.msra.mxu0 0
        %1679 = vmatprep.subr.bf16.mxu0 0
        %1680 = vmatpush1.bf16.xpose.msra.mxu0 0
        %1681 = vmatprep.subr.bf16.mxu0 0
        %1682 = vmatpush1.bf16.xpose.msra.mxu0 0
        %1683 = vmatprep.subr.bf16.mxu0 0
        %1684 = vmatpush1.bf16.xpose.msra.mxu0 0
        %1685 = vmatprep.subr.bf16.mxu0 0
        %1686 = vmatpush1.bf16.xpose.msra.mxu0 0
        %1687 = vmatprep.subr.bf16.mxu0 0
        %1688 = vmatpush1.bf16.xpose.msra.mxu0 %v1673
        %1689 = vmatprep.subr.bf16.mxu0 0
        %1690 = vmatpush1.bf16.xpose.msra.mxu0 %v1670
        %1691 = vmatprep.subr.bf16.mxu0 0
        %1692 = vmatpush2.bf16.xpose.msra.mxu0 0
        %1693 = vmatprep.subr.bf16.mxu0 0
        %1694 = vmatpush2.bf16.xpose.msra.mxu0 0
        %1695 = vmatprep.subr.bf16.mxu0 0
        %1696 = vmatpush2.bf16.xpose.msra.mxu0 0
        %1697 = vmatprep.subr.bf16.mxu0 0
        %1698 = vmatpush2.bf16.xpose.msra.mxu0 0
        %1699 = vmatprep.subr.bf16.mxu0 0
        %1700 = vmatpush2.bf16.xpose.msra.mxu0 0
        %1701 = vmatprep.subr.bf16.mxu0 0
        %1702 = vmatpush2.bf16.xpose.msra.mxu0 0
        %1703 = vmatprep.subr.bf16.mxu0 0
        %1704 = vmatpush2.bf16.xpose.msra.mxu0 0
        %1705 = vmatprep.subr.bf16.mxu0 0
        %1706 = vmatpush2.bf16.xpose.msra.mxu0 0
        %1707 = vmatprep.mubr.bf16.mxu0 0
        %1708 = vmatmul.mubr.bf16.gmra.mxu0 %v1667
        %v1709 = vpop.f32.mrf.mxu0
        %v1710 = vadd.f32 %v1386, %v1709
        %v1711 = vpop.f32.mrf.mxu0
        %v1712 = vpop.f32.mrf.mxu0
        %v1713 = vadd.f32 %v1386, %v1712
        %v1714 = vpop.f32.mrf.mxu0
        %1715 = vdwg.mxu0
        %v1716 = vsel %vm1398, %v1710, -inf
        %1717 = vmax.xlane.f32.xlu0 %v1716
        %v1718 = vpop.xlane.xlu0 %1717
        %v1719 = vsel %vm1398, %v1713, -inf
        %1720 = vmax.xlane.f32.xlu0 %v1719
        %v1721 = vpop.xlane.xlu0 %1720
        %v1722 = vsub.f32 %v1710, %v1718
        %v1723 = vsub.f32 %v1713, %v1721
        %v1724 = vmul.f32 %v1722, 1.442695
        %v1725 = vpow.pop %v1724
        %v1726 = vmul.f32 %v1723, 1.442695
        %v1727 = vpow.pop %v1726
        %v1728 = vsel %vm1398, %v1725, 0.0
        %1729 = vadd.xlane.f32.xlu0 %v1728
        %v1730 = vpop.xlane.xlu0 %1729
        %v1731 = vsel %vm1398, %v1727, 0.0
        %1732 = vadd.xlane.f32.xlu0 %v1731
        %v1733 = vpop.xlane.xlu0 %1732
        %v1734 = vrcp.pop %v1730
        %v1735 = vrcp.pop %v1733
        %v1736 = vmul.f32 %v1725, %v1734
        %v1737 = vmul.f32 %v1727, %v1735
        %v1738 = vpack.c.bf16 %v1737, %v1736
        %1739 = vrot.lane.b32.xlu0 %v1480, 64
        %v1740 = vpop.permute.xlu0 %1739
        %1741 = vrot.lane.b32.xlu0 %v1481, 64
        %v1742 = vpop.permute.xlu0 %1741
        %v1746 = vsel %vm1398, %v1738, 0
        %1748 = vmatprep.subr.bf16.mxu0 0
        %1749 = vmatpush1.bf16.msra.mxu0 0
        %1750 = vmatprep.subr.bf16.mxu0 0
        %1751 = vmatpush1.bf16.msra.mxu0 0
        %1752 = vmatprep.subr.bf16.mxu0 0
        %1753 = vmatpush1.bf16.msra.mxu0 0
        %1754 = vmatprep.subr.bf16.mxu0 0
        %1755 = vmatpush1.bf16.msra.mxu0 0
        %1756 = vmatprep.subr.bf16.mxu0 0
        %1757 = vmatpush1.bf16.msra.mxu0 0
        %1758 = vmatprep.subr.bf16.mxu0 0
        %1759 = vmatpush1.bf16.msra.mxu0 0
        %1760 = vmatprep.subr.bf16.mxu0 0
        %1761 = vmatpush1.bf16.msra.mxu0 %v1742
        %1762 = vmatprep.subr.bf16.mxu0 0
        %1763 = vmatpush1.bf16.msra.mxu0 %v1740
        %1764 = vmatprep.subr.bf16.mxu0 0
        %1765 = vmatpush2.bf16.msra.mxu0 0
        %1766 = vmatprep.subr.bf16.mxu0 0
        %1767 = vmatpush2.bf16.msra.mxu0 0
        %1768 = vmatprep.subr.bf16.mxu0 0
        %1769 = vmatpush2.bf16.msra.mxu0 0
        %1770 = vmatprep.subr.bf16.mxu0 0
        %1771 = vmatpush2.bf16.msra.mxu0 0
        %1772 = vmatprep.subr.bf16.mxu0 0
        %1773 = vmatpush2.bf16.msra.mxu0 0
        %1774 = vmatprep.subr.bf16.mxu0 0
        %1775 = vmatpush2.bf16.msra.mxu0 0
        %1776 = vmatprep.subr.bf16.mxu0 0
        %1777 = vmatpush2.bf16.msra.mxu0 0
        %1778 = vmatprep.subr.bf16.mxu0 0
        %1779 = vmatpush2.bf16.msra.mxu0 0
        %1780 = vmatprep.mubr.bf16.mxu0 0
        %1781 = vmatmul.mubr.bf16.gmra.mxu0 %v1746
        %v1782 = vpop.f32.mrf.mxu0
        %v1783 = vadd.f32 0.0, %v1782
        %v1784 = vpop.f32.mrf.mxu0
        %v1785 = vpop.f32.mrf.mxu0
        %v1786 = vadd.f32 0.0, %v1785
        %v1787 = vpop.f32.mrf.mxu0
        %1788 = vdwg.mxu0
        %v1789 = vpack.c.bf16 %v1786, %v1783
        %1790 = vrot.lane.b32.xlu0 %v1372, 32
        %v1791 = vpop.permute.xlu0 %1790
        %1792 = vrot.lane.b32.xlu0 %v1396, 32
        %v1793 = vpop.permute.xlu0 %1792
        %1794 = vrot.lane.b32.xlu0 %v1397, 32
        %v1795 = vpop.permute.xlu0 %1794
        %v1797 = vsel %vm1398, %v1791, 0
        %v1800 = vsel %vm1398, %v1793, 0
        %v1803 = vsel %vm1398, %v1795, 0
        %1805 = vmatprep.subr.bf16.mxu0 0
        %1806 = vmatpush1.bf16.xpose.msra.mxu0 0
        %1807 = vmatprep.subr.bf16.mxu0 0
        %1808 = vmatpush1.bf16.xpose.msra.mxu0 0
        %1809 = vmatprep.subr.bf16.mxu0 0
        %1810 = vmatpush1.bf16.xpose.msra.mxu0 0
        %1811 = vmatprep.subr.bf16.mxu0 0
        %1812 = vmatpush1.bf16.xpose.msra.mxu0 0
        %1813 = vmatprep.subr.bf16.mxu0 0
        %1814 = vmatpush1.bf16.xpose.msra.mxu0 0
        %1815 = vmatprep.subr.bf16.mxu0 0
        %1816 = vmatpush1.bf16.xpose.msra.mxu0 0
        %1817 = vmatprep.subr.bf16.mxu0 0
        %1818 = vmatpush1.bf16.xpose.msra.mxu0 %v1803
        %1819 = vmatprep.subr.bf16.mxu0 0
        %1820 = vmatpush1.bf16.xpose.msra.mxu0 %v1800
        %1821 = vmatprep.subr.bf16.mxu0 0
        %1822 = vmatpush2.bf16.xpose.msra.mxu0 0
        %1823 = vmatprep.subr.bf16.mxu0 0
        %1824 = vmatpush2.bf16.xpose.msra.mxu0 0
        %1825 = vmatprep.subr.bf16.mxu0 0
        %1826 = vmatpush2.bf16.xpose.msra.mxu0 0
        %1827 = vmatprep.subr.bf16.mxu0 0
        %1828 = vmatpush2.bf16.xpose.msra.mxu0 0
        %1829 = vmatprep.subr.bf16.mxu0 0
        %1830 = vmatpush2.bf16.xpose.msra.mxu0 0
        %1831 = vmatprep.subr.bf16.mxu0 0
        %1832 = vmatpush2.bf16.xpose.msra.mxu0 0
        %1833 = vmatprep.subr.bf16.mxu0 0
        %1834 = vmatpush2.bf16.xpose.msra.mxu0 0
        %1835 = vmatprep.subr.bf16.mxu0 0
        %1836 = vmatpush2.bf16.xpose.msra.mxu0 0
        %1837 = vmatprep.mubr.bf16.mxu0 0
        %1838 = vmatmul.mubr.bf16.gmra.mxu0 %v1797
        %v1839 = vpop.f32.mrf.mxu0
        %v1840 = vadd.f32 %v1386, %v1839
        %v1841 = vpop.f32.mrf.mxu0
        %v1842 = vpop.f32.mrf.mxu0
        %v1843 = vadd.f32 %v1386, %v1842
        %v1844 = vpop.f32.mrf.mxu0
        %1845 = vdwg.mxu0
        %v1846 = vsel %vm1398, %v1840, -inf
        %1847 = vmax.xlane.f32.xlu0 %v1846
        %v1848 = vpop.xlane.xlu0 %1847
        %v1849 = vsel %vm1398, %v1843, -inf
        %1850 = vmax.xlane.f32.xlu0 %v1849
        %v1851 = vpop.xlane.xlu0 %1850
        %v1852 = vsub.f32 %v1840, %v1848
        %v1853 = vsub.f32 %v1843, %v1851
        %v1854 = vmul.f32 %v1852, 1.442695
        %v1855 = vpow.pop %v1854
        %v1856 = vmul.f32 %v1853, 1.442695
        %v1857 = vpow.pop %v1856
        %v1858 = vsel %vm1398, %v1855, 0.0
        %1859 = vadd.xlane.f32.xlu0 %v1858
        %v1860 = vpop.xlane.xlu0 %1859
        %v1861 = vsel %vm1398, %v1857, 0.0
        %1862 = vadd.xlane.f32.xlu0 %v1861
        %v1863 = vpop.xlane.xlu0 %1862
        %v1864 = vrcp.pop %v1860
        %v1865 = vrcp.pop %v1863
        %v1866 = vmul.f32 %v1855, %v1864
        %v1867 = vmul.f32 %v1857, %v1865
        %v1868 = vpack.c.bf16 %v1867, %v1866
        %1869 = vrot.lane.b32.xlu0 %v1480, 32
        %v1870 = vpop.permute.xlu0 %1869
        %1871 = vrot.lane.b32.xlu0 %v1481, 32
        %v1872 = vpop.permute.xlu0 %1871
        %v1876 = vsel %vm1398, %v1868, 0
        %1878 = vmatprep.subr.bf16.mxu0 0
        %1879 = vmatpush1.bf16.msra.mxu0 0
        %1880 = vmatprep.subr.bf16.mxu0 0
        %1881 = vmatpush1.bf16.msra.mxu0 0
        %1882 = vmatprep.subr.bf16.mxu0 0
        %1883 = vmatpush1.bf16.msra.mxu0 0
        %1884 = vmatprep.subr.bf16.mxu0 0
        %1885 = vmatpush1.bf16.msra.mxu0 0
        %1886 = vmatprep.subr.bf16.mxu0 0
        %1887 = vmatpush1.bf16.msra.mxu0 0
        %1888 = vmatprep.subr.bf16.mxu0 0
        %1889 = vmatpush1.bf16.msra.mxu0 0
        %1890 = vmatprep.subr.bf16.mxu0 0
        %1891 = vmatpush1.bf16.msra.mxu0 %v1872
        %1892 = vmatprep.subr.bf16.mxu0 0
        %1893 = vmatpush1.bf16.msra.mxu0 %v1870
        %1894 = vmatprep.subr.bf16.mxu0 0
        %1895 = vmatpush2.bf16.msra.mxu0 0
        %1896 = vmatprep.subr.bf16.mxu0 0
        %1897 = vmatpush2.bf16.msra.mxu0 0
        %1898 = vmatprep.subr.bf16.mxu0 0
        %1899 = vmatpush2.bf16.msra.mxu0 0
        %1900 = vmatprep.subr.bf16.mxu0 0
        %1901 = vmatpush2.bf16.msra.mxu0 0
        %1902 = vmatprep.subr.bf16.mxu0 0
        %1903 = vmatpush2.bf16.msra.mxu0 0
        %1904 = vmatprep.subr.bf16.mxu0 0
        %1905 = vmatpush2.bf16.msra.mxu0 0
        %1906 = vmatprep.subr.bf16.mxu0 0
        %1907 = vmatpush2.bf16.msra.mxu0 0
        %1908 = vmatprep.subr.bf16.mxu0 0
        %1909 = vmatpush2.bf16.msra.mxu0 0
        %1910 = vmatprep.mubr.bf16.mxu0 0
        %1911 = vmatmul.mubr.bf16.gmra.mxu0 %v1876
        %v1912 = vpop.f32.mrf.mxu0
        %v1913 = vadd.f32 0.0, %v1912
        %v1914 = vpop.f32.mrf.mxu0
        %v1915 = vpop.f32.mrf.mxu0
        %v1916 = vadd.f32 0.0, %v1915
        %v1917 = vpop.f32.mrf.mxu0
        %1918 = vdwg.mxu0
        %v1919 = vpack.c.bf16 %v1916, %v1913
        %1921 = vrot.lane.b32.xlu0 %v1659, 32
        %v1922 = vpop.permute.xlu0 %1921
        %1924 = vrot.lane.b32.xlu0 %v1789, 64
        %v1925 = vpop.permute.xlu0 %1924
        %1927 = vrot.lane.b32.xlu0 %v1919, 96
        %v1928 = vpop.permute.xlu0 %1927
        %v1931 = vsel %vm1398, %v1528, %v1922
        %vm1932 = vcmask 523264
        %v1934 = vsel %vm1932, %v1931, %v1925
        %vm1935 = vcmask 785408
        %v1937 = vsel %vm1935, %v1934, %v1928
        %v1940 = vlaneseq
        %v1941 = vshrl.u32 %v1940, 7
        %v1942 = vsub.s32 0, %v1941
        %v1943 = vrot.slane %v800, %v1942
        %v1961 = vunpack.c.l.b16 %v784
        %v1962 = vunpack.c.l.b16 %v785
        %v1963 = vunpack.c.l.b16 %v786
        %v1964 = vunpack.c.l.b16 %v787
        %v1965 = vunpack.c.l.b16 %v788
        %v1966 = vunpack.c.l.b16 %v789
        %v1967 = vunpack.c.l.b16 %v790
        %v1968 = vunpack.c.l.b16 %v791
        %v1969 = vunpack.c.l.b16 %v792
        %v1970 = vunpack.c.l.b16 %v793
        %v1971 = vunpack.c.l.b16 %v794
        %v1972 = vunpack.c.l.b16 %v795
        %v1973 = vunpack.c.l.b16 %v796
        %v1974 = vunpack.c.l.b16 %v797
        %v1975 = vunpack.c.l.b16 %v798
        %v1976 = vunpack.c.l.b16 %v799
        %v1977 = vpack.c.b16 %v1962, %v1961
        %v1978 = vpack.c.b16 %v1964, %v1963
        %v1979 = vpack.c.b16 %v1966, %v1965
        %v1980 = vpack.c.b16 %v1968, %v1967
        %v1981 = vpack.c.b16 %v1970, %v1969
        %v1982 = vpack.c.b16 %v1972, %v1971
        %v1983 = vpack.c.b16 %v1974, %v1973
        %v1984 = vpack.c.b16 %v1976, %v1975
        %1993 = vmatprep.subr.bf16.mxu0 0
        %1994 = vmatpush1.bf16.msra.mxu0 %v1984
        %1995 = vmatprep.subr.bf16.mxu0 0
        %1996 = vmatpush1.bf16.msra.mxu0 %v1983
        %1997 = vmatprep.subr.bf16.mxu0 0
        %1998 = vmatpush1.bf16.msra.mxu0 %v1982
        %1999 = vmatprep.subr.bf16.mxu0 0
        %2000 = vmatpush1.bf16.msra.mxu0 %v1981
        %2001 = vmatprep.subr.bf16.mxu0 0
        %2002 = vmatpush1.bf16.msra.mxu0 %v1980
        %2003 = vmatprep.subr.bf16.mxu0 0
        %2004 = vmatpush1.bf16.msra.mxu0 %v1979
        %2005 = vmatprep.subr.bf16.mxu0 0
        %2006 = vmatpush1.bf16.msra.mxu0 %v1978
        %2007 = vmatprep.subr.bf16.mxu0 0
        %2008 = vmatpush1.bf16.msra.mxu0 %v1977
        %2009 = vmatprep.subr.bf16.mxu0 0
        %2010 = vmatpush2.bf16.msra.mxu0 0
        %2011 = vmatprep.subr.bf16.mxu0 0
        %2012 = vmatpush2.bf16.msra.mxu0 0
        %2013 = vmatprep.subr.bf16.mxu0 0
        %2014 = vmatpush2.bf16.msra.mxu0 0
        %2015 = vmatprep.subr.bf16.mxu0 0
        %2016 = vmatpush2.bf16.msra.mxu0 0
        %2017 = vmatprep.subr.bf16.mxu0 0
        %2018 = vmatpush2.bf16.msra.mxu0 0
        %2019 = vmatprep.subr.bf16.mxu0 0
        %2020 = vmatpush2.bf16.msra.mxu0 0
        %2021 = vmatprep.subr.bf16.mxu0 0
        %2022 = vmatpush2.bf16.msra.mxu0 0
        %2023 = vmatprep.subr.bf16.mxu0 0
        %2024 = vmatpush2.bf16.msra.mxu0 0
        %2025 = vmatprep.mubr.bf16.mxu0 0
        %2026 = vmatmul.mubr.bf16.gmra.mxu0 %v1937
        %v2027 = vpop.f32.mrf.mxu0
        %v2028 = vadd.f32 %v1943, %v2027
        %v2029 = vpop.f32.mrf.mxu0
        %v2030 = vpop.f32.mrf.mxu0
        %v2031 = vadd.f32 %v1943, %v2030
        %v2032 = vpop.f32.mrf.mxu0
        %2033 = vdwg.mxu0
        %v2034 = vadd.f32 %v1233, %v2028
        %v2035 = vadd.f32 %v1234, %v2031
        %2036 = vadd.xlane.f32.xlu0 %v2034
        %v2037 = vpop.xlane.xlu0 %2036
        %2038 = vadd.xlane.f32.xlu0 %v2035
        %v2039 = vpop.xlane.xlu0 %2038
        %v2040 = vmul.f32 %v2037, %v1239
        %v2041 = vmul.f32 %v2039, %v1239
        %v2042 = vsub.f32 %v2034, %v2040
        %v2043 = vsub.f32 %v2035, %v2041
        %v2044 = vmul.f32 %v2042, %v2042
        %v2045 = vmul.f32 %v2043, %v2043
        %2046 = vadd.xlane.f32.xlu0 %v2044
        %v2047 = vpop.xlane.xlu0 %2046
        %2048 = vadd.xlane.f32.xlu0 %v2045
        %v2049 = vpop.xlane.xlu0 %2048
        %v2050 = vmul.f32 %v2047, %v1239
        %v2051 = vmul.f32 %v2049, %v1239
        %v2052 = vadd.f32 %v2050, 1e-05
        %v2053 = vadd.f32 %v2051, 1e-05
        %v2054 = vrsqrt.pop %v2052
        %v2055 = vrsqrt.pop %v2053
        %v2056 = vmul.f32 %v2042, %v2054
        %v2057 = vmul.f32 %v2043, %v2055
        %v2059 = vlaneseq
        %v2060 = vshrl.u32 %v2059, 7
        %v2061 = vsub.s32 0, %v2060
        %v2062 = vrot.slane %v801, %v2061
        %v2064 = vmul.f32 %v2056, %v2062
        %v2065 = vmul.f32 %v2057, %v2062
        %v2067 = vlaneseq
        %v2068 = vshrl.u32 %v2067, 7
        %v2069 = vsub.s32 0, %v2068
        %v2070 = vrot.slane %v802, %v2069
        %v2072 = vadd.f32 %v2064, %v2070
        %v2073 = vadd.f32 %v2065, %v2070
        %v2074 = vpack.c.bf16 %v2073, %v2072
        %v2076 = vlaneseq
        %v2077 = vshrl.u32 %v2076, 7
        %v2078 = vsub.s32 0, %v2077
        %v2079 = vrot.slane %v835, %v2078
        %v2080 = vlaneseq
        %v2081 = vshrl.u32 %v2080, 7
        %v2082 = vsub.s32 1, %v2081
        %v2083 = vrot.slane %v835, %v2082
        %v2084 = vlaneseq
        %v2085 = vshrl.u32 %v2084, 7
        %v2086 = vsub.s32 2, %v2085
        %v2087 = vrot.slane %v835, %v2086
        %v2088 = vlaneseq
        %v2089 = vshrl.u32 %v2088, 7
        %v2090 = vsub.s32 3, %v2089
        %v2091 = vrot.slane %v835, %v2090
        %v2128 = vunpack.c.l.b16 %v803
        %v2129 = vunpack.c.h.b16 %v803
        %v2130 = vunpack.c.l.b16 %v804
        %v2131 = vunpack.c.h.b16 %v804
        %v2132 = vunpack.c.l.b16 %v805
        %v2133 = vunpack.c.h.b16 %v805
        %v2134 = vunpack.c.l.b16 %v806
        %v2135 = vunpack.c.h.b16 %v806
        %v2136 = vunpack.c.l.b16 %v807
        %v2137 = vunpack.c.h.b16 %v807
        %v2138 = vunpack.c.l.b16 %v808
        %v2139 = vunpack.c.h.b16 %v808
        %v2140 = vunpack.c.l.b16 %v809
        %v2141 = vunpack.c.h.b16 %v809
        %v2142 = vunpack.c.l.b16 %v810
        %v2143 = vunpack.c.h.b16 %v810
        %v2144 = vunpack.c.l.b16 %v811
        %v2145 = vunpack.c.h.b16 %v811
        %v2146 = vunpack.c.l.b16 %v812
        %v2147 = vunpack.c.h.b16 %v812
        %v2148 = vunpack.c.l.b16 %v813
        %v2149 = vunpack.c.h.b16 %v813
        %v2150 = vunpack.c.l.b16 %v814
        %v2151 = vunpack.c.h.b16 %v814
        %v2152 = vunpack.c.l.b16 %v815
        %v2153 = vunpack.c.h.b16 %v815
        %v2154 = vunpack.c.l.b16 %v816
        %v2155 = vunpack.c.h.b16 %v816
        %v2156 = vunpack.c.l.b16 %v817
        %v2157 = vunpack.c.h.b16 %v817
        %v2158 = vunpack.c.l.b16 %v818
        %v2159 = vunpack.c.h.b16 %v818
        %v2160 = vunpack.c.l.b16 %v819
        %v2161 = vunpack.c.h.b16 %v819
        %v2162 = vunpack.c.l.b16 %v820
        %v2163 = vunpack.c.h.b16 %v820
        %v2164 = vunpack.c.l.b16 %v821
        %v2165 = vunpack.c.h.b16 %v821
        %v2166 = vunpack.c.l.b16 %v822
        %v2167 = vunpack.c.h.b16 %v822
        %v2168 = vunpack.c.l.b16 %v823
        %v2169 = vunpack.c.h.b16 %v823
        %v2170 = vunpack.c.l.b16 %v824
        %v2171 = vunpack.c.h.b16 %v824
        %v2172 = vunpack.c.l.b16 %v825
        %v2173 = vunpack.c.h.b16 %v825
        %v2174 = vunpack.c.l.b16 %v826
        %v2175 = vunpack.c.h.b16 %v826
        %v2176 = vunpack.c.l.b16 %v827
        %v2177 = vunpack.c.h.b16 %v827
        %v2178 = vunpack.c.l.b16 %v828
        %v2179 = vunpack.c.h.b16 %v828
        %v2180 = vunpack.c.l.b16 %v829
        %v2181 = vunpack.c.h.b16 %v829
        %v2182 = vunpack.c.l.b16 %v830
        %v2183 = vunpack.c.h.b16 %v830
        %v2184 = vunpack.c.l.b16 %v831
        %v2185 = vunpack.c.h.b16 %v831
        %v2186 = vunpack.c.l.b16 %v832
        %v2187 = vunpack.c.h.b16 %v832
        %v2188 = vunpack.c.l.b16 %v833
        %v2189 = vunpack.c.h.b16 %v833
        %v2190 = vunpack.c.l.b16 %v834
        %v2191 = vunpack.c.h.b16 %v834
        %v2192 = vpack.c.b16 %v2132, %v2128
        %v2193 = vpack.c.b16 %v2133, %v2129
        %v2194 = vpack.c.b16 %v2134, %v2130
        %v2195 = vpack.c.b16 %v2135, %v2131
        %v2196 = vpack.c.b16 %v2140, %v2136
        %v2197 = vpack.c.b16 %v2141, %v2137
        %v2198 = vpack.c.b16 %v2142, %v2138
        %v2199 = vpack.c.b16 %v2143, %v2139
        %v2200 = vpack.c.b16 %v2148, %v2144
        %v2201 = vpack.c.b16 %v2149, %v2145
        %v2202 = vpack.c.b16 %v2150, %v2146
        %v2203 = vpack.c.b16 %v2151, %v2147
        %v2204 = vpack.c.b16 %v2156, %v2152
        %v2205 = vpack.c.b16 %v2157, %v2153
        %v2206 = vpack.c.b16 %v2158, %v2154
        %v2207 = vpack.c.b16 %v2159, %v2155
        %v2208 = vpack.c.b16 %v2164, %v2160
        %v2209 = vpack.c.b16 %v2165, %v2161
        %v2210 = vpack.c.b16 %v2166, %v2162
        %v2211 = vpack.c.b16 %v2167, %v2163
        %v2212 = vpack.c.b16 %v2172, %v2168
        %v2213 = vpack.c.b16 %v2173, %v2169
        %v2214 = vpack.c.b16 %v2174, %v2170
        %v2215 = vpack.c.b16 %v2175, %v2171
        %v2216 = vpack.c.b16 %v2180, %v2176
        %v2217 = vpack.c.b16 %v2181, %v2177
        %v2218 = vpack.c.b16 %v2182, %v2178
        %v2219 = vpack.c.b16 %v2183, %v2179
        %v2220 = vpack.c.b16 %v2188, %v2184
        %v2221 = vpack.c.b16 %v2189, %v2185
        %v2222 = vpack.c.b16 %v2190, %v2186
        %v2223 = vpack.c.b16 %v2191, %v2187
        %2256 = vmatprep.subr.bf16.mxu0 %v2221
        %2257 = vmatpush1.bf16.msra.mxu0 %v2220
        %2258 = vmatprep.subr.bf16.mxu0 %v2217
        %2259 = vmatpush1.bf16.msra.mxu0 %v2216
        %2260 = vmatprep.subr.bf16.mxu0 %v2213
        %2261 = vmatpush1.bf16.msra.mxu0 %v2212
        %2262 = vmatprep.subr.bf16.mxu0 %v2209
        %2263 = vmatpush1.bf16.msra.mxu0 %v2208
        %2264 = vmatprep.subr.bf16.mxu0 %v2205
        %2265 = vmatpush1.bf16.msra.mxu0 %v2204
        %2266 = vmatprep.subr.bf16.mxu0 %v2201
        %2267 = vmatpush1.bf16.msra.mxu0 %v2200
        %2268 = vmatprep.subr.bf16.mxu0 %v2197
        %2269 = vmatpush1.bf16.msra.mxu0 %v2196
        %2270 = vmatprep.subr.bf16.mxu0 %v2193
        %2271 = vmatpush1.bf16.msra.mxu0 %v2192
        %2272 = vmatprep.subr.bf16.mxu0 0
        %2273 = vmatpush2.bf16.msra.mxu0 0
        %2274 = vmatprep.subr.bf16.mxu0 0
        %2275 = vmatpush2.bf16.msra.mxu0 0
        %2276 = vmatprep.subr.bf16.mxu0 0
        %2277 = vmatpush2.bf16.msra.mxu0 0
        %2278 = vmatprep.subr.bf16.mxu0 0
        %2279 = vmatpush2.bf16.msra.mxu0 0
        %2280 = vmatprep.subr.bf16.mxu0 0
        %2281 = vmatpush2.bf16.msra.mxu0 0
        %2282 = vmatprep.subr.bf16.mxu0 0
        %2283 = vmatpush2.bf16.msra.mxu0 0
        %2284 = vmatprep.subr.bf16.mxu0 0
        %2285 = vmatpush2.bf16.msra.mxu0 0
        %2286 = vmatprep.subr.bf16.mxu0 0
        %2287 = vmatpush2.bf16.msra.mxu0 0
        %2288 = vmatprep.mubr.bf16.mxu0 0
        %2289 = vmatmul.mubr.bf16.gmra.mxu0 %v2074
        %v2290 = vpop.f32.mrf.mxu0
        %v2291 = vadd.f32 %v2079, %v2290
        %v2292 = vpop.f32.mrf.mxu0
        %v2293 = vadd.f32 %v2083, %v2292
        %v2294 = vpop.f32.mrf.mxu0
        %v2295 = vadd.f32 %v2079, %v2294
        %v2296 = vpop.f32.mrf.mxu0
        %v2297 = vadd.f32 %v2083, %v2296
        %2298 = vdwg.mxu0
        %2299 = vmatprep.subr.bf16.mxu0 %v2223
        %2300 = vmatpush1.bf16.msra.mxu0 %v2222
        %2301 = vmatprep.subr.bf16.mxu0 %v2219
        %2302 = vmatpush1.bf16.msra.mxu0 %v2218
        %2303 = vmatprep.subr.bf16.mxu0 %v2215
        %2304 = vmatpush1.bf16.msra.mxu0 %v2214
        %2305 = vmatprep.subr.bf16.mxu0 %v2211
        %2306 = vmatpush1.bf16.msra.mxu0 %v2210
        %2307 = vmatprep.subr.bf16.mxu0 %v2207
        %2308 = vmatpush1.bf16.msra.mxu0 %v2206
        %2309 = vmatprep.subr.bf16.mxu0 %v2203
        %2310 = vmatpush1.bf16.msra.mxu0 %v2202
        %2311 = vmatprep.subr.bf16.mxu0 %v2199
        %2312 = vmatpush1.bf16.msra.mxu0 %v2198
        %2313 = vmatprep.subr.bf16.mxu0 %v2195
        %2314 = vmatpush1.bf16.msra.mxu0 %v2194
        %2315 = vmatprep.subr.bf16.mxu0 0
        %2316 = vmatpush2.bf16.msra.mxu0 0
        %2317 = vmatprep.subr.bf16.mxu0 0
        %2318 = vmatpush2.bf16.msra.mxu0 0
        %2319 = vmatprep.subr.bf16.mxu0 0
        %2320 = vmatpush2.bf16.msra.mxu0 0
        %2321 = vmatprep.subr.bf16.mxu0 0
        %2322 = vmatpush2.bf16.msra.mxu0 0
        %2323 = vmatprep.subr.bf16.mxu0 0
        %2324 = vmatpush2.bf16.msra.mxu0 0
        %2325 = vmatprep.subr.bf16.mxu0 0
        %2326 = vmatpush2.bf16.msra.mxu0 0
        %2327 = vmatprep.subr.bf16.mxu0 0
        %2328 = vmatpush2.bf16.msra.mxu0 0
        %2329 = vmatprep.subr.bf16.mxu0 0
        %2330 = vmatpush2.bf16.msra.mxu0 0
        %2331 = vmatprep.mubr.bf16.mxu0 0
        %2332 = vmatmul.mubr.bf16.gmra.mxu0 %v2074
        %v2333 = vpop.f32.mrf.mxu0
        %v2334 = vadd.f32 %v2087, %v2333
        %v2335 = vpop.f32.mrf.mxu0
        %v2336 = vadd.f32 %v2091, %v2335
        %v2337 = vpop.f32.mrf.mxu0
        %v2338 = vadd.f32 %v2087, %v2337
        %v2339 = vpop.f32.mrf.mxu0
        %v2340 = vadd.f32 %v2091, %v2339
        %2341 = vdwg.mxu0
        %v2342 = vmax.f32 %v2291, 0.0
        %v2343 = vmax.f32 %v2293, 0.0
        %v2344 = vmax.f32 %v2334, 0.0
        %v2345 = vmax.f32 %v2336, 0.0
        %v2346 = vmax.f32 %v2295, 0.0
        %v2347 = vmax.f32 %v2297, 0.0
        %v2348 = vmax.f32 %v2338, 0.0
        %v2349 = vmax.f32 %v2340, 0.0
        %v2350 = vpack.c.bf16 %v2346, %v2342
        %v2351 = vpack.c.bf16 %v2347, %v2343
        %v2352 = vpack.c.bf16 %v2348, %v2344
        %v2353 = vpack.c.bf16 %v2349, %v2345
        %v2355 = vlaneseq
        %v2356 = vshrl.u32 %v2355, 7
        %v2357 = vsub.s32 0, %v2356
        %v2358 = vrot.slane %v900, %v2357
        %v2424 = vunpack.c.l.b16 %v836
        %v2425 = vunpack.c.l.b16 %v837
        %v2426 = vunpack.c.l.b16 %v838
        %v2427 = vunpack.c.l.b16 %v839
        %v2428 = vunpack.c.l.b16 %v840
        %v2429 = vunpack.c.l.b16 %v841
        %v2430 = vunpack.c.l.b16 %v842
        %v2431 = vunpack.c.l.b16 %v843
        %v2432 = vunpack.c.l.b16 %v844
        %v2433 = vunpack.c.l.b16 %v845
        %v2434 = vunpack.c.l.b16 %v846
        %v2435 = vunpack.c.l.b16 %v847
        %v2436 = vunpack.c.l.b16 %v848
        %v2437 = vunpack.c.l.b16 %v849
        %v2438 = vunpack.c.l.b16 %v850
        %v2439 = vunpack.c.l.b16 %v851
        %v2440 = vunpack.c.l.b16 %v852
        %v2441 = vunpack.c.l.b16 %v853
        %v2442 = vunpack.c.l.b16 %v854
        %v2443 = vunpack.c.l.b16 %v855
        %v2444 = vunpack.c.l.b16 %v856
        %v2445 = vunpack.c.l.b16 %v857
        %v2446 = vunpack.c.l.b16 %v858
        %v2447 = vunpack.c.l.b16 %v859
        %v2448 = vunpack.c.l.b16 %v860
        %v2449 = vunpack.c.l.b16 %v861
        %v2450 = vunpack.c.l.b16 %v862
        %v2451 = vunpack.c.l.b16 %v863
        %v2452 = vunpack.c.l.b16 %v864
        %v2453 = vunpack.c.l.b16 %v865
        %v2454 = vunpack.c.l.b16 %v866
        %v2455 = vunpack.c.l.b16 %v867
        %v2456 = vunpack.c.l.b16 %v868
        %v2457 = vunpack.c.l.b16 %v869
        %v2458 = vunpack.c.l.b16 %v870
        %v2459 = vunpack.c.l.b16 %v871
        %v2460 = vunpack.c.l.b16 %v872
        %v2461 = vunpack.c.l.b16 %v873
        %v2462 = vunpack.c.l.b16 %v874
        %v2463 = vunpack.c.l.b16 %v875
        %v2464 = vunpack.c.l.b16 %v876
        %v2465 = vunpack.c.l.b16 %v877
        %v2466 = vunpack.c.l.b16 %v878
        %v2467 = vunpack.c.l.b16 %v879
        %v2468 = vunpack.c.l.b16 %v880
        %v2469 = vunpack.c.l.b16 %v881
        %v2470 = vunpack.c.l.b16 %v882
        %v2471 = vunpack.c.l.b16 %v883
        %v2472 = vunpack.c.l.b16 %v884
        %v2473 = vunpack.c.l.b16 %v885
        %v2474 = vunpack.c.l.b16 %v886
        %v2475 = vunpack.c.l.b16 %v887
        %v2476 = vunpack.c.l.b16 %v888
        %v2477 = vunpack.c.l.b16 %v889
        %v2478 = vunpack.c.l.b16 %v890
        %v2479 = vunpack.c.l.b16 %v891
        %v2480 = vunpack.c.l.b16 %v892
        %v2481 = vunpack.c.l.b16 %v893
        %v2482 = vunpack.c.l.b16 %v894
        %v2483 = vunpack.c.l.b16 %v895
        %v2484 = vunpack.c.l.b16 %v896
        %v2485 = vunpack.c.l.b16 %v897
        %v2486 = vunpack.c.l.b16 %v898
        %v2487 = vunpack.c.l.b16 %v899
        %v2488 = vpack.c.b16 %v2425, %v2424
        %v2489 = vpack.c.b16 %v2427, %v2426
        %v2490 = vpack.c.b16 %v2429, %v2428
        %v2491 = vpack.c.b16 %v2431, %v2430
        %v2492 = vpack.c.b16 %v2433, %v2432
        %v2493 = vpack.c.b16 %v2435, %v2434
        %v2494 = vpack.c.b16 %v2437, %v2436
        %v2495 = vpack.c.b16 %v2439, %v2438
        %v2496 = vpack.c.b16 %v2441, %v2440
        %v2497 = vpack.c.b16 %v2443, %v2442
        %v2498 = vpack.c.b16 %v2445, %v2444
        %v2499 = vpack.c.b16 %v2447, %v2446
        %v2500 = vpack.c.b16 %v2449, %v2448
        %v2501 = vpack.c.b16 %v2451, %v2450
        %v2502 = vpack.c.b16 %v2453, %v2452
        %v2503 = vpack.c.b16 %v2455, %v2454
        %v2504 = vpack.c.b16 %v2457, %v2456
        %v2505 = vpack.c.b16 %v2459, %v2458
        %v2506 = vpack.c.b16 %v2461, %v2460
        %v2507 = vpack.c.b16 %v2463, %v2462
        %v2508 = vpack.c.b16 %v2465, %v2464
        %v2509 = vpack.c.b16 %v2467, %v2466
        %v2510 = vpack.c.b16 %v2469, %v2468
        %v2511 = vpack.c.b16 %v2471, %v2470
        %v2512 = vpack.c.b16 %v2473, %v2472
        %v2513 = vpack.c.b16 %v2475, %v2474
        %v2514 = vpack.c.b16 %v2477, %v2476
        %v2515 = vpack.c.b16 %v2479, %v2478
        %v2516 = vpack.c.b16 %v2481, %v2480
        %v2517 = vpack.c.b16 %v2483, %v2482
        %v2518 = vpack.c.b16 %v2485, %v2484
        %v2519 = vpack.c.b16 %v2487, %v2486
        %2552 = vmatprep.subr.bf16.mxu0 0
        %2553 = vmatpush1.bf16.msra.mxu0 %v2495
        %2554 = vmatprep.subr.bf16.mxu0 0
        %2555 = vmatpush1.bf16.msra.mxu0 %v2494
        %2556 = vmatprep.subr.bf16.mxu0 0
        %2557 = vmatpush1.bf16.msra.mxu0 %v2493
        %2558 = vmatprep.subr.bf16.mxu0 0
        %2559 = vmatpush1.bf16.msra.mxu0 %v2492
        %2560 = vmatprep.subr.bf16.mxu0 0
        %2561 = vmatpush1.bf16.msra.mxu0 %v2491
        %2562 = vmatprep.subr.bf16.mxu0 0
        %2563 = vmatpush1.bf16.msra.mxu0 %v2490
        %2564 = vmatprep.subr.bf16.mxu0 0
        %2565 = vmatpush1.bf16.msra.mxu0 %v2489
        %2566 = vmatprep.subr.bf16.mxu0 0
        %2567 = vmatpush1.bf16.msra.mxu0 %v2488
        %2568 = vmatprep.subr.bf16.mxu0 0
        %2569 = vmatpush2.bf16.msra.mxu0 %v2503
        %2570 = vmatprep.subr.bf16.mxu0 0
        %2571 = vmatpush2.bf16.msra.mxu0 %v2502
        %2572 = vmatprep.subr.bf16.mxu0 0
        %2573 = vmatpush2.bf16.msra.mxu0 %v2501
        %2574 = vmatprep.subr.bf16.mxu0 0
        %2575 = vmatpush2.bf16.msra.mxu0 %v2500
        %2576 = vmatprep.subr.bf16.mxu0 0
        %2577 = vmatpush2.bf16.msra.mxu0 %v2499
        %2578 = vmatprep.subr.bf16.mxu0 0
        %2579 = vmatpush2.bf16.msra.mxu0 %v2498
        %2580 = vmatprep.subr.bf16.mxu0 0
        %2581 = vmatpush2.bf16.msra.mxu0 %v2497
        %2582 = vmatprep.subr.bf16.mxu0 0
        %2583 = vmatpush2.bf16.msra.mxu0 %v2496
        %2584 = vmatprep.mubr.bf16.mxu0 %v2351
        %2585 = vmatmul.mubr.bf16.gmra.mxu0 %v2350
        %v2586 = vpop.f32.mrf.mxu0
        %v2587 = vadd.f32 %v2358, %v2586
        %v2588 = vpop.f32.mrf.mxu0
        %v2589 = vpop.f32.mrf.mxu0
        %v2590 = vadd.f32 %v2358, %v2589
        %v2591 = vpop.f32.mrf.mxu0
        %2592 = vdwg.mxu0
        %2593 = vmatprep.subr.bf16.mxu0 0
        %2594 = vmatpush1.bf16.msra.mxu0 %v2511
        %2595 = vmatprep.subr.bf16.mxu0 0
        %2596 = vmatpush1.bf16.msra.mxu0 %v2510
        %2597 = vmatprep.subr.bf16.mxu0 0
        %2598 = vmatpush1.bf16.msra.mxu0 %v2509
        %2599 = vmatprep.subr.bf16.mxu0 0
        %2600 = vmatpush1.bf16.msra.mxu0 %v2508
        %2601 = vmatprep.subr.bf16.mxu0 0
        %2602 = vmatpush1.bf16.msra.mxu0 %v2507
        %2603 = vmatprep.subr.bf16.mxu0 0
        %2604 = vmatpush1.bf16.msra.mxu0 %v2506
        %2605 = vmatprep.subr.bf16.mxu0 0
        %2606 = vmatpush1.bf16.msra.mxu0 %v2505
        %2607 = vmatprep.subr.bf16.mxu0 0
        %2608 = vmatpush1.bf16.msra.mxu0 %v2504
        %2609 = vmatprep.subr.bf16.mxu0 0
        %2610 = vmatpush2.bf16.msra.mxu0 %v2519
        %2611 = vmatprep.subr.bf16.mxu0 0
        %2612 = vmatpush2.bf16.msra.mxu0 %v2518
        %2613 = vmatprep.subr.bf16.mxu0 0
        %2614 = vmatpush2.bf16.msra.mxu0 %v2517
        %2615 = vmatprep.subr.bf16.mxu0 0
        %2616 = vmatpush2.bf16.msra.mxu0 %v2516
        %2617 = vmatprep.subr.bf16.mxu0 0
        %2618 = vmatpush2.bf16.msra.mxu0 %v2515
        %2619 = vmatprep.subr.bf16.mxu0 0
        %2620 = vmatpush2.bf16.msra.mxu0 %v2514
        %2621 = vmatprep.subr.bf16.mxu0 0
        %2622 = vmatpush2.bf16.msra.mxu0 %v2513
        %2623 = vmatprep.subr.bf16.mxu0 0
        %2624 = vmatpush2.bf16.msra.mxu0 %v2512
        %2625 = vmatprep.mubr.bf16.mxu0 %v2353
        %2626 = vmatmul.mubr.bf16.gmra.mxu0 %v2352
        %v2627 = vpop.f32.mrf.mxu0
        %v2628 = vadd.f32 %v2587, %v2627
        %v2629 = vpop.f32.mrf.mxu0
        %v2630 = vpop.f32.mrf.mxu0
        %v2631 = vadd.f32 %v2590, %v2630
        %v2632 = vpop.f32.mrf.mxu0
        %2633 = vdwg.mxu0
        %v2634 = vadd.f32 %v2034, %v2628
        %v2635 = vadd.f32 %v2035, %v2631
        %v2636 = vpack.c.bf16 %v2635, %v2634
        %v2638 = vunpack.c.l.b16 %v2636
        %v2639 = vunpack.c.h.b16 %v2636
        %v2640 = vpack.c.b16 %v2638, %v2638
        %v2641 = vpack.c.b16 %v2639, %v2639
        %2644 = vst [vmem:[%s728] sm:$0xf] %v2640
        %2645 = vst [vmem:[%s728 + $0x4] sm:$0xf] %v2641
        %s2646 = sand.u32 %s451, 1
        %s2647 = scalar_lea.sflag [#allocation6], %s2646
        %s2648 = sand.u32 %s451, 1
        %s2649 = smul.addr %s2648, 8
        %s2650 = scalar_lea.vmem [#allocation18], %s2649
        // Predicated region
        $region129: #{tpu_custom_call.1} parent=91 // pred_check
          %p2651 = pneg %p461
        $region130: #{tpu_custom_call.1} parent=91 // pred_check_branch
          %2653 = sbr.rel (%p2651) target = $region132
        $region131: #{tpu_custom_call.1} parent=91 // pred_region
          %s2654 = smul.u32 2, %s46
          %s2656 = ssub.s32 128, 128
          %2657 = vsyncadd %s2647, %s2656
          %s2658 = smul.addr %s45, 4
          %s2659 = sadd.s32 %s2654, %s2658
          %s2660 = smul.addr %s2659, 64
          %s2661 = scalar_lea.hbm %s18, %s2660
          %s2662 = sshll.u32 %s2650, 4
          %s2663 = int_to_ptr.vmem [resolvable:$true] %s2662
          %2668 = dma.vmem_to_hbm [thread:$0]  %s2663, 128, %s2661, %s2647, 64, 64, 4
        $region132: #{tpu_custom_call.1} parent=91 // pred_fallthru
          _
      $region92: #{tpu_custom_call.1} parent=5 // pred_fallthru
        _
      %p2669 = scmp.le.s32.totalorder 2, %s36
      // Predicated region
      $region133: #{tpu_custom_call.1} parent=5 // pred_check
        %p2670 = pneg %p2669
      $region134: #{tpu_custom_call.1} parent=5 // pred_check_branch
        %2672 = sbr.rel (%p2670) target = $region136
      $region135: #{tpu_custom_call.1} parent=5 // pred_region
        %s2673 = ssub.s32 %s36, 2
        // Predicated region
        $region137: #{tpu_custom_call.1} parent=135 // pred_check
          %p2674 = pneg %p467
        $region138: #{tpu_custom_call.1} parent=135 // pred_check_branch
          %2676 = sbr.rel (%p2674) target = $region140
        $region139: #{tpu_custom_call.1} parent=135 // pred_region
          %s2677 = sand.u32 %s452, 1
          %s2678 = scalar_lea.sflag [#allocation6], %s2677
          %s2679 = sand.u32 %s452, 1
          %s2680 = smul.addr %s2679, 8
          %s2681 = scalar_lea.vmem [#allocation18], %s2680
          %2682 = dma.done %s2678, 128
        $region140: #{tpu_custom_call.1} parent=135 // pred_fallthru
          _
      $region136: #{tpu_custom_call.1} parent=5 // pred_fallthru
        _
    $region6: #{tpu_custom_call.1} parent=1 // loop_footer
      %s40 = sadd.s32 1, %s36
    $region7: #{tpu_custom_call.1} parent=1 // loop_footer_branch
      %35 = sbr.rel target = $region3
    $region8: #{tpu_custom_call.1} parent=1 // loop_exit
      _
    %2683 = vsyncpa [#allocation5], 1
    %s2684 = scalar_lea.sflag [#allocation5], 1
    %2685 = vsyncpa %s2684, 1
    %2686 = vsyncpa [#allocation8], 1
    %s2687 = scalar_lea.sflag [#allocation8], 1
    %2688 = vsyncpa %s2687, 1
    %2689 = vsyncpa [#allocation11], 1
    %2690 = vsyncpa [#allocation14], 1
    %2691 = vsyncpa [#allocation17], 1
    %2692 = vsyncpa [#allocation6], 1
    %s2693 = scalar_lea.sflag [#allocation6], 1
    %2694 = vsyncpa %s2693, 1

</llo_original>
